<compile_context>
chip_gen: v7x
topology: tpu7x:2x2x1
jax: 0.10.0
libtpu: 0.0.40
codegen_flags: <defaults>
</compile_context>

<pallas_src>
import jax
import jax.numpy as jnp
from jax.experimental import pallas as pl
from jax.experimental.pallas import tpu as pltpu

MapX = 16
MapY = 16
IN_DIM = MapX * MapY * 27   # 6912
H1 = 512
H2 = 32
OUT = 4

H2_PAD = 128                # lane-dense padding of the 32-wide hidden layer
OUT_PAD = 128               # lane-dense padding of the 4-wide output
TK = 3456                   # 27 * 128; 6912 / 3456 = 2 reduction steps
TB_MAX = 256                # cap on rows per batch tile


def _round_up(n, m):
    return (n + m - 1) // m * m


def _mlp_kernel(x_ref, w1_ref, b1_ref, w2_ref, b2_ref, w3_ref, b3_ref,
                out_ref, h1_acc):
    k = pl.program_id(1)

    @pl.when(k == 0)
    def _():
        h1_acc[...] = jnp.zeros_like(h1_acc)

    # fc1 partial product for this K-slice: bf16 x bf16 on the MXU, f32 acc.
    h1_acc[...] += jnp.dot(x_ref[...], w1_ref[...],
                           preferred_element_type=jnp.float32)

    @pl.when(k == pl.num_programs(1) - 1)
    def _():
        # Epilogue, all f32 (v5e-friendly). Padded columns/rows are zero, so
        # they contribute nothing to the real logits.
        h1 = jnp.maximum(h1_acc[...] + b1_ref[...], 0.0)
        h2 = jnp.dot(h1, w2_ref[...], preferred_element_type=jnp.float32)
        h2 = jnp.maximum(h2 + b2_ref[...], 0.0)
        y = jnp.dot(h2, w3_ref[...], preferred_element_type=jnp.float32)
        out_ref[...] = (y + b3_ref[...]).astype(out_ref.dtype)


def prepare_params(torch_params):
    """One-time conversion from PyTorch (out, in) layout to kernel layout.

    Done once at param-load time (NOT per forward call):
      * fc1 weight -> transposed (in, out) and cast to bf16
      * fc2/out weights & biases -> transposed, zero-padded to 128-wide tiles
    """
    w1 = torch_params["fc1_w"].T.astype(jnp.bfloat16)               # (IN_DIM, H1)
    b1 = torch_params["fc1_b"].reshape(1, H1).astype(jnp.float32)

    w2 = jnp.zeros((H1, H2_PAD), jnp.float32)
    w2 = w2.at[:, :H2].set(torch_params["fc2_w"].T.astype(jnp.float32))
    b2 = jnp.zeros((1, H2_PAD), jnp.float32)
    b2 = b2.at[:, :H2].set(torch_params["fc2_b"].astype(jnp.float32))

    w3 = jnp.zeros((H2_PAD, OUT_PAD), jnp.float32)
    w3 = w3.at[:H2, :OUT].set(torch_params["out_w"].T.astype(jnp.float32))
    b3 = jnp.zeros((1, OUT_PAD), jnp.float32)
    b3 = b3.at[:, :OUT].set(torch_params["out_b"].astype(jnp.float32))

    return dict(w1=w1, b1=b1, w2=w2, b2=b2, w3=w3, b3=b3)


def direction_net_forward(x, prepared):
    """x: (B, IN_DIM) f32. prepared: output of prepare_params()."""
    B = x.shape[0]
    assert x.shape[1] == IN_DIM
    assert IN_DIM % TK == 0
    k_steps = IN_DIM // TK

    # Pad batch to a multiple of 16 (bf16 sublane packing); tile it at TB rows.
    B_pad = _round_up(B, 16)
    TB = min(B_pad, TB_MAX)
    B_pad = _round_up(B_pad, TB)
    if B_pad != B:
        x = jnp.pad(x, ((0, B_pad - B), (0, 0)))
    x = x.astype(jnp.bfloat16)   # cheap per-call cast (~tens of KB)

    w1, b1 = prepared["w1"], prepared["b1"]
    w2, b2 = prepared["w2"], prepared["b2"]
    w3, b3 = prepared["w3"], prepared["b3"]

    grid = (B_pad // TB, k_steps)

    cost = pl.CostEstimate(
        flops=2 * B_pad * (IN_DIM * H1 + H1 * H2_PAD + H2_PAD * OUT_PAD),
        transcendentals=0,
        bytes_accessed=(w1.size * 2 + x.size * 2            # bf16 streams
                        + (b1.size + w2.size + b2.size + w3.size + b3.size) * 4
                        + B_pad * OUT_PAD * 4),              # f32 output
    )

    out = pl.pallas_call(
        _mlp_kernel,
        out_shape=jax.ShapeDtypeStruct((B_pad, OUT_PAD), jnp.float32),
        grid_spec=pltpu.PrefetchScalarGridSpec(
            num_scalar_prefetch=0,
            grid=grid,
            in_specs=[
                pl.BlockSpec((TB, TK), lambda b, k: (b, k)),       # x K-slice
                pl.BlockSpec((TK, H1), lambda b, k: (k, 0)),       # w1 K-slice
                pl.BlockSpec((1, H1), lambda b, k: (0, 0)),        # b1
                pl.BlockSpec((H1, H2_PAD), lambda b, k: (0, 0)),   # w2 (padded)
                pl.BlockSpec((1, H2_PAD), lambda b, k: (0, 0)),    # b2 (padded)
                pl.BlockSpec((H2_PAD, OUT_PAD), lambda b, k: (0, 0)),  # w3 (padded)
                pl.BlockSpec((1, OUT_PAD), lambda b, k: (0, 0)),   # b3 (padded)
            ],
            out_specs=pl.BlockSpec((TB, OUT_PAD), lambda b, k: (b, 0)),
            scratch_shapes=[pltpu.VMEM((TB, H1), jnp.float32)],
        ),
        compiler_params=pltpu.CompilerParams(
            dimension_semantics=("parallel", "arbitrary"),
            vmem_limit_bytes=32 << 20,
        ),
        cost_estimate=cost,
    )(x, w1, b1, w2, b2, w3, b3)

    return out[:B, :OUT]


def init_params(key):
    """Deterministic init mirroring the PyTorch module:
    weights ~ Normal(0, 0.1); biases ~ Uniform(-1/sqrt(fan_in), 1/sqrt(fan_in))
    (nn.Linear default bias init, left untouched by the module)."""
    ks = jax.random.split(key, 6)

    def lin(kw, kb, fan_in, fan_out):
        w = 0.1 * jax.random.normal(kw, (fan_out, fan_in), dtype=jnp.float32)
        bound = 1.0 / jnp.sqrt(jnp.float32(fan_in))
        b = jax.random.uniform(kb, (fan_out,), dtype=jnp.float32,
                               minval=-bound, maxval=bound)
        return w, b

    fc1_w, fc1_b = lin(ks[0], ks[1], IN_DIM, H1)
    fc2_w, fc2_b = lin(ks[2], ks[3], H1, H2)
    out_w, out_b = lin(ks[4], ks[5], H2, OUT)
    return dict(fc1_w=fc1_w, fc1_b=fc1_b,
                fc2_w=fc2_w, fc2_b=fc2_b,
                out_w=out_w, out_b=out_b)


def _reference_bf16(x, p):
    """Reference with the same bf16-input / f32-accumulate fc1 as the kernel."""
    h1 = jnp.dot(x.astype(jnp.bfloat16), p["fc1_w"].T.astype(jnp.bfloat16),
                 preferred_element_type=jnp.float32) + p["fc1_b"]
    h1 = jnp.maximum(h1, 0.0)
    h2 = jnp.maximum(h1 @ p["fc2_w"].T + p["fc2_b"], 0.0)
    return h2 @ p["out_w"].T + p["out_b"]


def _reference_f32(x, p):
    h1 = jnp.maximum(x @ p["fc1_w"].T + p["fc1_b"], 0.0)
    h2 = jnp.maximum(h1 @ p["fc2_w"].T + p["fc2_b"], 0.0)
    return h2 @ p["out_w"].T + p["out_b"]


if __name__ == "__main__":
    key = jax.random.PRNGKey(0)
    kx, kp = jax.random.split(key)

    B = 2
    x = jax.random.normal(kx, (B, IN_DIM), dtype=jnp.float32)
    params = init_params(kp)

    # One-time layout / dtype conversion (hoisted out of the forward pass).
    prepared = prepare_params(params)
    prepared = jax.tree_util.tree_map(jax.block_until_ready, prepared)

    y = direction_net_forward(x, prepared)
    y = jax.block_until_ready(y)

    assert y.shape == (B, OUT)
    y_ref_bf16 = _reference_bf16(x, params)
    assert jnp.allclose(y, y_ref_bf16, atol=1e-2, rtol=1e-2), \
        "mismatch vs bf16 reference"
    # Loose sanity check against the pure-f32 reference (bf16 weight rounding).
    y_ref_f32 = _reference_f32(x, params)
    assert jnp.allclose(y, y_ref_f32, atol=0.25, rtol=5e-2), \
        "mismatch vs f32 reference"

    print("KERNEL_OK")
</pallas_src>

<mosaic_0001>
module attributes {stable_mosaic.version = 11 : i64} {
  func.func @_mlp_kernel(%arg0: i32, %arg1: i32, %arg2: memref<16x3456xbf16, #tpu.memory_space<vmem>>, %arg3: memref<3456x512xbf16, #tpu.memory_space<vmem>>, %arg4: memref<1x512xf32, #tpu.memory_space<vmem>>, %arg5: memref<512x128xf32, #tpu.memory_space<vmem>>, %arg6: memref<1x128xf32, #tpu.memory_space<vmem>>, %arg7: memref<128x128xf32, #tpu.memory_space<vmem>>, %arg8: memref<1x128xf32, #tpu.memory_space<vmem>>, %arg9: memref<16x128xf32, #tpu.memory_space<vmem>>, %arg10: memref<16x512xf32, #tpu.memory_space<vmem>>) attributes {dimension_semantics = [#tpu.dimension_semantics<parallel>, #tpu.dimension_semantics<arbitrary>], iteration_bounds = array<i64: 1, 2>, scalar_prefetch = 0 : i64, scratch_operands = 1 : i64, tpu.core_type = #tpu.core_type<tc>, window_params = [{transform_indices = @transform_0, window_bounds = array<i64: 16, 3456>}, {transform_indices = @transform_1, window_bounds = array<i64: 3456, 512>}, {pipeline_mode = #tpu.pipeline_mode<synchronous>, transform_indices = @transform_2, window_bounds = array<i64: 1, 512>}, {pipeline_mode = #tpu.pipeline_mode<synchronous>, transform_indices = @transform_3, window_bounds = array<i64: 512, 128>}, {pipeline_mode = #tpu.pipeline_mode<synchronous>, transform_indices = @transform_4, window_bounds = array<i64: 1, 128>}, {pipeline_mode = #tpu.pipeline_mode<synchronous>, transform_indices = @transform_5, window_bounds = array<i64: 128, 128>}, {pipeline_mode = #tpu.pipeline_mode<synchronous>, transform_indices = @transform_6, window_bounds = array<i64: 1, 128>}, {transform_indices = @transform_7, window_bounds = array<i64: 16, 128>}]} {
    %c0_i32 = arith.constant 0 : i32
    %0 = arith.cmpi eq, %arg1, %c0_i32 : i32
    %1 = arith.extui %0 : i1 to i32
    %c0_i32_0 = arith.constant 0 : i32
    %2 = arith.cmpi ne, %1, %c0_i32_0 : i32
    scf.if %2 {
      %cst_9 = arith.constant 0.000000e+00 : f32
      %12 = vector.broadcast %cst_9 : f32 to vector<16x512xf32>
      %c0_10 = arith.constant 0 : index
      %c0_11 = arith.constant 0 : index
      %13 = vector.load %arg10[%c0_10, %c0_11] : memref<16x512xf32, #tpu.memory_space<vmem>>, vector<16x512xf32>
      tpu.vector_store %arg10[%c0_10, %c0_11], %12 {strides = array<i32>} : memref<16x512xf32, #tpu.memory_space<vmem>>, vector<16x512xf32>,
    } else {
    }
    %c0 = arith.constant 0 : index
    %c0_1 = arith.constant 0 : index
    %3 = vector.load %arg10[%c0, %c0_1] : memref<16x512xf32, #tpu.memory_space<vmem>>, vector<16x512xf32>
    %c0_2 = arith.constant 0 : index
    %c0_3 = arith.constant 0 : index
    %4 = vector.load %arg2[%c0_2, %c0_3] : memref<16x3456xbf16, #tpu.memory_space<vmem>>, vector<16x3456xbf16>
    %c0_4 = arith.constant 0 : index
    %c0_5 = arith.constant 0 : index
    %5 = vector.load %arg3[%c0_4, %c0_5] : memref<3456x512xbf16, #tpu.memory_space<vmem>>, vector<3456x512xbf16>
    %cst = arith.constant dense<0.000000e+00> : vector<16x512xf32>
    %6 = tpu.matmul %4, %5, %cst {dimension_numbers = #tpu.dot_dimension_numbers<[1], [0], [0], [1], [0, 0, 1, 1], [], []>} : vector<16x3456xbf16>, vector<3456x512xbf16>, vector<16x512xf32> -> vector<16x512xf32>
    %7 = arith.addf %3, %6 : vector<16x512xf32>
    %c0_6 = arith.constant 0 : index
    %c0_7 = arith.constant 0 : index
    %8 = vector.load %arg10[%c0_6, %c0_7] : memref<16x512xf32, #tpu.memory_space<vmem>>, vector<16x512xf32>
    tpu.vector_store %arg10[%c0_6, %c0_7], %7 {strides = array<i32>} : memref<16x512xf32, #tpu.memory_space<vmem>>, vector<16x512xf32>,
    %c1_i32 = arith.constant 1 : i32
    %9 = arith.cmpi eq, %arg1, %c1_i32 : i32
    %10 = arith.extui %9 : i1 to i32
    %c0_i32_8 = arith.constant 0 : i32
    %11 = arith.cmpi ne, %10, %c0_i32_8 : i32
    scf.if %11 {
      %c0_9 = arith.constant 0 : index
      %c0_10 = arith.constant 0 : index
      %12 = vector.load %arg10[%c0_9, %c0_10] : memref<16x512xf32, #tpu.memory_space<vmem>>, vector<16x512xf32>
      %c0_11 = arith.constant 0 : index
      %c0_12 = arith.constant 0 : index
      %13 = vector.load %arg4[%c0_11, %c0_12] : memref<1x512xf32, #tpu.memory_space<vmem>>, vector<1x512xf32>
      %14 = vector.broadcast %13 : vector<1x512xf32> to vector<16x512xf32>
      %15 = arith.addf %12, %14 : vector<16x512xf32>
      %cst_13 = arith.constant 0.000000e+00 : f32
      %16 = vector.broadcast %cst_13 : f32 to vector<16x512xf32>
      %17 = arith.maximumf %15, %16 : vector<16x512xf32>
      %c0_14 = arith.constant 0 : index
      %c0_15 = arith.constant 0 : index
      %18 = vector.load %arg5[%c0_14, %c0_15] : memref<512x128xf32, #tpu.memory_space<vmem>>, vector<512x128xf32>
      %cst_16 = arith.constant dense<0.000000e+00> : vector<16x128xf32>
      %19 = tpu.matmul %17, %18, %cst_16 {dimension_numbers = #tpu.dot_dimension_numbers<[1], [0], [0], [1], [0, 0, 1, 1], [], []>} : vector<16x512xf32>, vector<512x128xf32>, vector<16x128xf32> -> vector<16x128xf32>
      %c0_17 = arith.constant 0 : index
      %c0_18 = arith.constant 0 : index
      %20 = vector.load %arg6[%c0_17, %c0_18] : memref<1x128xf32, #tpu.memory_space<vmem>>, vector<1x128xf32>
      %21 = vector.broadcast %20 : vector<1x128xf32> to vector<16x128xf32>
      %22 = arith.addf %19, %21 : vector<16x128xf32>
      %cst_19 = arith.constant 0.000000e+00 : f32
      %23 = vector.broadcast %cst_19 : f32 to vector<16x128xf32>
      %24 = arith.maximumf %22, %23 : vector<16x128xf32>
      %c0_20 = arith.constant 0 : index
      %c0_21 = arith.constant 0 : index
      %25 = vector.load %arg7[%c0_20, %c0_21] : memref<128x128xf32, #tpu.memory_space<vmem>>, vector<128x128xf32>
      %cst_22 = arith.constant dense<0.000000e+00> : vector<16x128xf32>
      %26 = tpu.matmul %24, %25, %cst_22 {dimension_numbers = #tpu.dot_dimension_numbers<[1], [0], [0], [1], [0, 0, 1, 1], [], []>} : vector<16x128xf32>, vector<128x128xf32>, vector<16x128xf32> -> vector<16x128xf32>
      %c0_23 = arith.constant 0 : index
      %c0_24 = arith.constant 0 : index
      %27 = vector.load %arg8[%c0_23, %c0_24] : memref<1x128xf32, #tpu.memory_space<vmem>>, vector<1x128xf32>
      %28 = vector.broadcast %27 : vector<1x128xf32> to vector<16x128xf32>
      %29 = arith.addf %26, %28 : vector<16x128xf32>
      %c0_25 = arith.constant 0 : index
      %c0_26 = arith.constant 0 : index
      %30 = vector.load %arg9[%c0_25, %c0_26] : memref<16x128xf32, #tpu.memory_space<vmem>>, vector<16x128xf32>
      tpu.vector_store %arg9[%c0_25, %c0_26], %29 {strides = array<i32>} : memref<16x128xf32, #tpu.memory_space<vmem>>, vector<16x128xf32>,
    } else {
    }
    return
  }
  func.func @transform_0(%arg0: i32, %arg1: i32) -> (i32, i32) {
    %c0_i32 = arith.constant 0 : i32
    return %arg0, %arg1 : i32, i32
  }
  func.func @transform_1(%arg0: i32, %arg1: i32) -> (i32, i32) {
    %c0_i32 = arith.constant 0 : i32
    %c0_i32_0 = arith.constant 0 : i32
    return %arg1, %c0_i32 : i32, i32
  }
  func.func @transform_2(%arg0: i32, %arg1: i32) -> (i32, i32) {
    %c0_i32 = arith.constant 0 : i32
    %c0_i32_0 = arith.constant 0 : i32
    %c0_i32_1 = arith.constant 0 : i32
    return %c0_i32, %c0_i32_0 : i32, i32
  }
  func.func @transform_3(%arg0: i32, %arg1: i32) -> (i32, i32) {
    %c0_i32 = arith.constant 0 : i32
    %c0_i32_0 = arith.constant 0 : i32
    %c0_i32_1 = arith.constant 0 : i32
    return %c0_i32, %c0_i32_0 : i32, i32
  }
  func.func @transform_4(%arg0: i32, %arg1: i32) -> (i32, i32) {
    %c0_i32 = arith.constant 0 : i32
    %c0_i32_0 = arith.constant 0 : i32
    %c0_i32_1 = arith.constant 0 : i32
    return %c0_i32, %c0_i32_0 : i32, i32
  }
  func.func @transform_5(%arg0: i32, %arg1: i32) -> (i32, i32) {
    %c0_i32 = arith.constant 0 : i32
    %c0_i32_0 = arith.constant 0 : i32
    %c0_i32_1 = arith.constant 0 : i32
    return %c0_i32, %c0_i32_0 : i32, i32
  }
  func.func @transform_6(%arg0: i32, %arg1: i32) -> (i32, i32) {
    %c0_i32 = arith.constant 0 : i32
    %c0_i32_0 = arith.constant 0 : i32
    %c0_i32_1 = arith.constant 0 : i32
    return %c0_i32, %c0_i32_0 : i32, i32
  }
  func.func @transform_7(%arg0: i32, %arg1: i32) -> (i32, i32) {
    %c0_i32 = arith.constant 0 : i32
    %c0_i32_0 = arith.constant 0 : i32
    return %arg0, %c0_i32 : i32, i32
  }
}

</mosaic_0001>

<llo_original>
// kernel: tpu_custom_call.1
$region0: #{tpu_custom_call.1}
  #allocation0 [shape = 'u32[]', space=smem, size = 0x4, offset = 0x4, fixed_abs, tag = 'smem constant byte address 0x4 - core index']
  #allocation1 [shape = 'u32[144,128]{1,0:T(1,128)}', space=vmem, size = 0x12000, scoped, tag = 'internal scratch']
  #allocation2 [shape = 'f32[16,512]{1,0:T(8,128)}', space=vmem, size = 0x8000, scoped, tag = 'scratch operand']
  %s0 = inlined_call_operand.hbm [shape: bf16[16,6912], index: 0, kind: input, shape index: {}]
  %s1 = inlined_call_operand.hbm [shape: bf16[6912,512], index: 1, kind: input, shape index: {}]
  %s2 = inlined_call_operand.hbm [shape: f32[1,512], index: 2, kind: input, shape index: {}]
  %s3 = inlined_call_operand.hbm [shape: f32[512,128], index: 3, kind: input, shape index: {}]
  %s4 = inlined_call_operand.hbm [shape: f32[1,128], index: 4, kind: input, shape index: {}]
  %s5 = inlined_call_operand.hbm [shape: f32[128,128], index: 5, kind: input, shape index: {}]
  %s6 = inlined_call_operand.hbm [shape: f32[1,128], index: 6, kind: input, shape index: {}]
  %s7 = inlined_call_operand.hbm [shape: f32[16,128], index: 7, kind: output, shape index: {}]
  %s8 = sld [smem:[#allocation0]]
  $region97: #{tpu_custom_call.1} parent=0
    _
  %s10 = ssub.s32 1, %s8
  %s11 = scalar_select 0, %s10, %s8
  $region1: #{tpu_custom_call.1} parent=0
    #allocation3 [shape = 'u8[221184]{0}', space=vmem, size = 0x36000, scoped, tag = 'input window, operand 0']
    #allocation4 [shape = 's32[2]{0}', space=sflag, size = 0x8, scoped, tag = 'scoped memory for tpu_custom_call.1']
    #allocation5 [shape = 's32[2]{0}', space=sflag, size = 0x8, scoped, tag = 'scoped memory for tpu_custom_call.1']
    #allocation6 [shape = 'u8[7077888]{0}', space=vmem, size = 0x6c0000, scoped, tag = 'input window, operand 1']
    #allocation7 [shape = 's32[2]{0}', space=sflag, size = 0x8, scoped, tag = 'scoped memory for tpu_custom_call.1']
    #allocation8 [shape = 'u8[2048]{0}', space=vmem, size = 0x800, scoped, tag = 'input window, operand 2, single buffered']
    #allocation9 [shape = 'u8[262144]{0}', space=vmem, size = 0x40000, scoped, tag = 'input window, operand 3, single buffered']
    #allocation10 [shape = 's32[1]{0}', space=sflag, size = 0x4, scoped, tag = 'scoped memory for tpu_custom_call.1']
    #allocation11 [shape = 'u8[512]{0}', space=vmem, size = 0x400, scoped, tag = 'input window, operand 4, single buffered']
    #allocation12 [shape = 'u8[65536]{0}', space=vmem, size = 0x10000, scoped, tag = 'input window, operand 5, single buffered']
    #allocation13 [shape = 's32[1]{0}', space=sflag, size = 0x4, scoped, tag = 'scoped memory for tpu_custom_call.1']
    #allocation14 [shape = 'u8[512]{0}', space=vmem, size = 0x400, scoped, tag = 'input window, operand 6, single buffered']
    #allocation15 [shape = 'u8[8192]{0}', space=vmem, size = 0x2000, scoped, tag = 'output window, operand 0, single buffered']
    %12 = vsyncpa [#allocation4], 0
    %s13 = scalar_lea.sflag [#allocation4], 1
    %14 = vsyncpa %s13, 0
    %15 = vsyncpa [#allocation7], 0
    %s16 = scalar_lea.sflag [#allocation7], 1
    %17 = vsyncpa %s16, 0
    %18 = vsyncpa [#allocation10], 0
    %19 = vsyncpa [#allocation13], 0
    %20 = vsyncpa [#allocation5], 0
    loop: start=0, step=1, limit=4
    $region2: #{tpu_custom_call.1} parent=1 // loop_pre_header
      _
    $region3: #{tpu_custom_call.1} parent=1 // loop_header
      %s22 = sphi 0, %s26
      %p23 = scmp.ge.s32.totalorder %s22, 4
      %s29 = sphi 0, %s41
      %s30 = sphi 0, %s37
      %s31 = sphi 0, %s29
      %s32 = sphi 0, %s30
      %s33 = sphi 0, %s31
      %s34 = sphi 0, %s32
      %s46 = sphi 0, %s48
      %s49 = sphi 0, %s46
      %s50 = sphi 0, %s49
      %s66 = sphi 0, %s50
      %s72 = sphi 0, %s74
      %s75 = sphi 0, %s72
      %s76 = sphi 0, %s75
      %s92 = sphi 0, %s76
      %s96 = sphi 0, %s96
      %s98 = sphi 0, %s96
      %s99 = sphi 0, %s98
      %s113 = sphi 0, %s99
      %s117 = sphi 0, %s117
      %s119 = sphi 0, %s117
      %s120 = sphi 0, %s119
      %s134 = sphi 0, %s120
      %s138 = sphi 0, %s138
      %s140 = sphi 0, %s138
      %s141 = sphi 0, %s140
      %s155 = sphi 0, %s141
      %s159 = sphi 0, %s159
      %s161 = sphi 0, %s159
      %s162 = sphi 0, %s161
      %s176 = sphi 0, %s162
      %s180 = sphi 0, %s180
      %s182 = sphi 0, %s180
      %s183 = sphi 0, %s182
      %s197 = sphi 0, %s183
      %s203 = sphi 0, %s205
      %s206 = sphi 0, %s203
      %s207 = sphi 0, %s206
      %s223 = sphi 0, %s207
    $region4: #{tpu_custom_call.1} parent=1 // loop_header_branch
      %25 = sbr.rel (%p23) target = $region8
    $region5: #{tpu_custom_call.1} parent=1 // loop_body
      %s27 = ssub.s32 %s22, 1
      %s28 = ssub.s32 %s22, 2
      %s35 = sadd.s32 1, %s30
      %p36 = scmp.ge.s32.totalorder %s35, 2
      %s37 = scalar_select %p36, 0, %s35
      %s38 = sadd.s32 1, %s29
      %s39 = scalar_select %p36, %s38, %s29
      %p40 = scmp.ge.s32.totalorder %s39, 1
      %s41 = scalar_select %p40, 0, %s39
      %s42 = ssub.s32 %s29, %s41
      %s43 = ssub.s32 %s30, %s37
      %s44 = sor.u32 %s42, %s43
      %p45 = scmp.eq.s32.totalorder %s44, 0
      %s47 = sadd.s32 %s46, 1
      %s48 = scalar_select %p45, %s46, %s47
      %p51 = pneg %p45
      %p52 = scmp.eq.s32.totalorder %s22, 1
      %p53 = por %p51, %p52
      %p54 = scmp.ne.s32.totalorder %s46, %s49
      %p55 = scmp.eq.s32.totalorder %s22, 0
      %p56 = por %p54, %p55
      %p57 = scmp.ne.s32.totalorder %s46, %s49
      %p58 = scmp.eq.s32.totalorder %s27, 1
      %p59 = por %p57, %p58
      %p60 = scmp.ne.s32.totalorder %s49, %s50
      %p61 = scmp.eq.s32.totalorder %s27, 0
      %p62 = por %p60, %p61
      %p63 = scmp.ne.s32.totalorder %s49, %s50
      %p64 = scmp.eq.s32.totalorder %s28, 1
      %p65 = por %p63, %p64
      %p67 = scmp.ne.s32.totalorder %s50, %s66
      %p68 = scmp.eq.s32.totalorder %s28, 0
      %p69 = por %p67, %p68
      %s70 = ssub.s32 %s30, %s37
      %p71 = scmp.eq.s32.totalorder %s70, 0
      %s73 = sadd.s32 %s72, 1
      %s74 = scalar_select %p71, %s72, %s73
      %p77 = pneg %p71
      %p78 = scmp.eq.s32.totalorder %s22, 1
      %p79 = por %p77, %p78
      %p80 = scmp.ne.s32.totalorder %s72, %s75
      %p81 = scmp.eq.s32.totalorder %s22, 0
      %p82 = por %p80, %p81
      %p83 = scmp.ne.s32.totalorder %s72, %s75
      %p84 = scmp.eq.s32.totalorder %s27, 1
      %p85 = por %p83, %p84
      %p86 = scmp.ne.s32.totalorder %s75, %s76
      %p87 = scmp.eq.s32.totalorder %s27, 0
      %p88 = por %p86, %p87
      %p89 = scmp.ne.s32.totalorder %s75, %s76
      %p90 = scmp.eq.s32.totalorder %s28, 1
      %p91 = por %p89, %p90
      %p93 = scmp.ne.s32.totalorder %s76, %s92
      %p94 = scmp.eq.s32.totalorder %s28, 0
      %p95 = por %p93, %p94
      %s97 = sadd.s32 %s96, 1
      %p100 = scmp.eq.s32.totalorder %s22, 1
      %p101 = scmp.ne.s32.totalorder %s96, %s98
      %p102 = scmp.eq.s32.totalorder %s22, 0
      %p103 = por %p101, %p102
      %p104 = scmp.ne.s32.totalorder %s96, %s98
      %p105 = scmp.eq.s32.totalorder %s27, 1
      %p106 = por %p104, %p105
      %p107 = scmp.ne.s32.totalorder %s98, %s99
      %p108 = scmp.eq.s32.totalorder %s27, 0
      %p109 = por %p107, %p108
      %p110 = scmp.ne.s32.totalorder %s98, %s99
      %p111 = scmp.eq.s32.totalorder %s28, 1
      %p112 = por %p110, %p111
      %p114 = scmp.ne.s32.totalorder %s99, %s113
      %p115 = scmp.eq.s32.totalorder %s28, 0
      %p116 = por %p114, %p115
      %s118 = sadd.s32 %s117, 1
      %p121 = scmp.eq.s32.totalorder %s22, 1
      %p122 = scmp.ne.s32.totalorder %s117, %s119
      %p123 = scmp.eq.s32.totalorder %s22, 0
      %p124 = por %p122, %p123
      %p125 = scmp.ne.s32.totalorder %s117, %s119
      %p126 = scmp.eq.s32.totalorder %s27, 1
      %p127 = por %p125, %p126
      %p128 = scmp.ne.s32.totalorder %s119, %s120
      %p129 = scmp.eq.s32.totalorder %s27, 0
      %p130 = por %p128, %p129
      %p131 = scmp.ne.s32.totalorder %s119, %s120
      %p132 = scmp.eq.s32.totalorder %s28, 1
      %p133 = por %p131, %p132
      %p135 = scmp.ne.s32.totalorder %s120, %s134
      %p136 = scmp.eq.s32.totalorder %s28, 0
      %p137 = por %p135, %p136
      %s139 = sadd.s32 %s138, 1
      %p142 = scmp.eq.s32.totalorder %s22, 1
      %p143 = scmp.ne.s32.totalorder %s138, %s140
      %p144 = scmp.eq.s32.totalorder %s22, 0
      %p145 = por %p143, %p144
      %p146 = scmp.ne.s32.totalorder %s138, %s140
      %p147 = scmp.eq.s32.totalorder %s27, 1
      %p148 = por %p146, %p147
      %p149 = scmp.ne.s32.totalorder %s140, %s141
      %p150 = scmp.eq.s32.totalorder %s27, 0
      %p151 = por %p149, %p150
      %p152 = scmp.ne.s32.totalorder %s140, %s141
      %p153 = scmp.eq.s32.totalorder %s28, 1
      %p154 = por %p152, %p153
      %p156 = scmp.ne.s32.totalorder %s141, %s155
      %p157 = scmp.eq.s32.totalorder %s28, 0
      %p158 = por %p156, %p157
      %s160 = sadd.s32 %s159, 1
      %p163 = scmp.eq.s32.totalorder %s22, 1
      %p164 = scmp.ne.s32.totalorder %s159, %s161
      %p165 = scmp.eq.s32.totalorder %s22, 0
      %p166 = por %p164, %p165
      %p167 = scmp.ne.s32.totalorder %s159, %s161
      %p168 = scmp.eq.s32.totalorder %s27, 1
      %p169 = por %p167, %p168
      %p170 = scmp.ne.s32.totalorder %s161, %s162
      %p171 = scmp.eq.s32.totalorder %s27, 0
      %p172 = por %p170, %p171
      %p173 = scmp.ne.s32.totalorder %s161, %s162
      %p174 = scmp.eq.s32.totalorder %s28, 1
      %p175 = por %p173, %p174
      %p177 = scmp.ne.s32.totalorder %s162, %s176
      %p178 = scmp.eq.s32.totalorder %s28, 0
      %p179 = por %p177, %p178
      %s181 = sadd.s32 %s180, 1
      %p184 = scmp.eq.s32.totalorder %s22, 1
      %p185 = scmp.ne.s32.totalorder %s180, %s182
      %p186 = scmp.eq.s32.totalorder %s22, 0
      %p187 = por %p185, %p186
      %p188 = scmp.ne.s32.totalorder %s180, %s182
      %p189 = scmp.eq.s32.totalorder %s27, 1
      %p190 = por %p188, %p189
      %p191 = scmp.ne.s32.totalorder %s182, %s183
      %p192 = scmp.eq.s32.totalorder %s27, 0
      %p193 = por %p191, %p192
      %p194 = scmp.ne.s32.totalorder %s182, %s183
      %p195 = scmp.eq.s32.totalorder %s28, 1
      %p196 = por %p194, %p195
      %p198 = scmp.ne.s32.totalorder %s183, %s197
      %p199 = scmp.eq.s32.totalorder %s28, 0
      %p200 = por %p198, %p199
      %s201 = ssub.s32 %s29, %s41
      %p202 = scmp.eq.s32.totalorder %s201, 0
      %s204 = sadd.s32 %s203, 1
      %s205 = scalar_select %p202, %s203, %s204
      %p208 = pneg %p202
      %p209 = scmp.eq.s32.totalorder %s22, 1
      %p210 = por %p208, %p209
      %p211 = scmp.ne.s32.totalorder %s203, %s206
      %p212 = scmp.eq.s32.totalorder %s22, 0
      %p213 = por %p211, %p212
      %p214 = scmp.ne.s32.totalorder %s203, %s206
      %p215 = scmp.eq.s32.totalorder %s27, 1
      %p216 = por %p214, %p215
      %p217 = scmp.ne.s32.totalorder %s206, %s207
      %p218 = scmp.eq.s32.totalorder %s27, 0
      %p219 = por %p217, %p218
      %p220 = scmp.ne.s32.totalorder %s206, %s207
      %p221 = scmp.eq.s32.totalorder %s28, 1
      %p222 = por %p220, %p221
      %p224 = scmp.ne.s32.totalorder %s207, %s223
      %p225 = scmp.eq.s32.totalorder %s28, 0
      %p226 = por %p224, %p225
      %p227 = scmp.le.s32.totalorder 1, %s22
      %p228 = scmp.lt.s32.totalorder %s22, 3
      %p229 = pnand %p227, %p228
      %p230 = pneg %p229
      // Predicated region
      $region9: #{tpu_custom_call.1} parent=5 // pred_check
        _
      $region10: #{tpu_custom_call.1} parent=5 // pred_check_branch
        %232 = sbr.rel (%p229) target = $region12
      $region11: #{tpu_custom_call.1} parent=5 // pred_region
        %s233 = ssub.s32 %s22, 1
        // Predicated region
        $region13: #{tpu_custom_call.1} parent=11 // pred_check
          %p234 = pneg %p109
        $region14: #{tpu_custom_call.1} parent=11 // pred_check_branch
          %236 = sbr.rel (%p234) target = $region16
        $region15: #{tpu_custom_call.1} parent=11 // pred_region
          %s238 = ssub.s32 64, 64
          %239 = vsyncadd [#allocation7], %s238
          %s241 = sshll.u32 [#allocation8], 4
          %s242 = int_to_ptr.vmem [resolvable:$true] %s241
          %244 = dma.hbm_to_vmem [thread:$0]  %s2, 64, %s242, [#allocation7]
        $region16: #{tpu_custom_call.1} parent=11 // pred_fallthru
          _
        // Predicated region
        $region17: #{tpu_custom_call.1} parent=11 // pred_check
          %p245 = pneg %p130
        $region18: #{tpu_custom_call.1} parent=11 // pred_check_branch
          %247 = sbr.rel (%p245) target = $region20
        $region19: #{tpu_custom_call.1} parent=11 // pred_region
          %s249 = ssub.s32 8192, 8192
          %250 = vsyncadd [#allocation10], %s249
          %s251 = sshll.u32 [#allocation9], 4
          %s252 = int_to_ptr.vmem [resolvable:$true] %s251
          %257 = dma.hbm_to_vmem [thread:$0]  %s3, 8192, %s252, [#allocation10], 128, 128, 8
        $region20: #{tpu_custom_call.1} parent=11 // pred_fallthru
          _
        // Predicated region
        $region21: #{tpu_custom_call.1} parent=11 // pred_check
          %p258 = pneg %p151
        $region22: #{tpu_custom_call.1} parent=11 // pred_check_branch
          %260 = sbr.rel (%p258) target = $region24
        $region23: #{tpu_custom_call.1} parent=11 // pred_region
          %s262 = ssub.s32 16, 16
          %263 = vsyncadd [#allocation10], %s262
          %s265 = sshll.u32 [#allocation11], 4
          %s266 = int_to_ptr.vmem [resolvable:$true] %s265
          %268 = dma.hbm_to_vmem [thread:$0]  %s4, 16, %s266, [#allocation10]
        $region24: #{tpu_custom_call.1} parent=11 // pred_fallthru
          _
        // Predicated region
        $region25: #{tpu_custom_call.1} parent=11 // pred_check
          %p269 = pneg %p172
        $region26: #{tpu_custom_call.1} parent=11 // pred_check_branch
          %271 = sbr.rel (%p269) target = $region28
        $region27: #{tpu_custom_call.1} parent=11 // pred_region
          %s273 = ssub.s32 2048, 2048
          %274 = vsyncadd [#allocation13], %s273
          %s275 = sshll.u32 [#allocation12], 4
          %s276 = int_to_ptr.vmem [resolvable:$true] %s275
          %281 = dma.hbm_to_vmem [thread:$0]  %s5, 2048, %s276, [#allocation13], 128, 128, 8
        $region28: #{tpu_custom_call.1} parent=11 // pred_fallthru
          _
        // Predicated region
        $region29: #{tpu_custom_call.1} parent=11 // pred_check
          %p282 = pneg %p193
        $region30: #{tpu_custom_call.1} parent=11 // pred_check_branch
          %284 = sbr.rel (%p282) target = $region32
        $region31: #{tpu_custom_call.1} parent=11 // pred_region
          %s286 = ssub.s32 16, 16
          %287 = vsyncadd [#allocation13], %s286
          %s289 = sshll.u32 [#allocation14], 4
          %s290 = int_to_ptr.vmem [resolvable:$true] %s289
          %292 = dma.hbm_to_vmem [thread:$0]  %s6, 16, %s290, [#allocation13]
        $region32: #{tpu_custom_call.1} parent=11 // pred_fallthru
          _
      $region12: #{tpu_custom_call.1} parent=5 // pred_fallthru
        _
      %p293 = scmp.lt.s32.totalorder %s22, 2
      // Predicated region
      $region33: #{tpu_custom_call.1} parent=5 // pred_check
        %p294 = pneg %p293
      $region34: #{tpu_custom_call.1} parent=5 // pred_check_branch
        %296 = sbr.rel (%p294) target = $region36
      $region35: #{tpu_custom_call.1} parent=5 // pred_region
        // Predicated region
        $region37: #{tpu_custom_call.1} parent=35 // pred_check
          %p297 = pneg %p56
        $region38: #{tpu_custom_call.1} parent=35 // pred_check_branch
          %299 = sbr.rel (%p297) target = $region40
        $region39: #{tpu_custom_call.1} parent=35 // pred_region
          %s300 = sand.u32 %s46, 1
          %s301 = scalar_lea.sflag [#allocation4], %s300
          %s302 = sand.u32 %s46, 1
          %s303 = smul.addr %s302, 216
          %s304 = scalar_lea.vmem [#allocation3], %s303
          %s305 = smul.u32 2, %s29
          %s306 = smul.u32 27, %s30
          %s308 = ssub.s32 3456, 3456
          %309 = vsyncadd %s301, %s308
          %s310 = smul.addr %s305, 54
          %s311 = sadd.s32 %s306, %s310
          %s312 = smul.addr %s311, 64
          %s313 = scalar_lea.hbm %s0, %s312
          %s314 = sshll.u32 %s304, 4
          %s315 = int_to_ptr.vmem [resolvable:$true] %s314
          %320 = dma.hbm_to_vmem [thread:$0]  %s313, 3456, %s315, %s301, 3456, 1728, 108
        $region40: #{tpu_custom_call.1} parent=35 // pred_fallthru
          _
        // Predicated region
        $region41: #{tpu_custom_call.1} parent=35 // pred_check
          %p321 = pneg %p82
        $region42: #{tpu_custom_call.1} parent=35 // pred_check_branch
          %323 = sbr.rel (%p321) target = $region44
        $region43: #{tpu_custom_call.1} parent=35 // pred_region
          %s324 = sand.u32 %s22, 1
          %s325 = scalar_lea.sflag [#allocation7], %s324
          %s326 = sand.u32 %s72, 1
          %s327 = smul.addr %s326, 6912
          %s328 = scalar_lea.vmem [#allocation6], %s327
          %s329 = smul.u32 432, %s30
          %s331 = ssub.s32 110592, 110592
          %332 = vsyncadd %s325, %s331
          %s333 = smul.addr %s329, 4
          %s334 = smul.addr %s333, 64
          %s335 = scalar_lea.hbm %s1, %s334
          %s336 = sshll.u32 %s328, 4
          %s337 = int_to_ptr.vmem [resolvable:$true] %s336
          %342 = dma.hbm_to_vmem [thread:$0]  %s335, 110592, %s337, %s325, 256, 256, 16
        $region44: #{tpu_custom_call.1} parent=35 // pred_fallthru
          _
      $region36: #{tpu_custom_call.1} parent=5 // pred_fallthru
        _
      %p343 = scmp.le.s32.totalorder 1, %s22
      %p344 = scmp.lt.s32.totalorder %s22, 3
      %p345 = pnand %p343, %p344
      %p346 = pneg %p345
      // Predicated region
      $region45: #{tpu_custom_call.1} parent=5 // pred_check
        _
      $region46: #{tpu_custom_call.1} parent=5 // pred_check_branch
        %348 = sbr.rel (%p345) target = $region48
      $region47: #{tpu_custom_call.1} parent=5 // pred_region
        %s349 = ssub.s32 %s22, 1
        %s350 = sand.u32 %s49, 1
        %s351 = scalar_lea.sflag [#allocation4], %s350
        %s352 = sand.u32 %s49, 1
        %s353 = smul.addr %s352, 216
        %s354 = scalar_lea.vmem [#allocation3], %s353
        // Predicated region
        $region49: #{tpu_custom_call.1} parent=47 // pred_check
          %p355 = pneg %p62
        $region50: #{tpu_custom_call.1} parent=47 // pred_check_branch
          %357 = sbr.rel (%p355) target = $region52
        $region51: #{tpu_custom_call.1} parent=47 // pred_region
          %358 = dma.done %s351, 3456
        $region52: #{tpu_custom_call.1} parent=47 // pred_fallthru
          _
        %s359 = sand.u32 %s27, 1
        %s360 = scalar_lea.sflag [#allocation7], %s359
        %s361 = sand.u32 %s75, 1
        %s362 = smul.addr %s361, 6912
        %s363 = scalar_lea.vmem [#allocation6], %s362
        // Predicated region
        $region53: #{tpu_custom_call.1} parent=47 // pred_check
          %p364 = pneg %p88
        $region54: #{tpu_custom_call.1} parent=47 // pred_check_branch
          %366 = sbr.rel (%p364) target = $region56
        $region55: #{tpu_custom_call.1} parent=47 // pred_region
          %367 = dma.done %s360, 110592
        $region56: #{tpu_custom_call.1} parent=47 // pred_fallthru
          _
        // Predicated region
        $region57: #{tpu_custom_call.1} parent=47 // pred_check
          %p368 = pneg %p109
        $region58: #{tpu_custom_call.1} parent=47 // pred_check_branch
          %370 = sbr.rel (%p368) target = $region60
        $region59: #{tpu_custom_call.1} parent=47 // pred_region
          %371 = dma.done [#allocation7], 64
        $region60: #{tpu_custom_call.1} parent=47 // pred_fallthru
          _
        // Predicated region
        $region61: #{tpu_custom_call.1} parent=47 // pred_check
          %p372 = pneg %p130
        $region62: #{tpu_custom_call.1} parent=47 // pred_check_branch
          %374 = sbr.rel (%p372) target = $region64
        $region63: #{tpu_custom_call.1} parent=47 // pred_region
          %375 = dma.done [#allocation10], 8192
        $region64: #{tpu_custom_call.1} parent=47 // pred_fallthru
          _
        // Predicated region
        $region65: #{tpu_custom_call.1} parent=47 // pred_check
          %p376 = pneg %p151
        $region66: #{tpu_custom_call.1} parent=47 // pred_check_branch
          %378 = sbr.rel (%p376) target = $region68
        $region67: #{tpu_custom_call.1} parent=47 // pred_region
          %379 = dma.done [#allocation10], 16
        $region68: #{tpu_custom_call.1} parent=47 // pred_fallthru
          _
        // Predicated region
        $region69: #{tpu_custom_call.1} parent=47 // pred_check
          %p380 = pneg %p172
        $region70: #{tpu_custom_call.1} parent=47 // pred_check_branch
          %382 = sbr.rel (%p380) target = $region72
        $region71: #{tpu_custom_call.1} parent=47 // pred_region
          %383 = dma.done [#allocation13], 2048
        $region72: #{tpu_custom_call.1} parent=47 // pred_fallthru
          _
        // Predicated region
        $region73: #{tpu_custom_call.1} parent=47 // pred_check
          %p384 = pneg %p193
        $region74: #{tpu_custom_call.1} parent=47 // pred_check_branch
          %386 = sbr.rel (%p384) target = $region76
        $region75: #{tpu_custom_call.1} parent=47 // pred_region
          %387 = dma.done [#allocation13], 16
        $region76: #{tpu_custom_call.1} parent=47 // pred_fallthru
          _
        %s388 = sand.u32 %s49, 1
        %s389 = scalar_lea.sflag [#allocation4], %s388
        %s390 = sand.u32 %s49, 1
        %s391 = smul.addr %s390, 216
        %s392 = scalar_lea.vmem [#allocation3], %s391
        %p393 = pneg %p62
        %p394 = pneg %p59
        %s395 = sand.u32 %s27, 1
        %s396 = scalar_lea.sflag [#allocation7], %s395
        %s397 = sand.u32 %s75, 1
        %s398 = smul.addr %s397, 6912
        %s399 = scalar_lea.vmem [#allocation6], %s398
        %p400 = pneg %p88
        %p401 = pneg %p85
        %p402 = pneg %p109
        %p403 = pneg %p106
        %p404 = pneg %p130
        %p405 = pneg %p127
        %p406 = pneg %p151
        %p407 = pneg %p148
        %p408 = pneg %p172
        %p409 = pneg %p169
        %p410 = pneg %p193
        %p411 = pneg %p190
        %p412 = pneg %p219
        %p413 = pneg %p216
        %s414 = smul.u32 2, %s31
        %s415 = smul.u32 27, %s32
        %s416 = smul.u32 432, %s32
        %s417 = smul.u32 2, %s31
        %p419 = scmp.eq.s32.totalorder %s32, 0
        // Predicated region
        $region77: #{tpu_custom_call.1} parent=47 // pred_check
          %p420 = pneg %p419
        $region78: #{tpu_custom_call.1} parent=47 // pred_check_branch
          %422 = sbr.rel (%p420) target = $region80
        $region79: #{tpu_custom_call.1} parent=47 // pred_region
          %423 = vst [vmem:[#allocation2] sm:$0xff] 0.0
          %424 = vst [vmem:[#allocation2 + $0x8] sm:$0xff] 0.0
          %425 = vst [vmem:[#allocation2 + $0x10] sm:$0xff] 0.0
          %426 = vst [vmem:[#allocation2 + $0x18] sm:$0xff] 0.0
          %427 = vst [vmem:[#allocation2 + $0x20] sm:$0xff] 0.0
          %428 = vst [vmem:[#allocation2 + $0x28] sm:$0xff] 0.0
          %429 = vst [vmem:[#allocation2 + $0x30] sm:$0xff] 0.0
          %430 = vst [vmem:[#allocation2 + $0x38] sm:$0xff] 0.0
        $region80: #{tpu_custom_call.1} parent=47 // pred_fallthru
          _
        %v431 = vld [vmem:[#allocation2] sm:$0xff]
        %v432 = vld [vmem:[#allocation2 + $0x8] sm:$0xff]
        %v433 = vld [vmem:[#allocation2 + $0x10] sm:$0xff]
        %v434 = vld [vmem:[#allocation2 + $0x18] sm:$0xff]
        %v435 = vld [vmem:[#allocation2 + $0x20] sm:$0xff]
        %v436 = vld [vmem:[#allocation2 + $0x28] sm:$0xff]
        %v437 = vld [vmem:[#allocation2 + $0x30] sm:$0xff]
        %v438 = vld [vmem:[#allocation2 + $0x38] sm:$0xff]
        %v439 = vld [vmem:[%s354] sm:$0xff]
        %v440 = vld [vmem:[%s354 + $0x8] sm:$0xff]
        %v441 = vld [vmem:[%s354 + $0x10] sm:$0xff]
        %v442 = vld [vmem:[%s354 + $0x18] sm:$0xff]
        %v443 = vld [vmem:[%s354 + $0x20] sm:$0xff]
        %v444 = vld [vmem:[%s354 + $0x28] sm:$0xff]
        %v445 = vld [vmem:[%s354 + $0x30] sm:$0xff]
        %v446 = vld [vmem:[%s354 + $0x38] sm:$0xff]
        %v447 = vld [vmem:[%s354 + $0x40] sm:$0xff]
        %v448 = vld [vmem:[%s354 + $0x48] sm:$0xff]
        %v449 = vld [vmem:[%s354 + $0x50] sm:$0xff]
        %v450 = vld [vmem:[%s354 + $0x58] sm:$0xff]
        %v451 = vld [vmem:[%s354 + $0x60] sm:$0xff]
        %v452 = vld [vmem:[%s354 + $0x68] sm:$0xf]
        %v453 = vld [vmem:[%s354 + $0x6c] sm:$0xff]
        %v454 = vld [vmem:[%s354 + $0x74] sm:$0xff]
        %v455 = vld [vmem:[%s354 + $0x7c] sm:$0xff]
        %v456 = vld [vmem:[%s354 + $0x84] sm:$0xff]
        %v457 = vld [vmem:[%s354 + $0x8c] sm:$0xff]
        %v458 = vld [vmem:[%s354 + $0x94] sm:$0xff]
        %v459 = vld [vmem:[%s354 + $0x9c] sm:$0xff]
        %v460 = vld [vmem:[%s354 + $0xa4] sm:$0xff]
        %v461 = vld [vmem:[%s354 + $0xac] sm:$0xff]
        %v462 = vld [vmem:[%s354 + $0xb4] sm:$0xff]
        %v463 = vld [vmem:[%s354 + $0xbc] sm:$0xff]
        %v464 = vld [vmem:[%s354 + $0xc4] sm:$0xff]
        %v465 = vld [vmem:[%s354 + $0xcc] sm:$0xff]
        %v466 = vld [vmem:[%s354 + $0xd4] sm:$0xf]
        %v467 = vld [vmem:[%s363] sm:$0xff]
        %v468 = vld [vmem:[%s363 + $0x8] sm:$0xff]
        %v469 = vld [vmem:[%s363 + $0x10] sm:$0xff]
        %v470 = vld [vmem:[%s363 + $0x18] sm:$0xff]
        %v471 = vld [vmem:[%s363 + $0x20] sm:$0xff]
        %v472 = vld [vmem:[%s363 + $0x28] sm:$0xff]
        %v473 = vld [vmem:[%s363 + $0x30] sm:$0xff]
        %v474 = vld [vmem:[%s363 + $0x38] sm:$0xff]
        %v475 = vld [vmem:[%s363 + $0x40] sm:$0xff]
        %v476 = vld [vmem:[%s363 + $0x48] sm:$0xff]
        %v477 = vld [vmem:[%s363 + $0x50] sm:$0xff]
        %v478 = vld [vmem:[%s363 + $0x58] sm:$0xff]
        %v479 = vld [vmem:[%s363 + $0x60] sm:$0xff]
        %v480 = vld [vmem:[%s363 + $0x68] sm:$0xff]
        %v481 = vld [vmem:[%s363 + $0x70] sm:$0xff]
        %v482 = vld [vmem:[%s363 + $0x78] sm:$0xff]
        %v483 = vld [vmem:[%s363 + $0x80] sm:$0xff]
        %v484 = vld [vmem:[%s363 + $0x88] sm:$0xff]
        %v485 = vld [vmem:[%s363 + $0x90] sm:$0xff]
        %v486 = vld [vmem:[%s363 + $0x98] sm:$0xff]
        %v487 = vld [vmem:[%s363 + $0xa0] sm:$0xff]
        %v488 = vld [vmem:[%s363 + $0xa8] sm:$0xff]
        %v489 = vld [vmem:[%s363 + $0xb0] sm:$0xff]
        %v490 = vld [vmem:[%s363 + $0xb8] sm:$0xff]
        %v491 = vld [vmem:[%s363 + $0xc0] sm:$0xff]
        %v492 = vld [vmem:[%s363 + $0xc8] sm:$0xff]
        %v493 = vld [vmem:[%s363 + $0xd0] sm:$0xff]
        %v494 = vld [vmem:[%s363 + $0xd8] sm:$0xff]
        %v495 = vld [vmem:[%s363 + $0xe0] sm:$0xff]
        %v496 = vld [vmem:[%s363 + $0xe8] sm:$0xff]
        %v497 = vld [vmem:[%s363 + $0xf0] sm:$0xff]
        %v498 = vld [vmem:[%s363 + $0xf8] sm:$0xff]
        %v499 = vld [vmem:[%s363 + $0x100] sm:$0xff]
        %v500 = vld [vmem:[%s363 + $0x108] sm:$0xff]
        %v501 = vld [vmem:[%s363 + $0x110] sm:$0xff]
        %v502 = vld [vmem:[%s363 + $0x118] sm:$0xff]
        %v503 = vld [vmem:[%s363 + $0x120] sm:$0xff]
        %v504 = vld [vmem:[%s363 + $0x128] sm:$0xff]
        %v505 = vld [vmem:[%s363 + $0x130] sm:$0xff]
        %v506 = vld [vmem:[%s363 + $0x138] sm:$0xff]
        %v507 = vld [vmem:[%s363 + $0x140] sm:$0xff]
        %v508 = vld [vmem:[%s363 + $0x148] sm:$0xff]
        %v509 = vld [vmem:[%s363 + $0x150] sm:$0xff]
        %v510 = vld [vmem:[%s363 + $0x158] sm:$0xff]
        %v511 = vld [vmem:[%s363 + $0x160] sm:$0xff]
        %v512 = vld [vmem:[%s363 + $0x168] sm:$0xff]
        %v513 = vld [vmem:[%s363 + $0x170] sm:$0xff]
        %v514 = vld [vmem:[%s363 + $0x178] sm:$0xff]
        %v515 = vld [vmem:[%s363 + $0x180] sm:$0xff]
        %v516 = vld [vmem:[%s363 + $0x188] sm:$0xff]
        %v517 = vld [vmem:[%s363 + $0x190] sm:$0xff]
        %v518 = vld [vmem:[%s363 + $0x198] sm:$0xff]
        %v519 = vld [vmem:[%s363 + $0x1a0] sm:$0xff]
        %v520 = vld [vmem:[%s363 + $0x1a8] sm:$0xff]
        %v521 = vld [vmem:[%s363 + $0x1b0] sm:$0xff]
        %v522 = vld [vmem:[%s363 + $0x1b8] sm:$0xff]
        %v523 = vld [vmem:[%s363 + $0x1c0] sm:$0xff]
        %v524 = vld [vmem:[%s363 + $0x1c8] sm:$0xff]
        %v525 = vld [vmem:[%s363 + $0x1d0] sm:$0xff]
        %v526 = vld [vmem:[%s363 + $0x1d8] sm:$0xff]
        %v527 = vld [vmem:[%s363 + $0x1e0] sm:$0xff]
        %v528 = vld [vmem:[%s363 + $0x1e8] sm:$0xff]
        %v529 = vld [vmem:[%s363 + $0x1f0] sm:$0xff]
        %v530 = vld [vmem:[%s363 + $0x1f8] sm:$0xff]
        %v531 = vld [vmem:[%s363 + $0x200] sm:$0xff]
        %v532 = vld [vmem:[%s363 + $0x208] sm:$0xff]
        %v533 = vld [vmem:[%s363 + $0x210] sm:$0xff]
        %v534 = vld [vmem:[%s363 + $0x218] sm:$0xff]
        %v535 = vld [vmem:[%s363 + $0x220] sm:$0xff]
        %v536 = vld [vmem:[%s363 + $0x228] sm:$0xff]
        %v537 = vld [vmem:[%s363 + $0x230] sm:$0xff]
        %v538 = vld [vmem:[%s363 + $0x238] sm:$0xff]
        %v539 = vld [vmem:[%s363 + $0x240] sm:$0xff]
        %v540 = vld [vmem:[%s363 + $0x248] sm:$0xff]
        %v541 = vld [vmem:[%s363 + $0x250] sm:$0xff]
        %v542 = vld [vmem:[%s363 + $0x258] sm:$0xff]
        %v543 = vld [vmem:[%s363 + $0x260] sm:$0xff]
        %v544 = vld [vmem:[%s363 + $0x268] sm:$0xff]
        %v545 = vld [vmem:[%s363 + $0x270] sm:$0xff]
        %v546 = vld [vmem:[%s363 + $0x278] sm:$0xff]
        %v547 = vld [vmem:[%s363 + $0x280] sm:$0xff]
        %v548 = vld [vmem:[%s363 + $0x288] sm:$0xff]
        %v549 = vld [vmem:[%s363 + $0x290] sm:$0xff]
        %v550 = vld [vmem:[%s363 + $0x298] sm:$0xff]
        %v551 = vld [vmem:[%s363 + $0x2a0] sm:$0xff]
        %v552 = vld [vmem:[%s363 + $0x2a8] sm:$0xff]
        %v553 = vld [vmem:[%s363 + $0x2b0] sm:$0xff]
        %v554 = vld [vmem:[%s363 + $0x2b8] sm:$0xff]
        %v555 = vld [vmem:[%s363 + $0x2c0] sm:$0xff]
        %v556 = vld [vmem:[%s363 + $0x2c8] sm:$0xff]
        %v557 = vld [vmem:[%s363 + $0x2d0] sm:$0xff]
        %v558 = vld [vmem:[%s363 + $0x2d8] sm:$0xff]
        %v559 = vld [vmem:[%s363 + $0x2e0] sm:$0xff]
        %v560 = vld [vmem:[%s363 + $0x2e8] sm:$0xff]
        %v561 = vld [vmem:[%s363 + $0x2f0] sm:$0xff]
        %v562 = vld [vmem:[%s363 + $0x2f8] sm:$0xff]
        %v563 = vld [vmem:[%s363 + $0x300] sm:$0xff]
        %v564 = vld [vmem:[%s363 + $0x308] sm:$0xff]
        %v565 = vld [vmem:[%s363 + $0x310] sm:$0xff]
        %v566 = vld [vmem:[%s363 + $0x318] sm:$0xff]
        %v567 = vld [vmem:[%s363 + $0x320] sm:$0xff]
        %v568 = vld [vmem:[%s363 + $0x328] sm:$0xff]
        %v569 = vld [vmem:[%s363 + $0x330] sm:$0xff]
        %v570 = vld [vmem:[%s363 + $0x338] sm:$0xff]
        %v571 = vld [vmem:[%s363 + $0x340] sm:$0xff]
        %v572 = vld [vmem:[%s363 + $0x348] sm:$0xff]
        %v573 = vld [vmem:[%s363 + $0x350] sm:$0xff]
        %v574 = vld [vmem:[%s363 + $0x358] sm:$0xff]
        %v575 = vld [vmem:[%s363 + $0x360] sm:$0xff]
        %v576 = vld [vmem:[%s363 + $0x368] sm:$0xff]
        %v577 = vld [vmem:[%s363 + $0x370] sm:$0xff]
        %v578 = vld [vmem:[%s363 + $0x378] sm:$0xff]
        %v579 = vld [vmem:[%s363 + $0x380] sm:$0xff]
        %v580 = vld [vmem:[%s363 + $0x388] sm:$0xff]
        %v581 = vld [vmem:[%s363 + $0x390] sm:$0xff]
        %v582 = vld [vmem:[%s363 + $0x398] sm:$0xff]
        %v583 = vld [vmem:[%s363 + $0x3a0] sm:$0xff]
        %v584 = vld [vmem:[%s363 + $0x3a8] sm:$0xff]
        %v585 = vld [vmem:[%s363 + $0x3b0] sm:$0xff]
        %v586 = vld [vmem:[%s363 + $0x3b8] sm:$0xff]
        %v587 = vld [vmem:[%s363 + $0x3c0] sm:$0xff]
        %v588 = vld [vmem:[%s363 + $0x3c8] sm:$0xff]
        %v589 = vld [vmem:[%s363 + $0x3d0] sm:$0xff]
        %v590 = vld [vmem:[%s363 + $0x3d8] sm:$0xff]
        %v591 = vld [vmem:[%s363 + $0x3e0] sm:$0xff]
        %v592 = vld [vmem:[%s363 + $0x3e8] sm:$0xff]
        %v593 = vld [vmem:[%s363 + $0x3f0] sm:$0xff]
        %v594 = vld [vmem:[%s363 + $0x3f8] sm:$0xff]
        %v595 = vld [vmem:[%s363 + $0x400] sm:$0xff]
        %v596 = vld [vmem:[%s363 + $0x408] sm:$0xff]
        %v597 = vld [vmem:[%s363 + $0x410] sm:$0xff]
        %v598 = vld [vmem:[%s363 + $0x418] sm:$0xff]
        %v599 = vld [vmem:[%s363 + $0x420] sm:$0xff]
        %v600 = vld [vmem:[%s363 + $0x428] sm:$0xff]
        %v601 = vld [vmem:[%s363 + $0x430] sm:$0xff]
        %v602 = vld [vmem:[%s363 + $0x438] sm:$0xff]
        %v603 = vld [vmem:[%s363 + $0x440] sm:$0xff]
        %v604 = vld [vmem:[%s363 + $0x448] sm:$0xff]
        %v605 = vld [vmem:[%s363 + $0x450] sm:$0xff]
        %v606 = vld [vmem:[%s363 + $0x458] sm:$0xff]
        %v607 = vld [vmem:[%s363 + $0x460] sm:$0xff]
        %v608 = vld [vmem:[%s363 + $0x468] sm:$0xff]
        %v609 = vld [vmem:[%s363 + $0x470] sm:$0xff]
        %v610 = vld [vmem:[%s363 + $0x478] sm:$0xff]
        %v611 = vld [vmem:[%s363 + $0x480] sm:$0xff]
        %v612 = vld [vmem:[%s363 + $0x488] sm:$0xff]
        %v613 = vld [vmem:[%s363 + $0x490] sm:$0xff]
        %v614 = vld [vmem:[%s363 + $0x498] sm:$0xff]
        %v615 = vld [vmem:[%s363 + $0x4a0] sm:$0xff]
        %v616 = vld [vmem:[%s363 + $0x4a8] sm:$0xff]
        %v617 = vld [vmem:[%s363 + $0x4b0] sm:$0xff]
        %v618 = vld [vmem:[%s363 + $0x4b8] sm:$0xff]
        %v619 = vld [vmem:[%s363 + $0x4c0] sm:$0xff]
        %v620 = vld [vmem:[%s363 + $0x4c8] sm:$0xff]
        %v621 = vld [vmem:[%s363 + $0x4d0] sm:$0xff]
        %v622 = vld [vmem:[%s363 + $0x4d8] sm:$0xff]
        %v623 = vld [vmem:[%s363 + $0x4e0] sm:$0xff]
        %v624 = vld [vmem:[%s363 + $0x4e8] sm:$0xff]
        %v625 = vld [vmem:[%s363 + $0x4f0] sm:$0xff]
        %v626 = vld [vmem:[%s363 + $0x4f8] sm:$0xff]
        %v627 = vld [vmem:[%s363 + $0x500] sm:$0xff]
        %v628 = vld [vmem:[%s363 + $0x508] sm:$0xff]
        %v629 = vld [vmem:[%s363 + $0x510] sm:$0xff]
        %v630 = vld [vmem:[%s363 + $0x518] sm:$0xff]
        %v631 = vld [vmem:[%s363 + $0x520] sm:$0xff]
        %v632 = vld [vmem:[%s363 + $0x528] sm:$0xff]
        %v633 = vld [vmem:[%s363 + $0x530] sm:$0xff]
        %v634 = vld [vmem:[%s363 + $0x538] sm:$0xff]
        %v635 = vld [vmem:[%s363 + $0x540] sm:$0xff]
        %v636 = vld [vmem:[%s363 + $0x548] sm:$0xff]
        %v637 = vld [vmem:[%s363 + $0x550] sm:$0xff]
        %v638 = vld [vmem:[%s363 + $0x558] sm:$0xff]
        %v639 = vld [vmem:[%s363 + $0x560] sm:$0xff]
        %v640 = vld [vmem:[%s363 + $0x568] sm:$0xff]
        %v641 = vld [vmem:[%s363 + $0x570] sm:$0xff]
        %v642 = vld [vmem:[%s363 + $0x578] sm:$0xff]
        %v643 = vld [vmem:[%s363 + $0x580] sm:$0xff]
        %v644 = vld [vmem:[%s363 + $0x588] sm:$0xff]
        %v645 = vld [vmem:[%s363 + $0x590] sm:$0xff]
        %v646 = vld [vmem:[%s363 + $0x598] sm:$0xff]
        %v647 = vld [vmem:[%s363 + $0x5a0] sm:$0xff]
        %v648 = vld [vmem:[%s363 + $0x5a8] sm:$0xff]
        %v649 = vld [vmem:[%s363 + $0x5b0] sm:$0xff]
        %v650 = vld [vmem:[%s363 + $0x5b8] sm:$0xff]
        %v651 = vld [vmem:[%s363 + $0x5c0] sm:$0xff]
        %v652 = vld [vmem:[%s363 + $0x5c8] sm:$0xff]
        %v653 = vld [vmem:[%s363 + $0x5d0] sm:$0xff]
        %v654 = vld [vmem:[%s363 + $0x5d8] sm:$0xff]
        %v655 = vld [vmem:[%s363 + $0x5e0] sm:$0xff]
        %v656 = vld [vmem:[%s363 + $0x5e8] sm:$0xff]
        %v657 = vld [vmem:[%s363 + $0x5f0] sm:$0xff]
        %v658 = vld [vmem:[%s363 + $0x5f8] sm:$0xff]
        %v659 = vld [vmem:[%s363 + $0x600] sm:$0xff]
        %v660 = vld [vmem:[%s363 + $0x608] sm:$0xff]
        %v661 = vld [vmem:[%s363 + $0x610] sm:$0xff]
        %v662 = vld [vmem:[%s363 + $0x618] sm:$0xff]
        %v663 = vld [vmem:[%s363 + $0x620] sm:$0xff]
        %v664 = vld [vmem:[%s363 + $0x628] sm:$0xff]
        %v665 = vld [vmem:[%s363 + $0x630] sm:$0xff]
        %v666 = vld [vmem:[%s363 + $0x638] sm:$0xff]
        %v667 = vld [vmem:[%s363 + $0x640] sm:$0xff]
        %v668 = vld [vmem:[%s363 + $0x648] sm:$0xff]
        %v669 = vld [vmem:[%s363 + $0x650] sm:$0xff]
        %v670 = vld [vmem:[%s363 + $0x658] sm:$0xff]
        %v671 = vld [vmem:[%s363 + $0x660] sm:$0xff]
        %v672 = vld [vmem:[%s363 + $0x668] sm:$0xff]
        %v673 = vld [vmem:[%s363 + $0x670] sm:$0xff]
        %v674 = vld [vmem:[%s363 + $0x678] sm:$0xff]
        %v675 = vld [vmem:[%s363 + $0x680] sm:$0xff]
        %v676 = vld [vmem:[%s363 + $0x688] sm:$0xff]
        %v677 = vld [vmem:[%s363 + $0x690] sm:$0xff]
        %v678 = vld [vmem:[%s363 + $0x698] sm:$0xff]
        %v679 = vld [vmem:[%s363 + $0x6a0] sm:$0xff]
        %v680 = vld [vmem:[%s363 + $0x6a8] sm:$0xff]
        %v681 = vld [vmem:[%s363 + $0x6b0] sm:$0xff]
        %v682 = vld [vmem:[%s363 + $0x6b8] sm:$0xff]
        %v683 = vld [vmem:[%s363 + $0x6c0] sm:$0xff]
        %v684 = vld [vmem:[%s363 + $0x6c8] sm:$0xff]
        %v685 = vld [vmem:[%s363 + $0x6d0] sm:$0xff]
        %v686 = vld [vmem:[%s363 + $0x6d8] sm:$0xff]
        %v687 = vld [vmem:[%s363 + $0x6e0] sm:$0xff]
        %v688 = vld [vmem:[%s363 + $0x6e8] sm:$0xff]
        %v689 = vld [vmem:[%s363 + $0x6f0] sm:$0xff]
        %v690 = vld [vmem:[%s363 + $0x6f8] sm:$0xff]
        %v691 = vld [vmem:[%s363 + $0x700] sm:$0xff]
        %v692 = vld [vmem:[%s363 + $0x708] sm:$0xff]
        %v693 = vld [vmem:[%s363 + $0x710] sm:$0xff]
        %v694 = vld [vmem:[%s363 + $0x718] sm:$0xff]
        %v695 = vld [vmem:[%s363 + $0x720] sm:$0xff]
        %v696 = vld [vmem:[%s363 + $0x728] sm:$0xff]
        %v697 = vld [vmem:[%s363 + $0x730] sm:$0xff]
        %v698 = vld [vmem:[%s363 + $0x738] sm:$0xff]
        %v699 = vld [vmem:[%s363 + $0x740] sm:$0xff]
        %v700 = vld [vmem:[%s363 + $0x748] sm:$0xff]
        %v701 = vld [vmem:[%s363 + $0x750] sm:$0xff]
        %v702 = vld [vmem:[%s363 + $0x758] sm:$0xff]
        %v703 = vld [vmem:[%s363 + $0x760] sm:$0xff]
        %v704 = vld [vmem:[%s363 + $0x768] sm:$0xff]
        %v705 = vld [vmem:[%s363 + $0x770] sm:$0xff]
        %v706 = vld [vmem:[%s363 + $0x778] sm:$0xff]
        %v707 = vld [vmem:[%s363 + $0x780] sm:$0xff]
        %v708 = vld [vmem:[%s363 + $0x788] sm:$0xff]
        %v709 = vld [vmem:[%s363 + $0x790] sm:$0xff]
        %v710 = vld [vmem:[%s363 + $0x798] sm:$0xff]
        %v711 = vld [vmem:[%s363 + $0x7a0] sm:$0xff]
        %v712 = vld [vmem:[%s363 + $0x7a8] sm:$0xff]
        %v713 = vld [vmem:[%s363 + $0x7b0] sm:$0xff]
        %v714 = vld [vmem:[%s363 + $0x7b8] sm:$0xff]
        %v715 = vld [vmem:[%s363 + $0x7c0] sm:$0xff]
        %v716 = vld [vmem:[%s363 + $0x7c8] sm:$0xff]
        %v717 = vld [vmem:[%s363 + $0x7d0] sm:$0xff]
        %v718 = vld [vmem:[%s363 + $0x7d8] sm:$0xff]
        %v719 = vld [vmem:[%s363 + $0x7e0] sm:$0xff]
        %v720 = vld [vmem:[%s363 + $0x7e8] sm:$0xff]
        %v721 = vld [vmem:[%s363 + $0x7f0] sm:$0xff]
        %v722 = vld [vmem:[%s363 + $0x7f8] sm:$0xff]
        %v723 = vld [vmem:[%s363 + $0x800] sm:$0xff]
        %v724 = vld [vmem:[%s363 + $0x808] sm:$0xff]
        %v725 = vld [vmem:[%s363 + $0x810] sm:$0xff]
        %v726 = vld [vmem:[%s363 + $0x818] sm:$0xff]
        %v727 = vld [vmem:[%s363 + $0x820] sm:$0xff]
        %v728 = vld [vmem:[%s363 + $0x828] sm:$0xff]
        %v729 = vld [vmem:[%s363 + $0x830] sm:$0xff]
        %v730 = vld [vmem:[%s363 + $0x838] sm:$0xff]
        %v731 = vld [vmem:[%s363 + $0x840] sm:$0xff]
        %v732 = vld [vmem:[%s363 + $0x848] sm:$0xff]
        %v733 = vld [vmem:[%s363 + $0x850] sm:$0xff]
        %v734 = vld [vmem:[%s363 + $0x858] sm:$0xff]
        %v735 = vld [vmem:[%s363 + $0x860] sm:$0xff]
        %v736 = vld [vmem:[%s363 + $0x868] sm:$0xff]
        %v737 = vld [vmem:[%s363 + $0x870] sm:$0xff]
        %v738 = vld [vmem:[%s363 + $0x878] sm:$0xff]
        %v739 = vld [vmem:[%s363 + $0x880] sm:$0xff]
        %v740 = vld [vmem:[%s363 + $0x888] sm:$0xff]
        %v741 = vld [vmem:[%s363 + $0x890] sm:$0xff]
        %v742 = vld [vmem:[%s363 + $0x898] sm:$0xff]
        %v743 = vld [vmem:[%s363 + $0x8a0] sm:$0xff]
        %v744 = vld [vmem:[%s363 + $0x8a8] sm:$0xff]
        %v745 = vld [vmem:[%s363 + $0x8b0] sm:$0xff]
        %v746 = vld [vmem:[%s363 + $0x8b8] sm:$0xff]
        %v747 = vld [vmem:[%s363 + $0x8c0] sm:$0xff]
        %v748 = vld [vmem:[%s363 + $0x8c8] sm:$0xff]
        %v749 = vld [vmem:[%s363 + $0x8d0] sm:$0xff]
        %v750 = vld [vmem:[%s363 + $0x8d8] sm:$0xff]
        %v751 = vld [vmem:[%s363 + $0x8e0] sm:$0xff]
        %v752 = vld [vmem:[%s363 + $0x8e8] sm:$0xff]
        %v753 = vld [vmem:[%s363 + $0x8f0] sm:$0xff]
        %v754 = vld [vmem:[%s363 + $0x8f8] sm:$0xff]
        %v755 = vld [vmem:[%s363 + $0x900] sm:$0xff]
        %v756 = vld [vmem:[%s363 + $0x908] sm:$0xff]
        %v757 = vld [vmem:[%s363 + $0x910] sm:$0xff]
        %v758 = vld [vmem:[%s363 + $0x918] sm:$0xff]
        %v759 = vld [vmem:[%s363 + $0x920] sm:$0xff]
        %v760 = vld [vmem:[%s363 + $0x928] sm:$0xff]
        %v761 = vld [vmem:[%s363 + $0x930] sm:$0xff]
        %v762 = vld [vmem:[%s363 + $0x938] sm:$0xff]
        %v763 = vld [vmem:[%s363 + $0x940] sm:$0xff]
        %v764 = vld [vmem:[%s363 + $0x948] sm:$0xff]
        %v765 = vld [vmem:[%s363 + $0x950] sm:$0xff]
        %v766 = vld [vmem:[%s363 + $0x958] sm:$0xff]
        %v767 = vld [vmem:[%s363 + $0x960] sm:$0xff]
        %v768 = vld [vmem:[%s363 + $0x968] sm:$0xff]
        %v769 = vld [vmem:[%s363 + $0x970] sm:$0xff]
        %v770 = vld [vmem:[%s363 + $0x978] sm:$0xff]
        %v771 = vld [vmem:[%s363 + $0x980] sm:$0xff]
        %v772 = vld [vmem:[%s363 + $0x988] sm:$0xff]
        %v773 = vld [vmem:[%s363 + $0x990] sm:$0xff]
        %v774 = vld [vmem:[%s363 + $0x998] sm:$0xff]
        %v775 = vld [vmem:[%s363 + $0x9a0] sm:$0xff]
        %v776 = vld [vmem:[%s363 + $0x9a8] sm:$0xff]
        %v777 = vld [vmem:[%s363 + $0x9b0] sm:$0xff]
        %v778 = vld [vmem:[%s363 + $0x9b8] sm:$0xff]
        %v779 = vld [vmem:[%s363 + $0x9c0] sm:$0xff]
        %v780 = vld [vmem:[%s363 + $0x9c8] sm:$0xff]
        %v781 = vld [vmem:[%s363 + $0x9d0] sm:$0xff]
        %v782 = vld [vmem:[%s363 + $0x9d8] sm:$0xff]
        %v783 = vld [vmem:[%s363 + $0x9e0] sm:$0xff]
        %v784 = vld [vmem:[%s363 + $0x9e8] sm:$0xff]
        %v785 = vld [vmem:[%s363 + $0x9f0] sm:$0xff]
        %v786 = vld [vmem:[%s363 + $0x9f8] sm:$0xff]
        %v787 = vld [vmem:[%s363 + $0xa00] sm:$0xff]
        %v788 = vld [vmem:[%s363 + $0xa08] sm:$0xff]
        %v789 = vld [vmem:[%s363 + $0xa10] sm:$0xff]
        %v790 = vld [vmem:[%s363 + $0xa18] sm:$0xff]
        %v791 = vld [vmem:[%s363 + $0xa20] sm:$0xff]
        %v792 = vld [vmem:[%s363 + $0xa28] sm:$0xff]
        %v793 = vld [vmem:[%s363 + $0xa30] sm:$0xff]
        %v794 = vld [vmem:[%s363 + $0xa38] sm:$0xff]
        %v795 = vld [vmem:[%s363 + $0xa40] sm:$0xff]
        %v796 = vld [vmem:[%s363 + $0xa48] sm:$0xff]
        %v797 = vld [vmem:[%s363 + $0xa50] sm:$0xff]
        %v798 = vld [vmem:[%s363 + $0xa58] sm:$0xff]
        %v799 = vld [vmem:[%s363 + $0xa60] sm:$0xff]
        %v800 = vld [vmem:[%s363 + $0xa68] sm:$0xff]
        %v801 = vld [vmem:[%s363 + $0xa70] sm:$0xff]
        %v802 = vld [vmem:[%s363 + $0xa78] sm:$0xff]
        %v803 = vld [vmem:[%s363 + $0xa80] sm:$0xff]
        %v804 = vld [vmem:[%s363 + $0xa88] sm:$0xff]
        %v805 = vld [vmem:[%s363 + $0xa90] sm:$0xff]
        %v806 = vld [vmem:[%s363 + $0xa98] sm:$0xff]
        %v807 = vld [vmem:[%s363 + $0xaa0] sm:$0xff]
        %v808 = vld [vmem:[%s363 + $0xaa8] sm:$0xff]
        %v809 = vld [vmem:[%s363 + $0xab0] sm:$0xff]
        %v810 = vld [vmem:[%s363 + $0xab8] sm:$0xff]
        %v811 = vld [vmem:[%s363 + $0xac0] sm:$0xff]
        %v812 = vld [vmem:[%s363 + $0xac8] sm:$0xff]
        %v813 = vld [vmem:[%s363 + $0xad0] sm:$0xff]
        %v814 = vld [vmem:[%s363 + $0xad8] sm:$0xff]
        %v815 = vld [vmem:[%s363 + $0xae0] sm:$0xff]
        %v816 = vld [vmem:[%s363 + $0xae8] sm:$0xff]
        %v817 = vld [vmem:[%s363 + $0xaf0] sm:$0xff]
        %v818 = vld [vmem:[%s363 + $0xaf8] sm:$0xff]
        %v819 = vld [vmem:[%s363 + $0xb00] sm:$0xff]
        %v820 = vld [vmem:[%s363 + $0xb08] sm:$0xff]
        %v821 = vld [vmem:[%s363 + $0xb10] sm:$0xff]
        %v822 = vld [vmem:[%s363 + $0xb18] sm:$0xff]
        %v823 = vld [vmem:[%s363 + $0xb20] sm:$0xff]
        %v824 = vld [vmem:[%s363 + $0xb28] sm:$0xff]
        %v825 = vld [vmem:[%s363 + $0xb30] sm:$0xff]
        %v826 = vld [vmem:[%s363 + $0xb38] sm:$0xff]
        %v827 = vld [vmem:[%s363 + $0xb40] sm:$0xff]
        %v828 = vld [vmem:[%s363 + $0xb48] sm:$0xff]
        %v829 = vld [vmem:[%s363 + $0xb50] sm:$0xff]
        %v830 = vld [vmem:[%s363 + $0xb58] sm:$0xff]
        %v831 = vld [vmem:[%s363 + $0xb60] sm:$0xff]
        %v832 = vld [vmem:[%s363 + $0xb68] sm:$0xff]
        %v833 = vld [vmem:[%s363 + $0xb70] sm:$0xff]
        %v834 = vld [vmem:[%s363 + $0xb78] sm:$0xff]
        %v835 = vld [vmem:[%s363 + $0xb80] sm:$0xff]
        %v836 = vld [vmem:[%s363 + $0xb88] sm:$0xff]
        %v837 = vld [vmem:[%s363 + $0xb90] sm:$0xff]
        %v838 = vld [vmem:[%s363 + $0xb98] sm:$0xff]
        %v839 = vld [vmem:[%s363 + $0xba0] sm:$0xff]
        %v840 = vld [vmem:[%s363 + $0xba8] sm:$0xff]
        %v841 = vld [vmem:[%s363 + $0xbb0] sm:$0xff]
        %v842 = vld [vmem:[%s363 + $0xbb8] sm:$0xff]
        %v843 = vld [vmem:[%s363 + $0xbc0] sm:$0xff]
        %v844 = vld [vmem:[%s363 + $0xbc8] sm:$0xff]
        %v845 = vld [vmem:[%s363 + $0xbd0] sm:$0xff]
        %v846 = vld [vmem:[%s363 + $0xbd8] sm:$0xff]
        %v847 = vld [vmem:[%s363 + $0xbe0] sm:$0xff]
        %v848 = vld [vmem:[%s363 + $0xbe8] sm:$0xff]
        %v849 = vld [vmem:[%s363 + $0xbf0] sm:$0xff]
        %v850 = vld [vmem:[%s363 + $0xbf8] sm:$0xff]
        %v851 = vld [vmem:[%s363 + $0xc00] sm:$0xff]
        %v852 = vld [vmem:[%s363 + $0xc08] sm:$0xff]
        %v853 = vld [vmem:[%s363 + $0xc10] sm:$0xff]
        %v854 = vld [vmem:[%s363 + $0xc18] sm:$0xff]
        %v855 = vld [vmem:[%s363 + $0xc20] sm:$0xff]
        %v856 = vld [vmem:[%s363 + $0xc28] sm:$0xff]
        %v857 = vld [vmem:[%s363 + $0xc30] sm:$0xff]
        %v858 = vld [vmem:[%s363 + $0xc38] sm:$0xff]
        %v859 = vld [vmem:[%s363 + $0xc40] sm:$0xff]
        %v860 = vld [vmem:[%s363 + $0xc48] sm:$0xff]
        %v861 = vld [vmem:[%s363 + $0xc50] sm:$0xff]
        %v862 = vld [vmem:[%s363 + $0xc58] sm:$0xff]
        %v863 = vld [vmem:[%s363 + $0xc60] sm:$0xff]
        %v864 = vld [vmem:[%s363 + $0xc68] sm:$0xff]
        %v865 = vld [vmem:[%s363 + $0xc70] sm:$0xff]
        %v866 = vld [vmem:[%s363 + $0xc78] sm:$0xff]
        %v867 = vld [vmem:[%s363 + $0xc80] sm:$0xff]
        %v868 = vld [vmem:[%s363 + $0xc88] sm:$0xff]
        %v869 = vld [vmem:[%s363 + $0xc90] sm:$0xff]
        %v870 = vld [vmem:[%s363 + $0xc98] sm:$0xff]
        %v871 = vld [vmem:[%s363 + $0xca0] sm:$0xff]
        %v872 = vld [vmem:[%s363 + $0xca8] sm:$0xff]
        %v873 = vld [vmem:[%s363 + $0xcb0] sm:$0xff]
        %v874 = vld [vmem:[%s363 + $0xcb8] sm:$0xff]
        %v875 = vld [vmem:[%s363 + $0xcc0] sm:$0xff]
        %v876 = vld [vmem:[%s363 + $0xcc8] sm:$0xff]
        %v877 = vld [vmem:[%s363 + $0xcd0] sm:$0xff]
        %v878 = vld [vmem:[%s363 + $0xcd8] sm:$0xff]
        %v879 = vld [vmem:[%s363 + $0xce0] sm:$0xff]
        %v880 = vld [vmem:[%s363 + $0xce8] sm:$0xff]
        %v881 = vld [vmem:[%s363 + $0xcf0] sm:$0xff]
        %v882 = vld [vmem:[%s363 + $0xcf8] sm:$0xff]
        %v883 = vld [vmem:[%s363 + $0xd00] sm:$0xff]
        %v884 = vld [vmem:[%s363 + $0xd08] sm:$0xff]
        %v885 = vld [vmem:[%s363 + $0xd10] sm:$0xff]
        %v886 = vld [vmem:[%s363 + $0xd18] sm:$0xff]
        %v887 = vld [vmem:[%s363 + $0xd20] sm:$0xff]
        %v888 = vld [vmem:[%s363 + $0xd28] sm:$0xff]
        %v889 = vld [vmem:[%s363 + $0xd30] sm:$0xff]
        %v890 = vld [vmem:[%s363 + $0xd38] sm:$0xff]
        %v891 = vld [vmem:[%s363 + $0xd40] sm:$0xff]
        %v892 = vld [vmem:[%s363 + $0xd48] sm:$0xff]
        %v893 = vld [vmem:[%s363 + $0xd50] sm:$0xff]
        %v894 = vld [vmem:[%s363 + $0xd58] sm:$0xff]
        %v895 = vld [vmem:[%s363 + $0xd60] sm:$0xff]
        %v896 = vld [vmem:[%s363 + $0xd68] sm:$0xff]
        %v897 = vld [vmem:[%s363 + $0xd70] sm:$0xff]
        %v898 = vld [vmem:[%s363 + $0xd78] sm:$0xff]
        %v899 = vld [vmem:[%s363 + $0xd80] sm:$0xff]
        %v900 = vld [vmem:[%s363 + $0xd88] sm:$0xff]
        %v901 = vld [vmem:[%s363 + $0xd90] sm:$0xff]
        %v902 = vld [vmem:[%s363 + $0xd98] sm:$0xff]
        %v903 = vld [vmem:[%s363 + $0xda0] sm:$0xff]
        %v904 = vld [vmem:[%s363 + $0xda8] sm:$0xff]
        %v905 = vld [vmem:[%s363 + $0xdb0] sm:$0xff]
        %v906 = vld [vmem:[%s363 + $0xdb8] sm:$0xff]
        %v907 = vld [vmem:[%s363 + $0xdc0] sm:$0xff]
        %v908 = vld [vmem:[%s363 + $0xdc8] sm:$0xff]
        %v909 = vld [vmem:[%s363 + $0xdd0] sm:$0xff]
        %v910 = vld [vmem:[%s363 + $0xdd8] sm:$0xff]
        %v911 = vld [vmem:[%s363 + $0xde0] sm:$0xff]
        %v912 = vld [vmem:[%s363 + $0xde8] sm:$0xff]
        %v913 = vld [vmem:[%s363 + $0xdf0] sm:$0xff]
        %v914 = vld [vmem:[%s363 + $0xdf8] sm:$0xff]
        %v915 = vld [vmem:[%s363 + $0xe00] sm:$0xff]
        %v916 = vld [vmem:[%s363 + $0xe08] sm:$0xff]
        %v917 = vld [vmem:[%s363 + $0xe10] sm:$0xff]
        %v918 = vld [vmem:[%s363 + $0xe18] sm:$0xff]
        %v919 = vld [vmem:[%s363 + $0xe20] sm:$0xff]
        %v920 = vld [vmem:[%s363 + $0xe28] sm:$0xff]
        %v921 = vld [vmem:[%s363 + $0xe30] sm:$0xff]
        %v922 = vld [vmem:[%s363 + $0xe38] sm:$0xff]
        %v923 = vld [vmem:[%s363 + $0xe40] sm:$0xff]
        %v924 = vld [vmem:[%s363 + $0xe48] sm:$0xff]
        %v925 = vld [vmem:[%s363 + $0xe50] sm:$0xff]
        %v926 = vld [vmem:[%s363 + $0xe58] sm:$0xff]
        %v927 = vld [vmem:[%s363 + $0xe60] sm:$0xff]
        %v928 = vld [vmem:[%s363 + $0xe68] sm:$0xff]
        %v929 = vld [vmem:[%s363 + $0xe70] sm:$0xff]
        %v930 = vld [vmem:[%s363 + $0xe78] sm:$0xff]
        %v931 = vld [vmem:[%s363 + $0xe80] sm:$0xff]
        %v932 = vld [vmem:[%s363 + $0xe88] sm:$0xff]
        %v933 = vld [vmem:[%s363 + $0xe90] sm:$0xff]
        %v934 = vld [vmem:[%s363 + $0xe98] sm:$0xff]
        %v935 = vld [vmem:[%s363 + $0xea0] sm:$0xff]
        %v936 = vld [vmem:[%s363 + $0xea8] sm:$0xff]
        %v937 = vld [vmem:[%s363 + $0xeb0] sm:$0xff]
        %v938 = vld [vmem:[%s363 + $0xeb8] sm:$0xff]
        %v939 = vld [vmem:[%s363 + $0xec0] sm:$0xff]
        %v940 = vld [vmem:[%s363 + $0xec8] sm:$0xff]
        %v941 = vld [vmem:[%s363 + $0xed0] sm:$0xff]
        %v942 = vld [vmem:[%s363 + $0xed8] sm:$0xff]
        %v943 = vld [vmem:[%s363 + $0xee0] sm:$0xff]
        %v944 = vld [vmem:[%s363 + $0xee8] sm:$0xff]
        %v945 = vld [vmem:[%s363 + $0xef0] sm:$0xff]
        %v946 = vld [vmem:[%s363 + $0xef8] sm:$0xff]
        %v947 = vld [vmem:[%s363 + $0xf00] sm:$0xff]
        %v948 = vld [vmem:[%s363 + $0xf08] sm:$0xff]
        %v949 = vld [vmem:[%s363 + $0xf10] sm:$0xff]
        %v950 = vld [vmem:[%s363 + $0xf18] sm:$0xff]
        %v951 = vld [vmem:[%s363 + $0xf20] sm:$0xff]
        %v952 = vld [vmem:[%s363 + $0xf28] sm:$0xff]
        %v953 = vld [vmem:[%s363 + $0xf30] sm:$0xff]
        %v954 = vld [vmem:[%s363 + $0xf38] sm:$0xff]
        %v955 = vld [vmem:[%s363 + $0xf40] sm:$0xff]
        %v956 = vld [vmem:[%s363 + $0xf48] sm:$0xff]
        %v957 = vld [vmem:[%s363 + $0xf50] sm:$0xff]
        %v958 = vld [vmem:[%s363 + $0xf58] sm:$0xff]
        %v959 = vld [vmem:[%s363 + $0xf60] sm:$0xff]
        %v960 = vld [vmem:[%s363 + $0xf68] sm:$0xff]
        %v961 = vld [vmem:[%s363 + $0xf70] sm:$0xff]
        %v962 = vld [vmem:[%s363 + $0xf78] sm:$0xff]
        %v963 = vld [vmem:[%s363 + $0xf80] sm:$0xff]
        %v964 = vld [vmem:[%s363 + $0xf88] sm:$0xff]
        %v965 = vld [vmem:[%s363 + $0xf90] sm:$0xff]
        %v966 = vld [vmem:[%s363 + $0xf98] sm:$0xff]
        %v967 = vld [vmem:[%s363 + $0xfa0] sm:$0xff]
        %v968 = vld [vmem:[%s363 + $0xfa8] sm:$0xff]
        %v969 = vld [vmem:[%s363 + $0xfb0] sm:$0xff]
        %v970 = vld [vmem:[%s363 + $0xfb8] sm:$0xff]
        %v971 = vld [vmem:[%s363 + $0xfc0] sm:$0xff]
        %v972 = vld [vmem:[%s363 + $0xfc8] sm:$0xff]
        %v973 = vld [vmem:[%s363 + $0xfd0] sm:$0xff]
        %v974 = vld [vmem:[%s363 + $0xfd8] sm:$0xff]
        %v975 = vld [vmem:[%s363 + $0xfe0] sm:$0xff]
        %v976 = vld [vmem:[%s363 + $0xfe8] sm:$0xff]
        %v977 = vld [vmem:[%s363 + $0xff0] sm:$0xff]
        %v978 = vld [vmem:[%s363 + $0xff8] sm:$0xff]
        %v979 = vld [vmem:[%s363 + $0x1000] sm:$0xff]
        %v980 = vld [vmem:[%s363 + $0x1008] sm:$0xff]
        %v981 = vld [vmem:[%s363 + $0x1010] sm:$0xff]
        %v982 = vld [vmem:[%s363 + $0x1018] sm:$0xff]
        %v983 = vld [vmem:[%s363 + $0x1020] sm:$0xff]
        %v984 = vld [vmem:[%s363 + $0x1028] sm:$0xff]
        %v985 = vld [vmem:[%s363 + $0x1030] sm:$0xff]
        %v986 = vld [vmem:[%s363 + $0x1038] sm:$0xff]
        %v987 = vld [vmem:[%s363 + $0x1040] sm:$0xff]
        %v988 = vld [vmem:[%s363 + $0x1048] sm:$0xff]
        %v989 = vld [vmem:[%s363 + $0x1050] sm:$0xff]
        %v990 = vld [vmem:[%s363 + $0x1058] sm:$0xff]
        %v991 = vld [vmem:[%s363 + $0x1060] sm:$0xff]
        %v992 = vld [vmem:[%s363 + $0x1068] sm:$0xff]
        %v993 = vld [vmem:[%s363 + $0x1070] sm:$0xff]
        %v994 = vld [vmem:[%s363 + $0x1078] sm:$0xff]
        %v995 = vld [vmem:[%s363 + $0x1080] sm:$0xff]
        %v996 = vld [vmem:[%s363 + $0x1088] sm:$0xff]
        %v997 = vld [vmem:[%s363 + $0x1090] sm:$0xff]
        %v998 = vld [vmem:[%s363 + $0x1098] sm:$0xff]
        %v999 = vld [vmem:[%s363 + $0x10a0] sm:$0xff]
        %v1000 = vld [vmem:[%s363 + $0x10a8] sm:$0xff]
        %v1001 = vld [vmem:[%s363 + $0x10b0] sm:$0xff]
        %v1002 = vld [vmem:[%s363 + $0x10b8] sm:$0xff]
        %v1003 = vld [vmem:[%s363 + $0x10c0] sm:$0xff]
        %v1004 = vld [vmem:[%s363 + $0x10c8] sm:$0xff]
        %v1005 = vld [vmem:[%s363 + $0x10d0] sm:$0xff]
        %v1006 = vld [vmem:[%s363 + $0x10d8] sm:$0xff]
        %v1007 = vld [vmem:[%s363 + $0x10e0] sm:$0xff]
        %v1008 = vld [vmem:[%s363 + $0x10e8] sm:$0xff]
        %v1009 = vld [vmem:[%s363 + $0x10f0] sm:$0xff]
        %v1010 = vld [vmem:[%s363 + $0x10f8] sm:$0xff]
        %v1011 = vld [vmem:[%s363 + $0x1100] sm:$0xff]
        %v1012 = vld [vmem:[%s363 + $0x1108] sm:$0xff]
        %v1013 = vld [vmem:[%s363 + $0x1110] sm:$0xff]
        %v1014 = vld [vmem:[%s363 + $0x1118] sm:$0xff]
        %v1015 = vld [vmem:[%s363 + $0x1120] sm:$0xff]
        %v1016 = vld [vmem:[%s363 + $0x1128] sm:$0xff]
        %v1017 = vld [vmem:[%s363 + $0x1130] sm:$0xff]
        %v1018 = vld [vmem:[%s363 + $0x1138] sm:$0xff]
        %v1019 = vld [vmem:[%s363 + $0x1140] sm:$0xff]
        %v1020 = vld [vmem:[%s363 + $0x1148] sm:$0xff]
        %v1021 = vld [vmem:[%s363 + $0x1150] sm:$0xff]
        %v1022 = vld [vmem:[%s363 + $0x1158] sm:$0xff]
        %v1023 = vld [vmem:[%s363 + $0x1160] sm:$0xff]
        %v1024 = vld [vmem:[%s363 + $0x1168] sm:$0xff]
        %v1025 = vld [vmem:[%s363 + $0x1170] sm:$0xff]
        %v1026 = vld [vmem:[%s363 + $0x1178] sm:$0xff]
        %v1027 = vld [vmem:[%s363 + $0x1180] sm:$0xff]
        %v1028 = vld [vmem:[%s363 + $0x1188] sm:$0xff]
        %v1029 = vld [vmem:[%s363 + $0x1190] sm:$0xff]
        %v1030 = vld [vmem:[%s363 + $0x1198] sm:$0xff]
        %v1031 = vld [vmem:[%s363 + $0x11a0] sm:$0xff]
        %v1032 = vld [vmem:[%s363 + $0x11a8] sm:$0xff]
        %v1033 = vld [vmem:[%s363 + $0x11b0] sm:$0xff]
        %v1034 = vld [vmem:[%s363 + $0x11b8] sm:$0xff]
        %v1035 = vld [vmem:[%s363 + $0x11c0] sm:$0xff]
        %v1036 = vld [vmem:[%s363 + $0x11c8] sm:$0xff]
        %v1037 = vld [vmem:[%s363 + $0x11d0] sm:$0xff]
        %v1038 = vld [vmem:[%s363 + $0x11d8] sm:$0xff]
        %v1039 = vld [vmem:[%s363 + $0x11e0] sm:$0xff]
        %v1040 = vld [vmem:[%s363 + $0x11e8] sm:$0xff]
        %v1041 = vld [vmem:[%s363 + $0x11f0] sm:$0xff]
        %v1042 = vld [vmem:[%s363 + $0x11f8] sm:$0xff]
        %v1043 = vld [vmem:[%s363 + $0x1200] sm:$0xff]
        %v1044 = vld [vmem:[%s363 + $0x1208] sm:$0xff]
        %v1045 = vld [vmem:[%s363 + $0x1210] sm:$0xff]
        %v1046 = vld [vmem:[%s363 + $0x1218] sm:$0xff]
        %v1047 = vld [vmem:[%s363 + $0x1220] sm:$0xff]
        %v1048 = vld [vmem:[%s363 + $0x1228] sm:$0xff]
        %v1049 = vld [vmem:[%s363 + $0x1230] sm:$0xff]
        %v1050 = vld [vmem:[%s363 + $0x1238] sm:$0xff]
        %v1051 = vld [vmem:[%s363 + $0x1240] sm:$0xff]
        %v1052 = vld [vmem:[%s363 + $0x1248] sm:$0xff]
        %v1053 = vld [vmem:[%s363 + $0x1250] sm:$0xff]
        %v1054 = vld [vmem:[%s363 + $0x1258] sm:$0xff]
        %v1055 = vld [vmem:[%s363 + $0x1260] sm:$0xff]
        %v1056 = vld [vmem:[%s363 + $0x1268] sm:$0xff]
        %v1057 = vld [vmem:[%s363 + $0x1270] sm:$0xff]
        %v1058 = vld [vmem:[%s363 + $0x1278] sm:$0xff]
        %v1059 = vld [vmem:[%s363 + $0x1280] sm:$0xff]
        %v1060 = vld [vmem:[%s363 + $0x1288] sm:$0xff]
        %v1061 = vld [vmem:[%s363 + $0x1290] sm:$0xff]
        %v1062 = vld [vmem:[%s363 + $0x1298] sm:$0xff]
        %v1063 = vld [vmem:[%s363 + $0x12a0] sm:$0xff]
        %v1064 = vld [vmem:[%s363 + $0x12a8] sm:$0xff]
        %v1065 = vld [vmem:[%s363 + $0x12b0] sm:$0xff]
        %v1066 = vld [vmem:[%s363 + $0x12b8] sm:$0xff]
        %v1067 = vld [vmem:[%s363 + $0x12c0] sm:$0xff]
        %v1068 = vld [vmem:[%s363 + $0x12c8] sm:$0xff]
        %v1069 = vld [vmem:[%s363 + $0x12d0] sm:$0xff]
        %v1070 = vld [vmem:[%s363 + $0x12d8] sm:$0xff]
        %v1071 = vld [vmem:[%s363 + $0x12e0] sm:$0xff]
        %v1072 = vld [vmem:[%s363 + $0x12e8] sm:$0xff]
        %v1073 = vld [vmem:[%s363 + $0x12f0] sm:$0xff]
        %v1074 = vld [vmem:[%s363 + $0x12f8] sm:$0xff]
        %v1075 = vld [vmem:[%s363 + $0x1300] sm:$0xff]
        %v1076 = vld [vmem:[%s363 + $0x1308] sm:$0xff]
        %v1077 = vld [vmem:[%s363 + $0x1310] sm:$0xff]
        %v1078 = vld [vmem:[%s363 + $0x1318] sm:$0xff]
        %v1079 = vld [vmem:[%s363 + $0x1320] sm:$0xff]
        %v1080 = vld [vmem:[%s363 + $0x1328] sm:$0xff]
        %v1081 = vld [vmem:[%s363 + $0x1330] sm:$0xff]
        %v1082 = vld [vmem:[%s363 + $0x1338] sm:$0xff]
        %v1083 = vld [vmem:[%s363 + $0x1340] sm:$0xff]
        %v1084 = vld [vmem:[%s363 + $0x1348] sm:$0xff]
        %v1085 = vld [vmem:[%s363 + $0x1350] sm:$0xff]
        %v1086 = vld [vmem:[%s363 + $0x1358] sm:$0xff]
        %v1087 = vld [vmem:[%s363 + $0x1360] sm:$0xff]
        %v1088 = vld [vmem:[%s363 + $0x1368] sm:$0xff]
        %v1089 = vld [vmem:[%s363 + $0x1370] sm:$0xff]
        %v1090 = vld [vmem:[%s363 + $0x1378] sm:$0xff]
        %v1091 = vld [vmem:[%s363 + $0x1380] sm:$0xff]
        %v1092 = vld [vmem:[%s363 + $0x1388] sm:$0xff]
        %v1093 = vld [vmem:[%s363 + $0x1390] sm:$0xff]
        %v1094 = vld [vmem:[%s363 + $0x1398] sm:$0xff]
        %v1095 = vld [vmem:[%s363 + $0x13a0] sm:$0xff]
        %v1096 = vld [vmem:[%s363 + $0x13a8] sm:$0xff]
        %v1097 = vld [vmem:[%s363 + $0x13b0] sm:$0xff]
        %v1098 = vld [vmem:[%s363 + $0x13b8] sm:$0xff]
        %v1099 = vld [vmem:[%s363 + $0x13c0] sm:$0xff]
        %v1100 = vld [vmem:[%s363 + $0x13c8] sm:$0xff]
        %v1101 = vld [vmem:[%s363 + $0x13d0] sm:$0xff]
        %v1102 = vld [vmem:[%s363 + $0x13d8] sm:$0xff]
        %v1103 = vld [vmem:[%s363 + $0x13e0] sm:$0xff]
        %v1104 = vld [vmem:[%s363 + $0x13e8] sm:$0xff]
        %v1105 = vld [vmem:[%s363 + $0x13f0] sm:$0xff]
        %v1106 = vld [vmem:[%s363 + $0x13f8] sm:$0xff]
        %v1107 = vld [vmem:[%s363 + $0x1400] sm:$0xff]
        %v1108 = vld [vmem:[%s363 + $0x1408] sm:$0xff]
        %v1109 = vld [vmem:[%s363 + $0x1410] sm:$0xff]
        %v1110 = vld [vmem:[%s363 + $0x1418] sm:$0xff]
        %v1111 = vld [vmem:[%s363 + $0x1420] sm:$0xff]
        %v1112 = vld [vmem:[%s363 + $0x1428] sm:$0xff]
        %v1113 = vld [vmem:[%s363 + $0x1430] sm:$0xff]
        %v1114 = vld [vmem:[%s363 + $0x1438] sm:$0xff]
        %v1115 = vld [vmem:[%s363 + $0x1440] sm:$0xff]
        %v1116 = vld [vmem:[%s363 + $0x1448] sm:$0xff]
        %v1117 = vld [vmem:[%s363 + $0x1450] sm:$0xff]
        %v1118 = vld [vmem:[%s363 + $0x1458] sm:$0xff]
        %v1119 = vld [vmem:[%s363 + $0x1460] sm:$0xff]
        %v1120 = vld [vmem:[%s363 + $0x1468] sm:$0xff]
        %v1121 = vld [vmem:[%s363 + $0x1470] sm:$0xff]
        %v1122 = vld [vmem:[%s363 + $0x1478] sm:$0xff]
        %v1123 = vld [vmem:[%s363 + $0x1480] sm:$0xff]
        %v1124 = vld [vmem:[%s363 + $0x1488] sm:$0xff]
        %v1125 = vld [vmem:[%s363 + $0x1490] sm:$0xff]
        %v1126 = vld [vmem:[%s363 + $0x1498] sm:$0xff]
        %v1127 = vld [vmem:[%s363 + $0x14a0] sm:$0xff]
        %v1128 = vld [vmem:[%s363 + $0x14a8] sm:$0xff]
        %v1129 = vld [vmem:[%s363 + $0x14b0] sm:$0xff]
        %v1130 = vld [vmem:[%s363 + $0x14b8] sm:$0xff]
        %v1131 = vld [vmem:[%s363 + $0x14c0] sm:$0xff]
        %v1132 = vld [vmem:[%s363 + $0x14c8] sm:$0xff]
        %v1133 = vld [vmem:[%s363 + $0x14d0] sm:$0xff]
        %v1134 = vld [vmem:[%s363 + $0x14d8] sm:$0xff]
        %v1135 = vld [vmem:[%s363 + $0x14e0] sm:$0xff]
        %v1136 = vld [vmem:[%s363 + $0x14e8] sm:$0xff]
        %v1137 = vld [vmem:[%s363 + $0x14f0] sm:$0xff]
        %v1138 = vld [vmem:[%s363 + $0x14f8] sm:$0xff]
        %v1139 = vld [vmem:[%s363 + $0x1500] sm:$0xff]
        %v1140 = vld [vmem:[%s363 + $0x1508] sm:$0xff]
        %v1141 = vld [vmem:[%s363 + $0x1510] sm:$0xff]
        %v1142 = vld [vmem:[%s363 + $0x1518] sm:$0xff]
        %v1143 = vld [vmem:[%s363 + $0x1520] sm:$0xff]
        %v1144 = vld [vmem:[%s363 + $0x1528] sm:$0xff]
        %v1145 = vld [vmem:[%s363 + $0x1530] sm:$0xff]
        %v1146 = vld [vmem:[%s363 + $0x1538] sm:$0xff]
        %v1147 = vld [vmem:[%s363 + $0x1540] sm:$0xff]
        %v1148 = vld [vmem:[%s363 + $0x1548] sm:$0xff]
        %v1149 = vld [vmem:[%s363 + $0x1550] sm:$0xff]
        %v1150 = vld [vmem:[%s363 + $0x1558] sm:$0xff]
        %v1151 = vld [vmem:[%s363 + $0x1560] sm:$0xff]
        %v1152 = vld [vmem:[%s363 + $0x1568] sm:$0xff]
        %v1153 = vld [vmem:[%s363 + $0x1570] sm:$0xff]
        %v1154 = vld [vmem:[%s363 + $0x1578] sm:$0xff]
        %v1155 = vld [vmem:[%s363 + $0x1580] sm:$0xff]
        %v1156 = vld [vmem:[%s363 + $0x1588] sm:$0xff]
        %v1157 = vld [vmem:[%s363 + $0x1590] sm:$0xff]
        %v1158 = vld [vmem:[%s363 + $0x1598] sm:$0xff]
        %v1159 = vld [vmem:[%s363 + $0x15a0] sm:$0xff]
        %v1160 = vld [vmem:[%s363 + $0x15a8] sm:$0xff]
        %v1161 = vld [vmem:[%s363 + $0x15b0] sm:$0xff]
        %v1162 = vld [vmem:[%s363 + $0x15b8] sm:$0xff]
        %v1163 = vld [vmem:[%s363 + $0x15c0] sm:$0xff]
        %v1164 = vld [vmem:[%s363 + $0x15c8] sm:$0xff]
        %v1165 = vld [vmem:[%s363 + $0x15d0] sm:$0xff]
        %v1166 = vld [vmem:[%s363 + $0x15d8] sm:$0xff]
        %v1167 = vld [vmem:[%s363 + $0x15e0] sm:$0xff]
        %v1168 = vld [vmem:[%s363 + $0x15e8] sm:$0xff]
        %v1169 = vld [vmem:[%s363 + $0x15f0] sm:$0xff]
        %v1170 = vld [vmem:[%s363 + $0x15f8] sm:$0xff]
        %v1171 = vld [vmem:[%s363 + $0x1600] sm:$0xff]
        %v1172 = vld [vmem:[%s363 + $0x1608] sm:$0xff]
        %v1173 = vld [vmem:[%s363 + $0x1610] sm:$0xff]
        %v1174 = vld [vmem:[%s363 + $0x1618] sm:$0xff]
        %v1175 = vld [vmem:[%s363 + $0x1620] sm:$0xff]
        %v1176 = vld [vmem:[%s363 + $0x1628] sm:$0xff]
        %v1177 = vld [vmem:[%s363 + $0x1630] sm:$0xff]
        %v1178 = vld [vmem:[%s363 + $0x1638] sm:$0xff]
        %v1179 = vld [vmem:[%s363 + $0x1640] sm:$0xff]
        %v1180 = vld [vmem:[%s363 + $0x1648] sm:$0xff]
        %v1181 = vld [vmem:[%s363 + $0x1650] sm:$0xff]
        %v1182 = vld [vmem:[%s363 + $0x1658] sm:$0xff]
        %v1183 = vld [vmem:[%s363 + $0x1660] sm:$0xff]
        %v1184 = vld [vmem:[%s363 + $0x1668] sm:$0xff]
        %v1185 = vld [vmem:[%s363 + $0x1670] sm:$0xff]
        %v1186 = vld [vmem:[%s363 + $0x1678] sm:$0xff]
        %v1187 = vld [vmem:[%s363 + $0x1680] sm:$0xff]
        %v1188 = vld [vmem:[%s363 + $0x1688] sm:$0xff]
        %v1189 = vld [vmem:[%s363 + $0x1690] sm:$0xff]
        %v1190 = vld [vmem:[%s363 + $0x1698] sm:$0xff]
        %v1191 = vld [vmem:[%s363 + $0x16a0] sm:$0xff]
        %v1192 = vld [vmem:[%s363 + $0x16a8] sm:$0xff]
        %v1193 = vld [vmem:[%s363 + $0x16b0] sm:$0xff]
        %v1194 = vld [vmem:[%s363 + $0x16b8] sm:$0xff]
        %v1195 = vld [vmem:[%s363 + $0x16c0] sm:$0xff]
        %v1196 = vld [vmem:[%s363 + $0x16c8] sm:$0xff]
        %v1197 = vld [vmem:[%s363 + $0x16d0] sm:$0xff]
        %v1198 = vld [vmem:[%s363 + $0x16d8] sm:$0xff]
        %v1199 = vld [vmem:[%s363 + $0x16e0] sm:$0xff]
        %v1200 = vld [vmem:[%s363 + $0x16e8] sm:$0xff]
        %v1201 = vld [vmem:[%s363 + $0x16f0] sm:$0xff]
        %v1202 = vld [vmem:[%s363 + $0x16f8] sm:$0xff]
        %v1203 = vld [vmem:[%s363 + $0x1700] sm:$0xff]
        %v1204 = vld [vmem:[%s363 + $0x1708] sm:$0xff]
        %v1205 = vld [vmem:[%s363 + $0x1710] sm:$0xff]
        %v1206 = vld [vmem:[%s363 + $0x1718] sm:$0xff]
        %v1207 = vld [vmem:[%s363 + $0x1720] sm:$0xff]
        %v1208 = vld [vmem:[%s363 + $0x1728] sm:$0xff]
        %v1209 = vld [vmem:[%s363 + $0x1730] sm:$0xff]
        %v1210 = vld [vmem:[%s363 + $0x1738] sm:$0xff]
        %v1211 = vld [vmem:[%s363 + $0x1740] sm:$0xff]
        %v1212 = vld [vmem:[%s363 + $0x1748] sm:$0xff]
        %v1213 = vld [vmem:[%s363 + $0x1750] sm:$0xff]
        %v1214 = vld [vmem:[%s363 + $0x1758] sm:$0xff]
        %v1215 = vld [vmem:[%s363 + $0x1760] sm:$0xff]
        %v1216 = vld [vmem:[%s363 + $0x1768] sm:$0xff]
        %v1217 = vld [vmem:[%s363 + $0x1770] sm:$0xff]
        %v1218 = vld [vmem:[%s363 + $0x1778] sm:$0xff]
        %v1219 = vld [vmem:[%s363 + $0x1780] sm:$0xff]
        %v1220 = vld [vmem:[%s363 + $0x1788] sm:$0xff]
        %v1221 = vld [vmem:[%s363 + $0x1790] sm:$0xff]
        %v1222 = vld [vmem:[%s363 + $0x1798] sm:$0xff]
        %v1223 = vld [vmem:[%s363 + $0x17a0] sm:$0xff]
        %v1224 = vld [vmem:[%s363 + $0x17a8] sm:$0xff]
        %v1225 = vld [vmem:[%s363 + $0x17b0] sm:$0xff]
        %v1226 = vld [vmem:[%s363 + $0x17b8] sm:$0xff]
        %v1227 = vld [vmem:[%s363 + $0x17c0] sm:$0xff]
        %v1228 = vld [vmem:[%s363 + $0x17c8] sm:$0xff]
        %v1229 = vld [vmem:[%s363 + $0x17d0] sm:$0xff]
        %v1230 = vld [vmem:[%s363 + $0x17d8] sm:$0xff]
        %v1231 = vld [vmem:[%s363 + $0x17e0] sm:$0xff]
        %v1232 = vld [vmem:[%s363 + $0x17e8] sm:$0xff]
        %v1233 = vld [vmem:[%s363 + $0x17f0] sm:$0xff]
        %v1234 = vld [vmem:[%s363 + $0x17f8] sm:$0xff]
        %v1235 = vld [vmem:[%s363 + $0x1800] sm:$0xff]
        %v1236 = vld [vmem:[%s363 + $0x1808] sm:$0xff]
        %v1237 = vld [vmem:[%s363 + $0x1810] sm:$0xff]
        %v1238 = vld [vmem:[%s363 + $0x1818] sm:$0xff]
        %v1239 = vld [vmem:[%s363 + $0x1820] sm:$0xff]
        %v1240 = vld [vmem:[%s363 + $0x1828] sm:$0xff]
        %v1241 = vld [vmem:[%s363 + $0x1830] sm:$0xff]
        %v1242 = vld [vmem:[%s363 + $0x1838] sm:$0xff]
        %v1243 = vld [vmem:[%s363 + $0x1840] sm:$0xff]
        %v1244 = vld [vmem:[%s363 + $0x1848] sm:$0xff]
        %v1245 = vld [vmem:[%s363 + $0x1850] sm:$0xff]
        %v1246 = vld [vmem:[%s363 + $0x1858] sm:$0xff]
        %v1247 = vld [vmem:[%s363 + $0x1860] sm:$0xff]
        %v1248 = vld [vmem:[%s363 + $0x1868] sm:$0xff]
        %v1249 = vld [vmem:[%s363 + $0x1870] sm:$0xff]
        %v1250 = vld [vmem:[%s363 + $0x1878] sm:$0xff]
        %v1251 = vld [vmem:[%s363 + $0x1880] sm:$0xff]
        %v1252 = vld [vmem:[%s363 + $0x1888] sm:$0xff]
        %v1253 = vld [vmem:[%s363 + $0x1890] sm:$0xff]
        %v1254 = vld [vmem:[%s363 + $0x1898] sm:$0xff]
        %v1255 = vld [vmem:[%s363 + $0x18a0] sm:$0xff]
        %v1256 = vld [vmem:[%s363 + $0x18a8] sm:$0xff]
        %v1257 = vld [vmem:[%s363 + $0x18b0] sm:$0xff]
        %v1258 = vld [vmem:[%s363 + $0x18b8] sm:$0xff]
        %v1259 = vld [vmem:[%s363 + $0x18c0] sm:$0xff]
        %v1260 = vld [vmem:[%s363 + $0x18c8] sm:$0xff]
        %v1261 = vld [vmem:[%s363 + $0x18d0] sm:$0xff]
        %v1262 = vld [vmem:[%s363 + $0x18d8] sm:$0xff]
        %v1263 = vld [vmem:[%s363 + $0x18e0] sm:$0xff]
        %v1264 = vld [vmem:[%s363 + $0x18e8] sm:$0xff]
        %v1265 = vld [vmem:[%s363 + $0x18f0] sm:$0xff]
        %v1266 = vld [vmem:[%s363 + $0x18f8] sm:$0xff]
        %v1267 = vld [vmem:[%s363 + $0x1900] sm:$0xff]
        %v1268 = vld [vmem:[%s363 + $0x1908] sm:$0xff]
        %v1269 = vld [vmem:[%s363 + $0x1910] sm:$0xff]
        %v1270 = vld [vmem:[%s363 + $0x1918] sm:$0xff]
        %v1271 = vld [vmem:[%s363 + $0x1920] sm:$0xff]
        %v1272 = vld [vmem:[%s363 + $0x1928] sm:$0xff]
        %v1273 = vld [vmem:[%s363 + $0x1930] sm:$0xff]
        %v1274 = vld [vmem:[%s363 + $0x1938] sm:$0xff]
        %v1275 = vld [vmem:[%s363 + $0x1940] sm:$0xff]
        %v1276 = vld [vmem:[%s363 + $0x1948] sm:$0xff]
        %v1277 = vld [vmem:[%s363 + $0x1950] sm:$0xff]
        %v1278 = vld [vmem:[%s363 + $0x1958] sm:$0xff]
        %v1279 = vld [vmem:[%s363 + $0x1960] sm:$0xff]
        %v1280 = vld [vmem:[%s363 + $0x1968] sm:$0xff]
        %v1281 = vld [vmem:[%s363 + $0x1970] sm:$0xff]
        %v1282 = vld [vmem:[%s363 + $0x1978] sm:$0xff]
        %v1283 = vld [vmem:[%s363 + $0x1980] sm:$0xff]
        %v1284 = vld [vmem:[%s363 + $0x1988] sm:$0xff]
        %v1285 = vld [vmem:[%s363 + $0x1990] sm:$0xff]
        %v1286 = vld [vmem:[%s363 + $0x1998] sm:$0xff]
        %v1287 = vld [vmem:[%s363 + $0x19a0] sm:$0xff]
        %v1288 = vld [vmem:[%s363 + $0x19a8] sm:$0xff]
        %v1289 = vld [vmem:[%s363 + $0x19b0] sm:$0xff]
        %v1290 = vld [vmem:[%s363 + $0x19b8] sm:$0xff]
        %v1291 = vld [vmem:[%s363 + $0x19c0] sm:$0xff]
        %v1292 = vld [vmem:[%s363 + $0x19c8] sm:$0xff]
        %v1293 = vld [vmem:[%s363 + $0x19d0] sm:$0xff]
        %v1294 = vld [vmem:[%s363 + $0x19d8] sm:$0xff]
        %v1295 = vld [vmem:[%s363 + $0x19e0] sm:$0xff]
        %v1296 = vld [vmem:[%s363 + $0x19e8] sm:$0xff]
        %v1297 = vld [vmem:[%s363 + $0x19f0] sm:$0xff]
        %v1298 = vld [vmem:[%s363 + $0x19f8] sm:$0xff]
        %v1299 = vld [vmem:[%s363 + $0x1a00] sm:$0xff]
        %v1300 = vld [vmem:[%s363 + $0x1a08] sm:$0xff]
        %v1301 = vld [vmem:[%s363 + $0x1a10] sm:$0xff]
        %v1302 = vld [vmem:[%s363 + $0x1a18] sm:$0xff]
        %v1303 = vld [vmem:[%s363 + $0x1a20] sm:$0xff]
        %v1304 = vld [vmem:[%s363 + $0x1a28] sm:$0xff]
        %v1305 = vld [vmem:[%s363 + $0x1a30] sm:$0xff]
        %v1306 = vld [vmem:[%s363 + $0x1a38] sm:$0xff]
        %v1307 = vld [vmem:[%s363 + $0x1a40] sm:$0xff]
        %v1308 = vld [vmem:[%s363 + $0x1a48] sm:$0xff]
        %v1309 = vld [vmem:[%s363 + $0x1a50] sm:$0xff]
        %v1310 = vld [vmem:[%s363 + $0x1a58] sm:$0xff]
        %v1311 = vld [vmem:[%s363 + $0x1a60] sm:$0xff]
        %v1312 = vld [vmem:[%s363 + $0x1a68] sm:$0xff]
        %v1313 = vld [vmem:[%s363 + $0x1a70] sm:$0xff]
        %v1314 = vld [vmem:[%s363 + $0x1a78] sm:$0xff]
        %v1315 = vld [vmem:[%s363 + $0x1a80] sm:$0xff]
        %v1316 = vld [vmem:[%s363 + $0x1a88] sm:$0xff]
        %v1317 = vld [vmem:[%s363 + $0x1a90] sm:$0xff]
        %v1318 = vld [vmem:[%s363 + $0x1a98] sm:$0xff]
        %v1319 = vld [vmem:[%s363 + $0x1aa0] sm:$0xff]
        %v1320 = vld [vmem:[%s363 + $0x1aa8] sm:$0xff]
        %v1321 = vld [vmem:[%s363 + $0x1ab0] sm:$0xff]
        %v1322 = vld [vmem:[%s363 + $0x1ab8] sm:$0xff]
        %v1323 = vld [vmem:[%s363 + $0x1ac0] sm:$0xff]
        %v1324 = vld [vmem:[%s363 + $0x1ac8] sm:$0xff]
        %v1325 = vld [vmem:[%s363 + $0x1ad0] sm:$0xff]
        %v1326 = vld [vmem:[%s363 + $0x1ad8] sm:$0xff]
        %v1327 = vld [vmem:[%s363 + $0x1ae0] sm:$0xff]
        %v1328 = vld [vmem:[%s363 + $0x1ae8] sm:$0xff]
        %v1329 = vld [vmem:[%s363 + $0x1af0] sm:$0xff]
        %v1330 = vld [vmem:[%s363 + $0x1af8] sm:$0xff]
        %v1359 = vunpack.c.l.b16 %v439
        %v1360 = vunpack.c.h.b16 %v439
        %v1361 = vunpack.c.l.b16 %v440
        %v1362 = vunpack.c.h.b16 %v440
        %v1363 = vunpack.c.l.b16 %v441
        %v1364 = vunpack.c.h.b16 %v441
        %v1365 = vunpack.c.l.b16 %v442
        %v1366 = vunpack.c.h.b16 %v442
        %v1367 = vunpack.c.l.b16 %v443
        %v1368 = vunpack.c.h.b16 %v443
        %v1369 = vunpack.c.l.b16 %v444
        %v1370 = vunpack.c.h.b16 %v444
        %v1371 = vunpack.c.l.b16 %v445
        %v1372 = vunpack.c.h.b16 %v445
        %v1373 = vunpack.c.l.b16 %v446
        %v1374 = vunpack.c.h.b16 %v446
        %v1375 = vunpack.c.l.b16 %v447
        %v1376 = vunpack.c.h.b16 %v447
        %v1377 = vunpack.c.l.b16 %v448
        %v1378 = vunpack.c.h.b16 %v448
        %v1379 = vunpack.c.l.b16 %v449
        %v1380 = vunpack.c.h.b16 %v449
        %v1381 = vunpack.c.l.b16 %v450
        %v1382 = vunpack.c.h.b16 %v450
        %v1383 = vunpack.c.l.b16 %v451
        %v1384 = vunpack.c.h.b16 %v451
        %v1385 = vunpack.c.l.b16 %v452
        %v1386 = vunpack.c.l.b16 %v453
        %v1387 = vunpack.c.h.b16 %v453
        %v1388 = vunpack.c.l.b16 %v454
        %v1389 = vunpack.c.h.b16 %v454
        %v1390 = vunpack.c.l.b16 %v455
        %v1391 = vunpack.c.h.b16 %v455
        %v1392 = vunpack.c.l.b16 %v456
        %v1393 = vunpack.c.h.b16 %v456
        %v1394 = vunpack.c.l.b16 %v457
        %v1395 = vunpack.c.h.b16 %v457
        %v1396 = vunpack.c.l.b16 %v458
        %v1397 = vunpack.c.h.b16 %v458
        %v1398 = vunpack.c.l.b16 %v459
        %v1399 = vunpack.c.h.b16 %v459
        %v1400 = vunpack.c.l.b16 %v460
        %v1401 = vunpack.c.h.b16 %v460
        %v1402 = vunpack.c.l.b16 %v461
        %v1403 = vunpack.c.h.b16 %v461
        %v1404 = vunpack.c.l.b16 %v462
        %v1405 = vunpack.c.h.b16 %v462
        %v1406 = vunpack.c.l.b16 %v463
        %v1407 = vunpack.c.h.b16 %v463
        %v1408 = vunpack.c.l.b16 %v464
        %v1409 = vunpack.c.h.b16 %v464
        %v1410 = vunpack.c.l.b16 %v465
        %v1411 = vunpack.c.h.b16 %v465
        %v1412 = vunpack.c.l.b16 %v466
        %v1413 = vpack.c.b16 %v1386, %v1359
        %v1414 = vpack.c.b16 %v1387, %v1360
        %v1415 = vpack.c.b16 %v1388, %v1361
        %v1416 = vpack.c.b16 %v1389, %v1362
        %v1417 = vpack.c.b16 %v1390, %v1363
        %v1418 = vpack.c.b16 %v1391, %v1364
        %v1419 = vpack.c.b16 %v1392, %v1365
        %v1420 = vpack.c.b16 %v1393, %v1366
        %v1421 = vpack.c.b16 %v1394, %v1367
        %v1422 = vpack.c.b16 %v1395, %v1368
        %v1423 = vpack.c.b16 %v1396, %v1369
        %v1424 = vpack.c.b16 %v1397, %v1370
        %v1425 = vpack.c.b16 %v1398, %v1371
        %v1426 = vpack.c.b16 %v1399, %v1372
        %v1427 = vpack.c.b16 %v1400, %v1373
        %v1428 = vpack.c.b16 %v1401, %v1374
        %v1429 = vpack.c.b16 %v1402, %v1375
        %v1430 = vpack.c.b16 %v1403, %v1376
        %v1431 = vpack.c.b16 %v1404, %v1377
        %v1432 = vpack.c.b16 %v1405, %v1378
        %v1433 = vpack.c.b16 %v1406, %v1379
        %v1434 = vpack.c.b16 %v1407, %v1380
        %v1435 = vpack.c.b16 %v1408, %v1381
        %v1436 = vpack.c.b16 %v1409, %v1382
        %v1437 = vpack.c.b16 %v1410, %v1383
        %v1438 = vpack.c.b16 %v1411, %v1384
        %v1439 = vpack.c.b16 %v1412, %v1385
        %v2331 = vunpack.c.l.b16 %v467
        %v2332 = vunpack.c.h.b16 %v467
        %v2333 = vunpack.c.l.b16 %v468
        %v2334 = vunpack.c.h.b16 %v468
        %v2335 = vunpack.c.l.b16 %v469
        %v2336 = vunpack.c.h.b16 %v469
        %v2337 = vunpack.c.l.b16 %v470
        %v2338 = vunpack.c.h.b16 %v470
        %v2339 = vunpack.c.l.b16 %v471
        %v2340 = vunpack.c.h.b16 %v471
        %v2341 = vunpack.c.l.b16 %v472
        %v2342 = vunpack.c.h.b16 %v472
        %v2343 = vunpack.c.l.b16 %v473
        %v2344 = vunpack.c.h.b16 %v473
        %v2345 = vunpack.c.l.b16 %v474
        %v2346 = vunpack.c.h.b16 %v474
        %v2347 = vunpack.c.l.b16 %v475
        %v2348 = vunpack.c.h.b16 %v475
        %v2349 = vunpack.c.l.b16 %v476
        %v2350 = vunpack.c.h.b16 %v476
        %v2351 = vunpack.c.l.b16 %v477
        %v2352 = vunpack.c.h.b16 %v477
        %v2353 = vunpack.c.l.b16 %v478
        %v2354 = vunpack.c.h.b16 %v478
        %v2355 = vunpack.c.l.b16 %v479
        %v2356 = vunpack.c.h.b16 %v479
        %v2357 = vunpack.c.l.b16 %v480
        %v2358 = vunpack.c.h.b16 %v480
        %v2359 = vunpack.c.l.b16 %v481
        %v2360 = vunpack.c.h.b16 %v481
        %v2361 = vunpack.c.l.b16 %v482
        %v2362 = vunpack.c.h.b16 %v482
        %v2363 = vunpack.c.l.b16 %v483
        %v2364 = vunpack.c.h.b16 %v483
        %v2365 = vunpack.c.l.b16 %v484
        %v2366 = vunpack.c.h.b16 %v484
        %v2367 = vunpack.c.l.b16 %v485
        %v2368 = vunpack.c.h.b16 %v485
        %v2369 = vunpack.c.l.b16 %v486
        %v2370 = vunpack.c.h.b16 %v486
        %v2371 = vunpack.c.l.b16 %v487
        %v2372 = vunpack.c.h.b16 %v487
        %v2373 = vunpack.c.l.b16 %v488
        %v2374 = vunpack.c.h.b16 %v488
        %v2375 = vunpack.c.l.b16 %v489
        %v2376 = vunpack.c.h.b16 %v489
        %v2377 = vunpack.c.l.b16 %v490
        %v2378 = vunpack.c.h.b16 %v490
        %v2379 = vunpack.c.l.b16 %v491
        %v2380 = vunpack.c.h.b16 %v491
        %v2381 = vunpack.c.l.b16 %v492
        %v2382 = vunpack.c.h.b16 %v492
        %v2383 = vunpack.c.l.b16 %v493
        %v2384 = vunpack.c.h.b16 %v493
        %v2385 = vunpack.c.l.b16 %v494
        %v2386 = vunpack.c.h.b16 %v494
        %v2387 = vunpack.c.l.b16 %v495
        %v2388 = vunpack.c.h.b16 %v495
        %v2389 = vunpack.c.l.b16 %v496
        %v2390 = vunpack.c.h.b16 %v496
        %v2391 = vunpack.c.l.b16 %v497
        %v2392 = vunpack.c.h.b16 %v497
        %v2393 = vunpack.c.l.b16 %v498
        %v2394 = vunpack.c.h.b16 %v498
        %v2395 = vunpack.c.l.b16 %v499
        %v2396 = vunpack.c.h.b16 %v499
        %v2397 = vunpack.c.l.b16 %v500
        %v2398 = vunpack.c.h.b16 %v500
        %v2399 = vunpack.c.l.b16 %v501
        %v2400 = vunpack.c.h.b16 %v501
        %v2401 = vunpack.c.l.b16 %v502
        %v2402 = vunpack.c.h.b16 %v502
        %v2403 = vunpack.c.l.b16 %v503
        %v2404 = vunpack.c.h.b16 %v503
        %v2405 = vunpack.c.l.b16 %v504
        %v2406 = vunpack.c.h.b16 %v504
        %v2407 = vunpack.c.l.b16 %v505
        %v2408 = vunpack.c.h.b16 %v505
        %v2409 = vunpack.c.l.b16 %v506
        %v2410 = vunpack.c.h.b16 %v506
        %v2411 = vunpack.c.l.b16 %v507
        %v2412 = vunpack.c.h.b16 %v507
        %v2413 = vunpack.c.l.b16 %v508
        %v2414 = vunpack.c.h.b16 %v508
        %v2415 = vunpack.c.l.b16 %v509
        %v2416 = vunpack.c.h.b16 %v509
        %v2417 = vunpack.c.l.b16 %v510
        %v2418 = vunpack.c.h.b16 %v510
        %v2419 = vunpack.c.l.b16 %v511
        %v2420 = vunpack.c.h.b16 %v511
        %v2421 = vunpack.c.l.b16 %v512
        %v2422 = vunpack.c.h.b16 %v512
        %v2423 = vunpack.c.l.b16 %v513
        %v2424 = vunpack.c.h.b16 %v513
        %v2425 = vunpack.c.l.b16 %v514
        %v2426 = vunpack.c.h.b16 %v514
        %v2427 = vunpack.c.l.b16 %v515
        %v2428 = vunpack.c.h.b16 %v515
        %v2429 = vunpack.c.l.b16 %v516
        %v2430 = vunpack.c.h.b16 %v516
        %v2431 = vunpack.c.l.b16 %v517
        %v2432 = vunpack.c.h.b16 %v517
        %v2433 = vunpack.c.l.b16 %v518
        %v2434 = vunpack.c.h.b16 %v518
        %v2435 = vunpack.c.l.b16 %v519
        %v2436 = vunpack.c.h.b16 %v519
        %v2437 = vunpack.c.l.b16 %v520
        %v2438 = vunpack.c.h.b16 %v520
        %v2439 = vunpack.c.l.b16 %v521
        %v2440 = vunpack.c.h.b16 %v521
        %v2441 = vunpack.c.l.b16 %v522
        %v2442 = vunpack.c.h.b16 %v522
        %v2443 = vunpack.c.l.b16 %v523
        %v2444 = vunpack.c.h.b16 %v523
        %v2445 = vunpack.c.l.b16 %v524
        %v2446 = vunpack.c.h.b16 %v524
        %v2447 = vunpack.c.l.b16 %v525
        %v2448 = vunpack.c.h.b16 %v525
        %v2449 = vunpack.c.l.b16 %v526
        %v2450 = vunpack.c.h.b16 %v526
        %v2451 = vunpack.c.l.b16 %v527
        %v2452 = vunpack.c.h.b16 %v527
        %v2453 = vunpack.c.l.b16 %v528
        %v2454 = vunpack.c.h.b16 %v528
        %v2455 = vunpack.c.l.b16 %v529
        %v2456 = vunpack.c.h.b16 %v529
        %v2457 = vunpack.c.l.b16 %v530
        %v2458 = vunpack.c.h.b16 %v530
        %v2459 = vunpack.c.l.b16 %v531
        %v2460 = vunpack.c.h.b16 %v531
        %v2461 = vunpack.c.l.b16 %v532
        %v2462 = vunpack.c.h.b16 %v532
        %v2463 = vunpack.c.l.b16 %v533
        %v2464 = vunpack.c.h.b16 %v533
        %v2465 = vunpack.c.l.b16 %v534
        %v2466 = vunpack.c.h.b16 %v534
        %v2467 = vunpack.c.l.b16 %v535
        %v2468 = vunpack.c.h.b16 %v535
        %v2469 = vunpack.c.l.b16 %v536
        %v2470 = vunpack.c.h.b16 %v536
        %v2471 = vunpack.c.l.b16 %v537
        %v2472 = vunpack.c.h.b16 %v537
        %v2473 = vunpack.c.l.b16 %v538
        %v2474 = vunpack.c.h.b16 %v538
        %v2475 = vunpack.c.l.b16 %v539
        %v2476 = vunpack.c.h.b16 %v539
        %v2477 = vunpack.c.l.b16 %v540
        %v2478 = vunpack.c.h.b16 %v540
        %v2479 = vunpack.c.l.b16 %v541
        %v2480 = vunpack.c.h.b16 %v541
        %v2481 = vunpack.c.l.b16 %v542
        %v2482 = vunpack.c.h.b16 %v542
        %v2483 = vunpack.c.l.b16 %v543
        %v2484 = vunpack.c.h.b16 %v543
        %v2485 = vunpack.c.l.b16 %v544
        %v2486 = vunpack.c.h.b16 %v544
        %v2487 = vunpack.c.l.b16 %v545
        %v2488 = vunpack.c.h.b16 %v545
        %v2489 = vunpack.c.l.b16 %v546
        %v2490 = vunpack.c.h.b16 %v546
        %v2491 = vunpack.c.l.b16 %v547
        %v2492 = vunpack.c.h.b16 %v547
        %v2493 = vunpack.c.l.b16 %v548
        %v2494 = vunpack.c.h.b16 %v548
        %v2495 = vunpack.c.l.b16 %v549
        %v2496 = vunpack.c.h.b16 %v549
        %v2497 = vunpack.c.l.b16 %v550
        %v2498 = vunpack.c.h.b16 %v550
        %v2499 = vunpack.c.l.b16 %v551
        %v2500 = vunpack.c.h.b16 %v551
        %v2501 = vunpack.c.l.b16 %v552
        %v2502 = vunpack.c.h.b16 %v552
        %v2503 = vunpack.c.l.b16 %v553
        %v2504 = vunpack.c.h.b16 %v553
        %v2505 = vunpack.c.l.b16 %v554
        %v2506 = vunpack.c.h.b16 %v554
        %v2507 = vunpack.c.l.b16 %v555
        %v2508 = vunpack.c.h.b16 %v555
        %v2509 = vunpack.c.l.b16 %v556
        %v2510 = vunpack.c.h.b16 %v556
        %v2511 = vunpack.c.l.b16 %v557
        %v2512 = vunpack.c.h.b16 %v557
        %v2513 = vunpack.c.l.b16 %v558
        %v2514 = vunpack.c.h.b16 %v558
        %v2515 = vunpack.c.l.b16 %v559
        %v2516 = vunpack.c.h.b16 %v559
        %v2517 = vunpack.c.l.b16 %v560
        %v2518 = vunpack.c.h.b16 %v560
        %v2519 = vunpack.c.l.b16 %v561
        %v2520 = vunpack.c.h.b16 %v561
        %v2521 = vunpack.c.l.b16 %v562
        %v2522 = vunpack.c.h.b16 %v562
        %v2523 = vunpack.c.l.b16 %v563
        %v2524 = vunpack.c.h.b16 %v563
        %v2525 = vunpack.c.l.b16 %v564
        %v2526 = vunpack.c.h.b16 %v564
        %v2527 = vunpack.c.l.b16 %v565
        %v2528 = vunpack.c.h.b16 %v565
        %v2529 = vunpack.c.l.b16 %v566
        %v2530 = vunpack.c.h.b16 %v566
        %v2531 = vunpack.c.l.b16 %v567
        %v2532 = vunpack.c.h.b16 %v567
        %v2533 = vunpack.c.l.b16 %v568
        %v2534 = vunpack.c.h.b16 %v568
        %v2535 = vunpack.c.l.b16 %v569
        %v2536 = vunpack.c.h.b16 %v569
        %v2537 = vunpack.c.l.b16 %v570
        %v2538 = vunpack.c.h.b16 %v570
        %v2539 = vunpack.c.l.b16 %v571
        %v2540 = vunpack.c.h.b16 %v571
        %v2541 = vunpack.c.l.b16 %v572
        %v2542 = vunpack.c.h.b16 %v572
        %v2543 = vunpack.c.l.b16 %v573
        %v2544 = vunpack.c.h.b16 %v573
        %v2545 = vunpack.c.l.b16 %v574
        %v2546 = vunpack.c.h.b16 %v574
        %v2547 = vunpack.c.l.b16 %v575
        %v2548 = vunpack.c.h.b16 %v575
        %v2549 = vunpack.c.l.b16 %v576
        %v2550 = vunpack.c.h.b16 %v576
        %v2551 = vunpack.c.l.b16 %v577
        %v2552 = vunpack.c.h.b16 %v577
        %v2553 = vunpack.c.l.b16 %v578
        %v2554 = vunpack.c.h.b16 %v578
        %v2555 = vunpack.c.l.b16 %v579
        %v2556 = vunpack.c.h.b16 %v579
        %v2557 = vunpack.c.l.b16 %v580
        %v2558 = vunpack.c.h.b16 %v580
        %v2559 = vunpack.c.l.b16 %v581
        %v2560 = vunpack.c.h.b16 %v581
        %v2561 = vunpack.c.l.b16 %v582
        %v2562 = vunpack.c.h.b16 %v582
        %v2563 = vunpack.c.l.b16 %v583
        %v2564 = vunpack.c.h.b16 %v583
        %v2565 = vunpack.c.l.b16 %v584
        %v2566 = vunpack.c.h.b16 %v584
        %v2567 = vunpack.c.l.b16 %v585
        %v2568 = vunpack.c.h.b16 %v585
        %v2569 = vunpack.c.l.b16 %v586
        %v2570 = vunpack.c.h.b16 %v586
        %v2571 = vunpack.c.l.b16 %v587
        %v2572 = vunpack.c.h.b16 %v587
        %v2573 = vunpack.c.l.b16 %v588
        %v2574 = vunpack.c.h.b16 %v588
        %v2575 = vunpack.c.l.b16 %v589
        %v2576 = vunpack.c.h.b16 %v589
        %v2577 = vunpack.c.l.b16 %v590
        %v2578 = vunpack.c.h.b16 %v590
        %v2579 = vunpack.c.l.b16 %v591
        %v2580 = vunpack.c.h.b16 %v591
        %v2581 = vunpack.c.l.b16 %v592
        %v2582 = vunpack.c.h.b16 %v592
        %v2583 = vunpack.c.l.b16 %v593
        %v2584 = vunpack.c.h.b16 %v593
        %v2585 = vunpack.c.l.b16 %v594
        %v2586 = vunpack.c.h.b16 %v594
        %v2587 = vunpack.c.l.b16 %v595
        %v2588 = vunpack.c.h.b16 %v595
        %v2589 = vunpack.c.l.b16 %v596
        %v2590 = vunpack.c.h.b16 %v596
        %v2591 = vunpack.c.l.b16 %v597
        %v2592 = vunpack.c.h.b16 %v597
        %v2593 = vunpack.c.l.b16 %v598
        %v2594 = vunpack.c.h.b16 %v598
        %v2595 = vunpack.c.l.b16 %v599
        %v2596 = vunpack.c.h.b16 %v599
        %v2597 = vunpack.c.l.b16 %v600
        %v2598 = vunpack.c.h.b16 %v600
        %v2599 = vunpack.c.l.b16 %v601
        %v2600 = vunpack.c.h.b16 %v601
        %v2601 = vunpack.c.l.b16 %v602
        %v2602 = vunpack.c.h.b16 %v602
        %v2603 = vunpack.c.l.b16 %v603
        %v2604 = vunpack.c.h.b16 %v603
        %v2605 = vunpack.c.l.b16 %v604
        %v2606 = vunpack.c.h.b16 %v604
        %v2607 = vunpack.c.l.b16 %v605
        %v2608 = vunpack.c.h.b16 %v605
        %v2609 = vunpack.c.l.b16 %v606
        %v2610 = vunpack.c.h.b16 %v606
        %v2611 = vunpack.c.l.b16 %v607
        %v2612 = vunpack.c.h.b16 %v607
        %v2613 = vunpack.c.l.b16 %v608
        %v2614 = vunpack.c.h.b16 %v608
        %v2615 = vunpack.c.l.b16 %v609
        %v2616 = vunpack.c.h.b16 %v609
        %v2617 = vunpack.c.l.b16 %v610
        %v2618 = vunpack.c.h.b16 %v610
        %v2619 = vunpack.c.l.b16 %v611
        %v2620 = vunpack.c.h.b16 %v611
        %v2621 = vunpack.c.l.b16 %v612
        %v2622 = vunpack.c.h.b16 %v612
        %v2623 = vunpack.c.l.b16 %v613
        %v2624 = vunpack.c.h.b16 %v613
        %v2625 = vunpack.c.l.b16 %v614
        %v2626 = vunpack.c.h.b16 %v614
        %v2627 = vunpack.c.l.b16 %v615
        %v2628 = vunpack.c.h.b16 %v615
        %v2629 = vunpack.c.l.b16 %v616
        %v2630 = vunpack.c.h.b16 %v616
        %v2631 = vunpack.c.l.b16 %v617
        %v2632 = vunpack.c.h.b16 %v617
        %v2633 = vunpack.c.l.b16 %v618
        %v2634 = vunpack.c.h.b16 %v618
        %v2635 = vunpack.c.l.b16 %v619
        %v2636 = vunpack.c.h.b16 %v619
        %v2637 = vunpack.c.l.b16 %v620
        %v2638 = vunpack.c.h.b16 %v620
        %v2639 = vunpack.c.l.b16 %v621
        %v2640 = vunpack.c.h.b16 %v621
        %v2641 = vunpack.c.l.b16 %v622
        %v2642 = vunpack.c.h.b16 %v622
        %v2643 = vunpack.c.l.b16 %v623
        %v2644 = vunpack.c.h.b16 %v623
        %v2645 = vunpack.c.l.b16 %v624
        %v2646 = vunpack.c.h.b16 %v624
        %v2647 = vunpack.c.l.b16 %v625
        %v2648 = vunpack.c.h.b16 %v625
        %v2649 = vunpack.c.l.b16 %v626
        %v2650 = vunpack.c.h.b16 %v626
        %v2651 = vunpack.c.l.b16 %v627
        %v2652 = vunpack.c.h.b16 %v627
        %v2653 = vunpack.c.l.b16 %v628
        %v2654 = vunpack.c.h.b16 %v628
        %v2655 = vunpack.c.l.b16 %v629
        %v2656 = vunpack.c.h.b16 %v629
        %v2657 = vunpack.c.l.b16 %v630
        %v2658 = vunpack.c.h.b16 %v630
        %v2659 = vunpack.c.l.b16 %v631
        %v2660 = vunpack.c.h.b16 %v631
        %v2661 = vunpack.c.l.b16 %v632
        %v2662 = vunpack.c.h.b16 %v632
        %v2663 = vunpack.c.l.b16 %v633
        %v2664 = vunpack.c.h.b16 %v633
        %v2665 = vunpack.c.l.b16 %v634
        %v2666 = vunpack.c.h.b16 %v634
        %v2667 = vunpack.c.l.b16 %v635
        %v2668 = vunpack.c.h.b16 %v635
        %v2669 = vunpack.c.l.b16 %v636
        %v2670 = vunpack.c.h.b16 %v636
        %v2671 = vunpack.c.l.b16 %v637
        %v2672 = vunpack.c.h.b16 %v637
        %v2673 = vunpack.c.l.b16 %v638
        %v2674 = vunpack.c.h.b16 %v638
        %v2675 = vunpack.c.l.b16 %v639
        %v2676 = vunpack.c.h.b16 %v639
        %v2677 = vunpack.c.l.b16 %v640
        %v2678 = vunpack.c.h.b16 %v640
        %v2679 = vunpack.c.l.b16 %v641
        %v2680 = vunpack.c.h.b16 %v641
        %v2681 = vunpack.c.l.b16 %v642
        %v2682 = vunpack.c.h.b16 %v642
        %v2683 = vunpack.c.l.b16 %v643
        %v2684 = vunpack.c.h.b16 %v643
        %v2685 = vunpack.c.l.b16 %v644
        %v2686 = vunpack.c.h.b16 %v644
        %v2687 = vunpack.c.l.b16 %v645
        %v2688 = vunpack.c.h.b16 %v645
        %v2689 = vunpack.c.l.b16 %v646
        %v2690 = vunpack.c.h.b16 %v646
        %v2691 = vunpack.c.l.b16 %v647
        %v2692 = vunpack.c.h.b16 %v647
        %v2693 = vunpack.c.l.b16 %v648
        %v2694 = vunpack.c.h.b16 %v648
        %v2695 = vunpack.c.l.b16 %v649
        %v2696 = vunpack.c.h.b16 %v649
        %v2697 = vunpack.c.l.b16 %v650
        %v2698 = vunpack.c.h.b16 %v650
        %v2699 = vunpack.c.l.b16 %v651
        %v2700 = vunpack.c.h.b16 %v651
        %v2701 = vunpack.c.l.b16 %v652
        %v2702 = vunpack.c.h.b16 %v652
        %v2703 = vunpack.c.l.b16 %v653
        %v2704 = vunpack.c.h.b16 %v653
        %v2705 = vunpack.c.l.b16 %v654
        %v2706 = vunpack.c.h.b16 %v654
        %v2707 = vunpack.c.l.b16 %v655
        %v2708 = vunpack.c.h.b16 %v655
        %v2709 = vunpack.c.l.b16 %v656
        %v2710 = vunpack.c.h.b16 %v656
        %v2711 = vunpack.c.l.b16 %v657
        %v2712 = vunpack.c.h.b16 %v657
        %v2713 = vunpack.c.l.b16 %v658
        %v2714 = vunpack.c.h.b16 %v658
        %v2715 = vunpack.c.l.b16 %v659
        %v2716 = vunpack.c.h.b16 %v659
        %v2717 = vunpack.c.l.b16 %v660
        %v2718 = vunpack.c.h.b16 %v660
        %v2719 = vunpack.c.l.b16 %v661
        %v2720 = vunpack.c.h.b16 %v661
        %v2721 = vunpack.c.l.b16 %v662
        %v2722 = vunpack.c.h.b16 %v662
        %v2723 = vunpack.c.l.b16 %v663
        %v2724 = vunpack.c.h.b16 %v663
        %v2725 = vunpack.c.l.b16 %v664
        %v2726 = vunpack.c.h.b16 %v664
        %v2727 = vunpack.c.l.b16 %v665
        %v2728 = vunpack.c.h.b16 %v665
        %v2729 = vunpack.c.l.b16 %v666
        %v2730 = vunpack.c.h.b16 %v666
        %v2731 = vunpack.c.l.b16 %v667
        %v2732 = vunpack.c.h.b16 %v667
        %v2733 = vunpack.c.l.b16 %v668
        %v2734 = vunpack.c.h.b16 %v668
        %v2735 = vunpack.c.l.b16 %v669
        %v2736 = vunpack.c.h.b16 %v669
        %v2737 = vunpack.c.l.b16 %v670
        %v2738 = vunpack.c.h.b16 %v670
        %v2739 = vunpack.c.l.b16 %v671
        %v2740 = vunpack.c.h.b16 %v671
        %v2741 = vunpack.c.l.b16 %v672
        %v2742 = vunpack.c.h.b16 %v672
        %v2743 = vunpack.c.l.b16 %v673
        %v2744 = vunpack.c.h.b16 %v673
        %v2745 = vunpack.c.l.b16 %v674
        %v2746 = vunpack.c.h.b16 %v674
        %v2747 = vunpack.c.l.b16 %v675
        %v2748 = vunpack.c.h.b16 %v675
        %v2749 = vunpack.c.l.b16 %v676
        %v2750 = vunpack.c.h.b16 %v676
        %v2751 = vunpack.c.l.b16 %v677
        %v2752 = vunpack.c.h.b16 %v677
        %v2753 = vunpack.c.l.b16 %v678
        %v2754 = vunpack.c.h.b16 %v678
        %v2755 = vunpack.c.l.b16 %v679
        %v2756 = vunpack.c.h.b16 %v679
        %v2757 = vunpack.c.l.b16 %v680
        %v2758 = vunpack.c.h.b16 %v680
        %v2759 = vunpack.c.l.b16 %v681
        %v2760 = vunpack.c.h.b16 %v681
        %v2761 = vunpack.c.l.b16 %v682
        %v2762 = vunpack.c.h.b16 %v682
        %v2763 = vunpack.c.l.b16 %v683
        %v2764 = vunpack.c.h.b16 %v683
        %v2765 = vunpack.c.l.b16 %v684
        %v2766 = vunpack.c.h.b16 %v684
        %v2767 = vunpack.c.l.b16 %v685
        %v2768 = vunpack.c.h.b16 %v685
        %v2769 = vunpack.c.l.b16 %v686
        %v2770 = vunpack.c.h.b16 %v686
        %v2771 = vunpack.c.l.b16 %v687
        %v2772 = vunpack.c.h.b16 %v687
        %v2773 = vunpack.c.l.b16 %v688
        %v2774 = vunpack.c.h.b16 %v688
        %v2775 = vunpack.c.l.b16 %v689
        %v2776 = vunpack.c.h.b16 %v689
        %v2777 = vunpack.c.l.b16 %v690
        %v2778 = vunpack.c.h.b16 %v690
        %v2779 = vunpack.c.l.b16 %v691
        %v2780 = vunpack.c.h.b16 %v691
        %v2781 = vunpack.c.l.b16 %v692
        %v2782 = vunpack.c.h.b16 %v692
        %v2783 = vunpack.c.l.b16 %v693
        %v2784 = vunpack.c.h.b16 %v693
        %v2785 = vunpack.c.l.b16 %v694
        %v2786 = vunpack.c.h.b16 %v694
        %v2787 = vunpack.c.l.b16 %v695
        %v2788 = vunpack.c.h.b16 %v695
        %v2789 = vunpack.c.l.b16 %v696
        %v2790 = vunpack.c.h.b16 %v696
        %v2791 = vunpack.c.l.b16 %v697
        %v2792 = vunpack.c.h.b16 %v697
        %v2793 = vunpack.c.l.b16 %v698
        %v2794 = vunpack.c.h.b16 %v698
        %v2795 = vunpack.c.l.b16 %v699
        %v2796 = vunpack.c.h.b16 %v699
        %v2797 = vunpack.c.l.b16 %v700
        %v2798 = vunpack.c.h.b16 %v700
        %v2799 = vunpack.c.l.b16 %v701
        %v2800 = vunpack.c.h.b16 %v701
        %v2801 = vunpack.c.l.b16 %v702
        %v2802 = vunpack.c.h.b16 %v702
        %v2803 = vunpack.c.l.b16 %v703
        %v2804 = vunpack.c.h.b16 %v703
        %v2805 = vunpack.c.l.b16 %v704
        %v2806 = vunpack.c.h.b16 %v704
        %v2807 = vunpack.c.l.b16 %v705
        %v2808 = vunpack.c.h.b16 %v705
        %v2809 = vunpack.c.l.b16 %v706
        %v2810 = vunpack.c.h.b16 %v706
        %v2811 = vunpack.c.l.b16 %v707
        %v2812 = vunpack.c.h.b16 %v707
        %v2813 = vunpack.c.l.b16 %v708
        %v2814 = vunpack.c.h.b16 %v708
        %v2815 = vunpack.c.l.b16 %v709
        %v2816 = vunpack.c.h.b16 %v709
        %v2817 = vunpack.c.l.b16 %v710
        %v2818 = vunpack.c.h.b16 %v710
        %v2819 = vunpack.c.l.b16 %v711
        %v2820 = vunpack.c.h.b16 %v711
        %v2821 = vunpack.c.l.b16 %v712
        %v2822 = vunpack.c.h.b16 %v712
        %v2823 = vunpack.c.l.b16 %v713
        %v2824 = vunpack.c.h.b16 %v713
        %v2825 = vunpack.c.l.b16 %v714
        %v2826 = vunpack.c.h.b16 %v714
        %v2827 = vunpack.c.l.b16 %v715
        %v2828 = vunpack.c.h.b16 %v715
        %v2829 = vunpack.c.l.b16 %v716
        %v2830 = vunpack.c.h.b16 %v716
        %v2831 = vunpack.c.l.b16 %v717
        %v2832 = vunpack.c.h.b16 %v717
        %v2833 = vunpack.c.l.b16 %v718
        %v2834 = vunpack.c.h.b16 %v718
        %v2835 = vunpack.c.l.b16 %v719
        %v2836 = vunpack.c.h.b16 %v719
        %v2837 = vunpack.c.l.b16 %v720
        %v2838 = vunpack.c.h.b16 %v720
        %v2839 = vunpack.c.l.b16 %v721
        %v2840 = vunpack.c.h.b16 %v721
        %v2841 = vunpack.c.l.b16 %v722
        %v2842 = vunpack.c.h.b16 %v722
        %v2843 = vunpack.c.l.b16 %v723
        %v2844 = vunpack.c.h.b16 %v723
        %v2845 = vunpack.c.l.b16 %v724
        %v2846 = vunpack.c.h.b16 %v724
        %v2847 = vunpack.c.l.b16 %v725
        %v2848 = vunpack.c.h.b16 %v725
        %v2849 = vunpack.c.l.b16 %v726
        %v2850 = vunpack.c.h.b16 %v726
        %v2851 = vunpack.c.l.b16 %v727
        %v2852 = vunpack.c.h.b16 %v727
        %v2853 = vunpack.c.l.b16 %v728
        %v2854 = vunpack.c.h.b16 %v728
        %v2855 = vunpack.c.l.b16 %v729
        %v2856 = vunpack.c.h.b16 %v729
        %v2857 = vunpack.c.l.b16 %v730
        %v2858 = vunpack.c.h.b16 %v730
        %v2859 = vunpack.c.l.b16 %v731
        %v2860 = vunpack.c.h.b16 %v731
        %v2861 = vunpack.c.l.b16 %v732
        %v2862 = vunpack.c.h.b16 %v732
        %v2863 = vunpack.c.l.b16 %v733
        %v2864 = vunpack.c.h.b16 %v733
        %v2865 = vunpack.c.l.b16 %v734
        %v2866 = vunpack.c.h.b16 %v734
        %v2867 = vunpack.c.l.b16 %v735
        %v2868 = vunpack.c.h.b16 %v735
        %v2869 = vunpack.c.l.b16 %v736
        %v2870 = vunpack.c.h.b16 %v736
        %v2871 = vunpack.c.l.b16 %v737
        %v2872 = vunpack.c.h.b16 %v737
        %v2873 = vunpack.c.l.b16 %v738
        %v2874 = vunpack.c.h.b16 %v738
        %v2875 = vunpack.c.l.b16 %v739
        %v2876 = vunpack.c.h.b16 %v739
        %v2877 = vunpack.c.l.b16 %v740
        %v2878 = vunpack.c.h.b16 %v740
        %v2879 = vunpack.c.l.b16 %v741
        %v2880 = vunpack.c.h.b16 %v741
        %v2881 = vunpack.c.l.b16 %v742
        %v2882 = vunpack.c.h.b16 %v742
        %v2883 = vunpack.c.l.b16 %v743
        %v2884 = vunpack.c.h.b16 %v743
        %v2885 = vunpack.c.l.b16 %v744
        %v2886 = vunpack.c.h.b16 %v744
        %v2887 = vunpack.c.l.b16 %v745
        %v2888 = vunpack.c.h.b16 %v745
        %v2889 = vunpack.c.l.b16 %v746
        %v2890 = vunpack.c.h.b16 %v746
        %v2891 = vunpack.c.l.b16 %v747
        %v2892 = vunpack.c.h.b16 %v747
        %v2893 = vunpack.c.l.b16 %v748
        %v2894 = vunpack.c.h.b16 %v748
        %v2895 = vunpack.c.l.b16 %v749
        %v2896 = vunpack.c.h.b16 %v749
        %v2897 = vunpack.c.l.b16 %v750
        %v2898 = vunpack.c.h.b16 %v750
        %v2899 = vunpack.c.l.b16 %v751
        %v2900 = vunpack.c.h.b16 %v751
        %v2901 = vunpack.c.l.b16 %v752
        %v2902 = vunpack.c.h.b16 %v752
        %v2903 = vunpack.c.l.b16 %v753
        %v2904 = vunpack.c.h.b16 %v753
        %v2905 = vunpack.c.l.b16 %v754
        %v2906 = vunpack.c.h.b16 %v754
        %v2907 = vunpack.c.l.b16 %v755
        %v2908 = vunpack.c.h.b16 %v755
        %v2909 = vunpack.c.l.b16 %v756
        %v2910 = vunpack.c.h.b16 %v756
        %v2911 = vunpack.c.l.b16 %v757
        %v2912 = vunpack.c.h.b16 %v757
        %v2913 = vunpack.c.l.b16 %v758
        %v2914 = vunpack.c.h.b16 %v758
        %v2915 = vunpack.c.l.b16 %v759
        %v2916 = vunpack.c.h.b16 %v759
        %v2917 = vunpack.c.l.b16 %v760
        %v2918 = vunpack.c.h.b16 %v760
        %v2919 = vunpack.c.l.b16 %v761
        %v2920 = vunpack.c.h.b16 %v761
        %v2921 = vunpack.c.l.b16 %v762
        %v2922 = vunpack.c.h.b16 %v762
        %v2923 = vunpack.c.l.b16 %v763
        %v2924 = vunpack.c.h.b16 %v763
        %v2925 = vunpack.c.l.b16 %v764
        %v2926 = vunpack.c.h.b16 %v764
        %v2927 = vunpack.c.l.b16 %v765
        %v2928 = vunpack.c.h.b16 %v765
        %v2929 = vunpack.c.l.b16 %v766
        %v2930 = vunpack.c.h.b16 %v766
        %v2931 = vunpack.c.l.b16 %v767
        %v2932 = vunpack.c.h.b16 %v767
        %v2933 = vunpack.c.l.b16 %v768
        %v2934 = vunpack.c.h.b16 %v768
        %v2935 = vunpack.c.l.b16 %v769
        %v2936 = vunpack.c.h.b16 %v769
        %v2937 = vunpack.c.l.b16 %v770
        %v2938 = vunpack.c.h.b16 %v770
        %v2939 = vunpack.c.l.b16 %v771
        %v2940 = vunpack.c.h.b16 %v771
        %v2941 = vunpack.c.l.b16 %v772
        %v2942 = vunpack.c.h.b16 %v772
        %v2943 = vunpack.c.l.b16 %v773
        %v2944 = vunpack.c.h.b16 %v773
        %v2945 = vunpack.c.l.b16 %v774
        %v2946 = vunpack.c.h.b16 %v774
        %v2947 = vunpack.c.l.b16 %v775
        %v2948 = vunpack.c.h.b16 %v775
        %v2949 = vunpack.c.l.b16 %v776
        %v2950 = vunpack.c.h.b16 %v776
        %v2951 = vunpack.c.l.b16 %v777
        %v2952 = vunpack.c.h.b16 %v777
        %v2953 = vunpack.c.l.b16 %v778
        %v2954 = vunpack.c.h.b16 %v778
        %v2955 = vunpack.c.l.b16 %v779
        %v2956 = vunpack.c.h.b16 %v779
        %v2957 = vunpack.c.l.b16 %v780
        %v2958 = vunpack.c.h.b16 %v780
        %v2959 = vunpack.c.l.b16 %v781
        %v2960 = vunpack.c.h.b16 %v781
        %v2961 = vunpack.c.l.b16 %v782
        %v2962 = vunpack.c.h.b16 %v782
        %v2963 = vunpack.c.l.b16 %v783
        %v2964 = vunpack.c.h.b16 %v783
        %v2965 = vunpack.c.l.b16 %v784
        %v2966 = vunpack.c.h.b16 %v784
        %v2967 = vunpack.c.l.b16 %v785
        %v2968 = vunpack.c.h.b16 %v785
        %v2969 = vunpack.c.l.b16 %v786
        %v2970 = vunpack.c.h.b16 %v786
        %v2971 = vunpack.c.l.b16 %v787
        %v2972 = vunpack.c.h.b16 %v787
        %v2973 = vunpack.c.l.b16 %v788
        %v2974 = vunpack.c.h.b16 %v788
        %v2975 = vunpack.c.l.b16 %v789
        %v2976 = vunpack.c.h.b16 %v789
        %v2977 = vunpack.c.l.b16 %v790
        %v2978 = vunpack.c.h.b16 %v790
        %v2979 = vunpack.c.l.b16 %v791
        %v2980 = vunpack.c.h.b16 %v791
        %v2981 = vunpack.c.l.b16 %v792
        %v2982 = vunpack.c.h.b16 %v792
        %v2983 = vunpack.c.l.b16 %v793
        %v2984 = vunpack.c.h.b16 %v793
        %v2985 = vunpack.c.l.b16 %v794
        %v2986 = vunpack.c.h.b16 %v794
        %v2987 = vunpack.c.l.b16 %v795
        %v2988 = vunpack.c.h.b16 %v795
        %v2989 = vunpack.c.l.b16 %v796
        %v2990 = vunpack.c.h.b16 %v796
        %v2991 = vunpack.c.l.b16 %v797
        %v2992 = vunpack.c.h.b16 %v797
        %v2993 = vunpack.c.l.b16 %v798
        %v2994 = vunpack.c.h.b16 %v798
        %v2995 = vunpack.c.l.b16 %v799
        %v2996 = vunpack.c.h.b16 %v799
        %v2997 = vunpack.c.l.b16 %v800
        %v2998 = vunpack.c.h.b16 %v800
        %v2999 = vunpack.c.l.b16 %v801
        %v3000 = vunpack.c.h.b16 %v801
        %v3001 = vunpack.c.l.b16 %v802
        %v3002 = vunpack.c.h.b16 %v802
        %v3003 = vunpack.c.l.b16 %v803
        %v3004 = vunpack.c.h.b16 %v803
        %v3005 = vunpack.c.l.b16 %v804
        %v3006 = vunpack.c.h.b16 %v804
        %v3007 = vunpack.c.l.b16 %v805
        %v3008 = vunpack.c.h.b16 %v805
        %v3009 = vunpack.c.l.b16 %v806
        %v3010 = vunpack.c.h.b16 %v806
        %v3011 = vunpack.c.l.b16 %v807
        %v3012 = vunpack.c.h.b16 %v807
        %v3013 = vunpack.c.l.b16 %v808
        %v3014 = vunpack.c.h.b16 %v808
        %v3015 = vunpack.c.l.b16 %v809
        %v3016 = vunpack.c.h.b16 %v809
        %v3017 = vunpack.c.l.b16 %v810
        %v3018 = vunpack.c.h.b16 %v810
        %v3019 = vunpack.c.l.b16 %v811
        %v3020 = vunpack.c.h.b16 %v811
        %v3021 = vunpack.c.l.b16 %v812
        %v3022 = vunpack.c.h.b16 %v812
        %v3023 = vunpack.c.l.b16 %v813
        %v3024 = vunpack.c.h.b16 %v813
        %v3025 = vunpack.c.l.b16 %v814
        %v3026 = vunpack.c.h.b16 %v814
        %v3027 = vunpack.c.l.b16 %v815
        %v3028 = vunpack.c.h.b16 %v815
        %v3029 = vunpack.c.l.b16 %v816
        %v3030 = vunpack.c.h.b16 %v816
        %v3031 = vunpack.c.l.b16 %v817
        %v3032 = vunpack.c.h.b16 %v817
        %v3033 = vunpack.c.l.b16 %v818
        %v3034 = vunpack.c.h.b16 %v818
        %v3035 = vunpack.c.l.b16 %v819
        %v3036 = vunpack.c.h.b16 %v819
        %v3037 = vunpack.c.l.b16 %v820
        %v3038 = vunpack.c.h.b16 %v820
        %v3039 = vunpack.c.l.b16 %v821
        %v3040 = vunpack.c.h.b16 %v821
        %v3041 = vunpack.c.l.b16 %v822
        %v3042 = vunpack.c.h.b16 %v822
        %v3043 = vunpack.c.l.b16 %v823
        %v3044 = vunpack.c.h.b16 %v823
        %v3045 = vunpack.c.l.b16 %v824
        %v3046 = vunpack.c.h.b16 %v824
        %v3047 = vunpack.c.l.b16 %v825
        %v3048 = vunpack.c.h.b16 %v825
        %v3049 = vunpack.c.l.b16 %v826
        %v3050 = vunpack.c.h.b16 %v826
        %v3051 = vunpack.c.l.b16 %v827
        %v3052 = vunpack.c.h.b16 %v827
        %v3053 = vunpack.c.l.b16 %v828
        %v3054 = vunpack.c.h.b16 %v828
        %v3055 = vunpack.c.l.b16 %v829
        %v3056 = vunpack.c.h.b16 %v829
        %v3057 = vunpack.c.l.b16 %v830
        %v3058 = vunpack.c.h.b16 %v830
        %v3059 = vunpack.c.l.b16 %v831
        %v3060 = vunpack.c.h.b16 %v831
        %v3061 = vunpack.c.l.b16 %v832
        %v3062 = vunpack.c.h.b16 %v832
        %v3063 = vunpack.c.l.b16 %v833
        %v3064 = vunpack.c.h.b16 %v833
        %v3065 = vunpack.c.l.b16 %v834
        %v3066 = vunpack.c.h.b16 %v834
        %v3067 = vunpack.c.l.b16 %v835
        %v3068 = vunpack.c.h.b16 %v835
        %v3069 = vunpack.c.l.b16 %v836
        %v3070 = vunpack.c.h.b16 %v836
        %v3071 = vunpack.c.l.b16 %v837
        %v3072 = vunpack.c.h.b16 %v837
        %v3073 = vunpack.c.l.b16 %v838
        %v3074 = vunpack.c.h.b16 %v838
        %v3075 = vunpack.c.l.b16 %v839
        %v3076 = vunpack.c.h.b16 %v839
        %v3077 = vunpack.c.l.b16 %v840
        %v3078 = vunpack.c.h.b16 %v840
        %v3079 = vunpack.c.l.b16 %v841
        %v3080 = vunpack.c.h.b16 %v841
        %v3081 = vunpack.c.l.b16 %v842
        %v3082 = vunpack.c.h.b16 %v842
        %v3083 = vunpack.c.l.b16 %v843
        %v3084 = vunpack.c.h.b16 %v843
        %v3085 = vunpack.c.l.b16 %v844
        %v3086 = vunpack.c.h.b16 %v844
        %v3087 = vunpack.c.l.b16 %v845
        %v3088 = vunpack.c.h.b16 %v845
        %v3089 = vunpack.c.l.b16 %v846
        %v3090 = vunpack.c.h.b16 %v846
        %v3091 = vunpack.c.l.b16 %v847
        %v3092 = vunpack.c.h.b16 %v847
        %v3093 = vunpack.c.l.b16 %v848
        %v3094 = vunpack.c.h.b16 %v848
        %v3095 = vunpack.c.l.b16 %v849
        %v3096 = vunpack.c.h.b16 %v849
        %v3097 = vunpack.c.l.b16 %v850
        %v3098 = vunpack.c.h.b16 %v850
        %v3099 = vunpack.c.l.b16 %v851
        %v3100 = vunpack.c.h.b16 %v851
        %v3101 = vunpack.c.l.b16 %v852
        %v3102 = vunpack.c.h.b16 %v852
        %v3103 = vunpack.c.l.b16 %v853
        %v3104 = vunpack.c.h.b16 %v853
        %v3105 = vunpack.c.l.b16 %v854
        %v3106 = vunpack.c.h.b16 %v854
        %v3107 = vunpack.c.l.b16 %v855
        %v3108 = vunpack.c.h.b16 %v855
        %v3109 = vunpack.c.l.b16 %v856
        %v3110 = vunpack.c.h.b16 %v856
        %v3111 = vunpack.c.l.b16 %v857
        %v3112 = vunpack.c.h.b16 %v857
        %v3113 = vunpack.c.l.b16 %v858
        %v3114 = vunpack.c.h.b16 %v858
        %v3115 = vunpack.c.l.b16 %v859
        %v3116 = vunpack.c.h.b16 %v859
        %v3117 = vunpack.c.l.b16 %v860
        %v3118 = vunpack.c.h.b16 %v860
        %v3119 = vunpack.c.l.b16 %v861
        %v3120 = vunpack.c.h.b16 %v861
        %v3121 = vunpack.c.l.b16 %v862
        %v3122 = vunpack.c.h.b16 %v862
        %v3123 = vunpack.c.l.b16 %v863
        %v3124 = vunpack.c.h.b16 %v863
        %v3125 = vunpack.c.l.b16 %v864
        %v3126 = vunpack.c.h.b16 %v864
        %v3127 = vunpack.c.l.b16 %v865
        %v3128 = vunpack.c.h.b16 %v865
        %v3129 = vunpack.c.l.b16 %v866
        %v3130 = vunpack.c.h.b16 %v866
        %v3131 = vunpack.c.l.b16 %v867
        %v3132 = vunpack.c.h.b16 %v867
        %v3133 = vunpack.c.l.b16 %v868
        %v3134 = vunpack.c.h.b16 %v868
        %v3135 = vunpack.c.l.b16 %v869
        %v3136 = vunpack.c.h.b16 %v869
        %v3137 = vunpack.c.l.b16 %v870
        %v3138 = vunpack.c.h.b16 %v870
        %v3139 = vunpack.c.l.b16 %v871
        %v3140 = vunpack.c.h.b16 %v871
        %v3141 = vunpack.c.l.b16 %v872
        %v3142 = vunpack.c.h.b16 %v872
        %v3143 = vunpack.c.l.b16 %v873
        %v3144 = vunpack.c.h.b16 %v873
        %v3145 = vunpack.c.l.b16 %v874
        %v3146 = vunpack.c.h.b16 %v874
        %v3147 = vunpack.c.l.b16 %v875
        %v3148 = vunpack.c.h.b16 %v875
        %v3149 = vunpack.c.l.b16 %v876
        %v3150 = vunpack.c.h.b16 %v876
        %v3151 = vunpack.c.l.b16 %v877
        %v3152 = vunpack.c.h.b16 %v877
        %v3153 = vunpack.c.l.b16 %v878
        %v3154 = vunpack.c.h.b16 %v878
        %v3155 = vunpack.c.l.b16 %v879
        %v3156 = vunpack.c.h.b16 %v879
        %v3157 = vunpack.c.l.b16 %v880
        %v3158 = vunpack.c.h.b16 %v880
        %v3159 = vunpack.c.l.b16 %v881
        %v3160 = vunpack.c.h.b16 %v881
        %v3161 = vunpack.c.l.b16 %v882
        %v3162 = vunpack.c.h.b16 %v882
        %v3163 = vunpack.c.l.b16 %v883
        %v3164 = vunpack.c.h.b16 %v883
        %v3165 = vunpack.c.l.b16 %v884
        %v3166 = vunpack.c.h.b16 %v884
        %v3167 = vunpack.c.l.b16 %v885
        %v3168 = vunpack.c.h.b16 %v885
        %v3169 = vunpack.c.l.b16 %v886
        %v3170 = vunpack.c.h.b16 %v886
        %v3171 = vunpack.c.l.b16 %v887
        %v3172 = vunpack.c.h.b16 %v887
        %v3173 = vunpack.c.l.b16 %v888
        %v3174 = vunpack.c.h.b16 %v888
        %v3175 = vunpack.c.l.b16 %v889
        %v3176 = vunpack.c.h.b16 %v889
        %v3177 = vunpack.c.l.b16 %v890
        %v3178 = vunpack.c.h.b16 %v890
        %v3179 = vunpack.c.l.b16 %v891
        %v3180 = vunpack.c.h.b16 %v891
        %v3181 = vunpack.c.l.b16 %v892
        %v3182 = vunpack.c.h.b16 %v892
        %v3183 = vunpack.c.l.b16 %v893
        %v3184 = vunpack.c.h.b16 %v893
        %v3185 = vunpack.c.l.b16 %v894
        %v3186 = vunpack.c.h.b16 %v894
        %v3187 = vunpack.c.l.b16 %v895
        %v3188 = vunpack.c.h.b16 %v895
        %v3189 = vunpack.c.l.b16 %v896
        %v3190 = vunpack.c.h.b16 %v896
        %v3191 = vunpack.c.l.b16 %v897
        %v3192 = vunpack.c.h.b16 %v897
        %v3193 = vunpack.c.l.b16 %v898
        %v3194 = vunpack.c.h.b16 %v898
        %v3195 = vunpack.c.l.b16 %v899
        %v3196 = vunpack.c.h.b16 %v899
        %v3197 = vunpack.c.l.b16 %v900
        %v3198 = vunpack.c.h.b16 %v900
        %v3199 = vunpack.c.l.b16 %v901
        %v3200 = vunpack.c.h.b16 %v901
        %v3201 = vunpack.c.l.b16 %v902
        %v3202 = vunpack.c.h.b16 %v902
        %v3203 = vunpack.c.l.b16 %v903
        %v3204 = vunpack.c.h.b16 %v903
        %v3205 = vunpack.c.l.b16 %v904
        %v3206 = vunpack.c.h.b16 %v904
        %v3207 = vunpack.c.l.b16 %v905
        %v3208 = vunpack.c.h.b16 %v905
        %v3209 = vunpack.c.l.b16 %v906
        %v3210 = vunpack.c.h.b16 %v906
        %v3211 = vunpack.c.l.b16 %v907
        %v3212 = vunpack.c.h.b16 %v907
        %v3213 = vunpack.c.l.b16 %v908
        %v3214 = vunpack.c.h.b16 %v908
        %v3215 = vunpack.c.l.b16 %v909
        %v3216 = vunpack.c.h.b16 %v909
        %v3217 = vunpack.c.l.b16 %v910
        %v3218 = vunpack.c.h.b16 %v910
        %v3219 = vunpack.c.l.b16 %v911
        %v3220 = vunpack.c.h.b16 %v911
        %v3221 = vunpack.c.l.b16 %v912
        %v3222 = vunpack.c.h.b16 %v912
        %v3223 = vunpack.c.l.b16 %v913
        %v3224 = vunpack.c.h.b16 %v913
        %v3225 = vunpack.c.l.b16 %v914
        %v3226 = vunpack.c.h.b16 %v914
        %v3227 = vunpack.c.l.b16 %v915
        %v3228 = vunpack.c.h.b16 %v915
        %v3229 = vunpack.c.l.b16 %v916
        %v3230 = vunpack.c.h.b16 %v916
        %v3231 = vunpack.c.l.b16 %v917
        %v3232 = vunpack.c.h.b16 %v917
        %v3233 = vunpack.c.l.b16 %v918
        %v3234 = vunpack.c.h.b16 %v918
        %v3235 = vunpack.c.l.b16 %v919
        %v3236 = vunpack.c.h.b16 %v919
        %v3237 = vunpack.c.l.b16 %v920
        %v3238 = vunpack.c.h.b16 %v920
        %v3239 = vunpack.c.l.b16 %v921
        %v3240 = vunpack.c.h.b16 %v921
        %v3241 = vunpack.c.l.b16 %v922
        %v3242 = vunpack.c.h.b16 %v922
        %v3243 = vunpack.c.l.b16 %v923
        %v3244 = vunpack.c.h.b16 %v923
        %v3245 = vunpack.c.l.b16 %v924
        %v3246 = vunpack.c.h.b16 %v924
        %v3247 = vunpack.c.l.b16 %v925
        %v3248 = vunpack.c.h.b16 %v925
        %v3249 = vunpack.c.l.b16 %v926
        %v3250 = vunpack.c.h.b16 %v926
        %v3251 = vunpack.c.l.b16 %v927
        %v3252 = vunpack.c.h.b16 %v927
        %v3253 = vunpack.c.l.b16 %v928
        %v3254 = vunpack.c.h.b16 %v928
        %v3255 = vunpack.c.l.b16 %v929
        %v3256 = vunpack.c.h.b16 %v929
        %v3257 = vunpack.c.l.b16 %v930
        %v3258 = vunpack.c.h.b16 %v930
        %v3259 = vunpack.c.l.b16 %v931
        %v3260 = vunpack.c.h.b16 %v931
        %v3261 = vunpack.c.l.b16 %v932
        %v3262 = vunpack.c.h.b16 %v932
        %v3263 = vunpack.c.l.b16 %v933
        %v3264 = vunpack.c.h.b16 %v933
        %v3265 = vunpack.c.l.b16 %v934
        %v3266 = vunpack.c.h.b16 %v934
        %v3267 = vunpack.c.l.b16 %v935
        %v3268 = vunpack.c.h.b16 %v935
        %v3269 = vunpack.c.l.b16 %v936
        %v3270 = vunpack.c.h.b16 %v936
        %v3271 = vunpack.c.l.b16 %v937
        %v3272 = vunpack.c.h.b16 %v937
        %v3273 = vunpack.c.l.b16 %v938
        %v3274 = vunpack.c.h.b16 %v938
        %v3275 = vunpack.c.l.b16 %v939
        %v3276 = vunpack.c.h.b16 %v939
        %v3277 = vunpack.c.l.b16 %v940
        %v3278 = vunpack.c.h.b16 %v940
        %v3279 = vunpack.c.l.b16 %v941
        %v3280 = vunpack.c.h.b16 %v941
        %v3281 = vunpack.c.l.b16 %v942
        %v3282 = vunpack.c.h.b16 %v942
        %v3283 = vunpack.c.l.b16 %v943
        %v3284 = vunpack.c.h.b16 %v943
        %v3285 = vunpack.c.l.b16 %v944
        %v3286 = vunpack.c.h.b16 %v944
        %v3287 = vunpack.c.l.b16 %v945
        %v3288 = vunpack.c.h.b16 %v945
        %v3289 = vunpack.c.l.b16 %v946
        %v3290 = vunpack.c.h.b16 %v946
        %v3291 = vunpack.c.l.b16 %v947
        %v3292 = vunpack.c.h.b16 %v947
        %v3293 = vunpack.c.l.b16 %v948
        %v3294 = vunpack.c.h.b16 %v948
        %v3295 = vunpack.c.l.b16 %v949
        %v3296 = vunpack.c.h.b16 %v949
        %v3297 = vunpack.c.l.b16 %v950
        %v3298 = vunpack.c.h.b16 %v950
        %v3299 = vunpack.c.l.b16 %v951
        %v3300 = vunpack.c.h.b16 %v951
        %v3301 = vunpack.c.l.b16 %v952
        %v3302 = vunpack.c.h.b16 %v952
        %v3303 = vunpack.c.l.b16 %v953
        %v3304 = vunpack.c.h.b16 %v953
        %v3305 = vunpack.c.l.b16 %v954
        %v3306 = vunpack.c.h.b16 %v954
        %v3307 = vunpack.c.l.b16 %v955
        %v3308 = vunpack.c.h.b16 %v955
        %v3309 = vunpack.c.l.b16 %v956
        %v3310 = vunpack.c.h.b16 %v956
        %v3311 = vunpack.c.l.b16 %v957
        %v3312 = vunpack.c.h.b16 %v957
        %v3313 = vunpack.c.l.b16 %v958
        %v3314 = vunpack.c.h.b16 %v958
        %v3315 = vunpack.c.l.b16 %v959
        %v3316 = vunpack.c.h.b16 %v959
        %v3317 = vunpack.c.l.b16 %v960
        %v3318 = vunpack.c.h.b16 %v960
        %v3319 = vunpack.c.l.b16 %v961
        %v3320 = vunpack.c.h.b16 %v961
        %v3321 = vunpack.c.l.b16 %v962
        %v3322 = vunpack.c.h.b16 %v962
        %v3323 = vunpack.c.l.b16 %v963
        %v3324 = vunpack.c.h.b16 %v963
        %v3325 = vunpack.c.l.b16 %v964
        %v3326 = vunpack.c.h.b16 %v964
        %v3327 = vunpack.c.l.b16 %v965
        %v3328 = vunpack.c.h.b16 %v965
        %v3329 = vunpack.c.l.b16 %v966
        %v3330 = vunpack.c.h.b16 %v966
        %v3331 = vunpack.c.l.b16 %v967
        %v3332 = vunpack.c.h.b16 %v967
        %v3333 = vunpack.c.l.b16 %v968
        %v3334 = vunpack.c.h.b16 %v968
        %v3335 = vunpack.c.l.b16 %v969
        %v3336 = vunpack.c.h.b16 %v969
        %v3337 = vunpack.c.l.b16 %v970
        %v3338 = vunpack.c.h.b16 %v970
        %v3339 = vunpack.c.l.b16 %v971
        %v3340 = vunpack.c.h.b16 %v971
        %v3341 = vunpack.c.l.b16 %v972
        %v3342 = vunpack.c.h.b16 %v972
        %v3343 = vunpack.c.l.b16 %v973
        %v3344 = vunpack.c.h.b16 %v973
        %v3345 = vunpack.c.l.b16 %v974
        %v3346 = vunpack.c.h.b16 %v974
        %v3347 = vunpack.c.l.b16 %v975
        %v3348 = vunpack.c.h.b16 %v975
        %v3349 = vunpack.c.l.b16 %v976
        %v3350 = vunpack.c.h.b16 %v976
        %v3351 = vunpack.c.l.b16 %v977
        %v3352 = vunpack.c.h.b16 %v977
        %v3353 = vunpack.c.l.b16 %v978
        %v3354 = vunpack.c.h.b16 %v978
        %v3355 = vunpack.c.l.b16 %v979
        %v3356 = vunpack.c.h.b16 %v979
        %v3357 = vunpack.c.l.b16 %v980
        %v3358 = vunpack.c.h.b16 %v980
        %v3359 = vunpack.c.l.b16 %v981
        %v3360 = vunpack.c.h.b16 %v981
        %v3361 = vunpack.c.l.b16 %v982
        %v3362 = vunpack.c.h.b16 %v982
        %v3363 = vunpack.c.l.b16 %v983
        %v3364 = vunpack.c.h.b16 %v983
        %v3365 = vunpack.c.l.b16 %v984
        %v3366 = vunpack.c.h.b16 %v984
        %v3367 = vunpack.c.l.b16 %v985
        %v3368 = vunpack.c.h.b16 %v985
        %v3369 = vunpack.c.l.b16 %v986
        %v3370 = vunpack.c.h.b16 %v986
        %v3371 = vunpack.c.l.b16 %v987
        %v3372 = vunpack.c.h.b16 %v987
        %v3373 = vunpack.c.l.b16 %v988
        %v3374 = vunpack.c.h.b16 %v988
        %v3375 = vunpack.c.l.b16 %v989
        %v3376 = vunpack.c.h.b16 %v989
        %v3377 = vunpack.c.l.b16 %v990
        %v3378 = vunpack.c.h.b16 %v990
        %v3379 = vunpack.c.l.b16 %v991
        %v3380 = vunpack.c.h.b16 %v991
        %v3381 = vunpack.c.l.b16 %v992
        %v3382 = vunpack.c.h.b16 %v992
        %v3383 = vunpack.c.l.b16 %v993
        %v3384 = vunpack.c.h.b16 %v993
        %v3385 = vunpack.c.l.b16 %v994
        %v3386 = vunpack.c.h.b16 %v994
        %v3387 = vunpack.c.l.b16 %v995
        %v3388 = vunpack.c.h.b16 %v995
        %v3389 = vunpack.c.l.b16 %v996
        %v3390 = vunpack.c.h.b16 %v996
        %v3391 = vunpack.c.l.b16 %v997
        %v3392 = vunpack.c.h.b16 %v997
        %v3393 = vunpack.c.l.b16 %v998
        %v3394 = vunpack.c.h.b16 %v998
        %v3395 = vunpack.c.l.b16 %v999
        %v3396 = vunpack.c.h.b16 %v999
        %v3397 = vunpack.c.l.b16 %v1000
        %v3398 = vunpack.c.h.b16 %v1000
        %v3399 = vunpack.c.l.b16 %v1001
        %v3400 = vunpack.c.h.b16 %v1001
        %v3401 = vunpack.c.l.b16 %v1002
        %v3402 = vunpack.c.h.b16 %v1002
        %v3403 = vunpack.c.l.b16 %v1003
        %v3404 = vunpack.c.h.b16 %v1003
        %v3405 = vunpack.c.l.b16 %v1004
        %v3406 = vunpack.c.h.b16 %v1004
        %v3407 = vunpack.c.l.b16 %v1005
        %v3408 = vunpack.c.h.b16 %v1005
        %v3409 = vunpack.c.l.b16 %v1006
        %v3410 = vunpack.c.h.b16 %v1006
        %v3411 = vunpack.c.l.b16 %v1007
        %v3412 = vunpack.c.h.b16 %v1007
        %v3413 = vunpack.c.l.b16 %v1008
        %v3414 = vunpack.c.h.b16 %v1008
        %v3415 = vunpack.c.l.b16 %v1009
        %v3416 = vunpack.c.h.b16 %v1009
        %v3417 = vunpack.c.l.b16 %v1010
        %v3418 = vunpack.c.h.b16 %v1010
        %v3419 = vunpack.c.l.b16 %v1011
        %v3420 = vunpack.c.h.b16 %v1011
        %v3421 = vunpack.c.l.b16 %v1012
        %v3422 = vunpack.c.h.b16 %v1012
        %v3423 = vunpack.c.l.b16 %v1013
        %v3424 = vunpack.c.h.b16 %v1013
        %v3425 = vunpack.c.l.b16 %v1014
        %v3426 = vunpack.c.h.b16 %v1014
        %v3427 = vunpack.c.l.b16 %v1015
        %v3428 = vunpack.c.h.b16 %v1015
        %v3429 = vunpack.c.l.b16 %v1016
        %v3430 = vunpack.c.h.b16 %v1016
        %v3431 = vunpack.c.l.b16 %v1017
        %v3432 = vunpack.c.h.b16 %v1017
        %v3433 = vunpack.c.l.b16 %v1018
        %v3434 = vunpack.c.h.b16 %v1018
        %v3435 = vunpack.c.l.b16 %v1019
        %v3436 = vunpack.c.h.b16 %v1019
        %v3437 = vunpack.c.l.b16 %v1020
        %v3438 = vunpack.c.h.b16 %v1020
        %v3439 = vunpack.c.l.b16 %v1021
        %v3440 = vunpack.c.h.b16 %v1021
        %v3441 = vunpack.c.l.b16 %v1022
        %v3442 = vunpack.c.h.b16 %v1022
        %v3443 = vunpack.c.l.b16 %v1023
        %v3444 = vunpack.c.h.b16 %v1023
        %v3445 = vunpack.c.l.b16 %v1024
        %v3446 = vunpack.c.h.b16 %v1024
        %v3447 = vunpack.c.l.b16 %v1025
        %v3448 = vunpack.c.h.b16 %v1025
        %v3449 = vunpack.c.l.b16 %v1026
        %v3450 = vunpack.c.h.b16 %v1026
        %v3451 = vunpack.c.l.b16 %v1027
        %v3452 = vunpack.c.h.b16 %v1027
        %v3453 = vunpack.c.l.b16 %v1028
        %v3454 = vunpack.c.h.b16 %v1028
        %v3455 = vunpack.c.l.b16 %v1029
        %v3456 = vunpack.c.h.b16 %v1029
        %v3457 = vunpack.c.l.b16 %v1030
        %v3458 = vunpack.c.h.b16 %v1030
        %v3459 = vunpack.c.l.b16 %v1031
        %v3460 = vunpack.c.h.b16 %v1031
        %v3461 = vunpack.c.l.b16 %v1032
        %v3462 = vunpack.c.h.b16 %v1032
        %v3463 = vunpack.c.l.b16 %v1033
        %v3464 = vunpack.c.h.b16 %v1033
        %v3465 = vunpack.c.l.b16 %v1034
        %v3466 = vunpack.c.h.b16 %v1034
        %v3467 = vunpack.c.l.b16 %v1035
        %v3468 = vunpack.c.h.b16 %v1035
        %v3469 = vunpack.c.l.b16 %v1036
        %v3470 = vunpack.c.h.b16 %v1036
        %v3471 = vunpack.c.l.b16 %v1037
        %v3472 = vunpack.c.h.b16 %v1037
        %v3473 = vunpack.c.l.b16 %v1038
        %v3474 = vunpack.c.h.b16 %v1038
        %v3475 = vunpack.c.l.b16 %v1039
        %v3476 = vunpack.c.h.b16 %v1039
        %v3477 = vunpack.c.l.b16 %v1040
        %v3478 = vunpack.c.h.b16 %v1040
        %v3479 = vunpack.c.l.b16 %v1041
        %v3480 = vunpack.c.h.b16 %v1041
        %v3481 = vunpack.c.l.b16 %v1042
        %v3482 = vunpack.c.h.b16 %v1042
        %v3483 = vunpack.c.l.b16 %v1043
        %v3484 = vunpack.c.h.b16 %v1043
        %v3485 = vunpack.c.l.b16 %v1044
        %v3486 = vunpack.c.h.b16 %v1044
        %v3487 = vunpack.c.l.b16 %v1045
        %v3488 = vunpack.c.h.b16 %v1045
        %v3489 = vunpack.c.l.b16 %v1046
        %v3490 = vunpack.c.h.b16 %v1046
        %v3491 = vunpack.c.l.b16 %v1047
        %v3492 = vunpack.c.h.b16 %v1047
        %v3493 = vunpack.c.l.b16 %v1048
        %v3494 = vunpack.c.h.b16 %v1048
        %v3495 = vunpack.c.l.b16 %v1049
        %v3496 = vunpack.c.h.b16 %v1049
        %v3497 = vunpack.c.l.b16 %v1050
        %v3498 = vunpack.c.h.b16 %v1050
        %v3499 = vunpack.c.l.b16 %v1051
        %v3500 = vunpack.c.h.b16 %v1051
        %v3501 = vunpack.c.l.b16 %v1052
        %v3502 = vunpack.c.h.b16 %v1052
        %v3503 = vunpack.c.l.b16 %v1053
        %v3504 = vunpack.c.h.b16 %v1053
        %v3505 = vunpack.c.l.b16 %v1054
        %v3506 = vunpack.c.h.b16 %v1054
        %v3507 = vunpack.c.l.b16 %v1055
        %v3508 = vunpack.c.h.b16 %v1055
        %v3509 = vunpack.c.l.b16 %v1056
        %v3510 = vunpack.c.h.b16 %v1056
        %v3511 = vunpack.c.l.b16 %v1057
        %v3512 = vunpack.c.h.b16 %v1057
        %v3513 = vunpack.c.l.b16 %v1058
        %v3514 = vunpack.c.h.b16 %v1058
        %v3515 = vunpack.c.l.b16 %v1059
        %v3516 = vunpack.c.h.b16 %v1059
        %v3517 = vunpack.c.l.b16 %v1060
        %v3518 = vunpack.c.h.b16 %v1060
        %v3519 = vunpack.c.l.b16 %v1061
        %v3520 = vunpack.c.h.b16 %v1061
        %v3521 = vunpack.c.l.b16 %v1062
        %v3522 = vunpack.c.h.b16 %v1062
        %v3523 = vunpack.c.l.b16 %v1063
        %v3524 = vunpack.c.h.b16 %v1063
        %v3525 = vunpack.c.l.b16 %v1064
        %v3526 = vunpack.c.h.b16 %v1064
        %v3527 = vunpack.c.l.b16 %v1065
        %v3528 = vunpack.c.h.b16 %v1065
        %v3529 = vunpack.c.l.b16 %v1066
        %v3530 = vunpack.c.h.b16 %v1066
        %v3531 = vunpack.c.l.b16 %v1067
        %v3532 = vunpack.c.h.b16 %v1067
        %v3533 = vunpack.c.l.b16 %v1068
        %v3534 = vunpack.c.h.b16 %v1068
        %v3535 = vunpack.c.l.b16 %v1069
        %v3536 = vunpack.c.h.b16 %v1069
        %v3537 = vunpack.c.l.b16 %v1070
        %v3538 = vunpack.c.h.b16 %v1070
        %v3539 = vunpack.c.l.b16 %v1071
        %v3540 = vunpack.c.h.b16 %v1071
        %v3541 = vunpack.c.l.b16 %v1072
        %v3542 = vunpack.c.h.b16 %v1072
        %v3543 = vunpack.c.l.b16 %v1073
        %v3544 = vunpack.c.h.b16 %v1073
        %v3545 = vunpack.c.l.b16 %v1074
        %v3546 = vunpack.c.h.b16 %v1074
        %v3547 = vunpack.c.l.b16 %v1075
        %v3548 = vunpack.c.h.b16 %v1075
        %v3549 = vunpack.c.l.b16 %v1076
        %v3550 = vunpack.c.h.b16 %v1076
        %v3551 = vunpack.c.l.b16 %v1077
        %v3552 = vunpack.c.h.b16 %v1077
        %v3553 = vunpack.c.l.b16 %v1078
        %v3554 = vunpack.c.h.b16 %v1078
        %v3555 = vunpack.c.l.b16 %v1079
        %v3556 = vunpack.c.h.b16 %v1079
        %v3557 = vunpack.c.l.b16 %v1080
        %v3558 = vunpack.c.h.b16 %v1080
        %v3559 = vunpack.c.l.b16 %v1081
        %v3560 = vunpack.c.h.b16 %v1081
        %v3561 = vunpack.c.l.b16 %v1082
        %v3562 = vunpack.c.h.b16 %v1082
        %v3563 = vunpack.c.l.b16 %v1083
        %v3564 = vunpack.c.h.b16 %v1083
        %v3565 = vunpack.c.l.b16 %v1084
        %v3566 = vunpack.c.h.b16 %v1084
        %v3567 = vunpack.c.l.b16 %v1085
        %v3568 = vunpack.c.h.b16 %v1085
        %v3569 = vunpack.c.l.b16 %v1086
        %v3570 = vunpack.c.h.b16 %v1086
        %v3571 = vunpack.c.l.b16 %v1087
        %v3572 = vunpack.c.h.b16 %v1087
        %v3573 = vunpack.c.l.b16 %v1088
        %v3574 = vunpack.c.h.b16 %v1088
        %v3575 = vunpack.c.l.b16 %v1089
        %v3576 = vunpack.c.h.b16 %v1089
        %v3577 = vunpack.c.l.b16 %v1090
        %v3578 = vunpack.c.h.b16 %v1090
        %v3579 = vunpack.c.l.b16 %v1091
        %v3580 = vunpack.c.h.b16 %v1091
        %v3581 = vunpack.c.l.b16 %v1092
        %v3582 = vunpack.c.h.b16 %v1092
        %v3583 = vunpack.c.l.b16 %v1093
        %v3584 = vunpack.c.h.b16 %v1093
        %v3585 = vunpack.c.l.b16 %v1094
        %v3586 = vunpack.c.h.b16 %v1094
        %v3587 = vunpack.c.l.b16 %v1095
        %v3588 = vunpack.c.h.b16 %v1095
        %v3589 = vunpack.c.l.b16 %v1096
        %v3590 = vunpack.c.h.b16 %v1096
        %v3591 = vunpack.c.l.b16 %v1097
        %v3592 = vunpack.c.h.b16 %v1097
        %v3593 = vunpack.c.l.b16 %v1098
        %v3594 = vunpack.c.h.b16 %v1098
        %v3595 = vunpack.c.l.b16 %v1099
        %v3596 = vunpack.c.h.b16 %v1099
        %v3597 = vunpack.c.l.b16 %v1100
        %v3598 = vunpack.c.h.b16 %v1100
        %v3599 = vunpack.c.l.b16 %v1101
        %v3600 = vunpack.c.h.b16 %v1101
        %v3601 = vunpack.c.l.b16 %v1102
        %v3602 = vunpack.c.h.b16 %v1102
        %v3603 = vunpack.c.l.b16 %v1103
        %v3604 = vunpack.c.h.b16 %v1103
        %v3605 = vunpack.c.l.b16 %v1104
        %v3606 = vunpack.c.h.b16 %v1104
        %v3607 = vunpack.c.l.b16 %v1105
        %v3608 = vunpack.c.h.b16 %v1105
        %v3609 = vunpack.c.l.b16 %v1106
        %v3610 = vunpack.c.h.b16 %v1106
        %v3611 = vunpack.c.l.b16 %v1107
        %v3612 = vunpack.c.h.b16 %v1107
        %v3613 = vunpack.c.l.b16 %v1108
        %v3614 = vunpack.c.h.b16 %v1108
        %v3615 = vunpack.c.l.b16 %v1109
        %v3616 = vunpack.c.h.b16 %v1109
        %v3617 = vunpack.c.l.b16 %v1110
        %v3618 = vunpack.c.h.b16 %v1110
        %v3619 = vunpack.c.l.b16 %v1111
        %v3620 = vunpack.c.h.b16 %v1111
        %v3621 = vunpack.c.l.b16 %v1112
        %v3622 = vunpack.c.h.b16 %v1112
        %v3623 = vunpack.c.l.b16 %v1113
        %v3624 = vunpack.c.h.b16 %v1113
        %v3625 = vunpack.c.l.b16 %v1114
        %v3626 = vunpack.c.h.b16 %v1114
        %v3627 = vunpack.c.l.b16 %v1115
        %v3628 = vunpack.c.h.b16 %v1115
        %v3629 = vunpack.c.l.b16 %v1116
        %v3630 = vunpack.c.h.b16 %v1116
        %v3631 = vunpack.c.l.b16 %v1117
        %v3632 = vunpack.c.h.b16 %v1117
        %v3633 = vunpack.c.l.b16 %v1118
        %v3634 = vunpack.c.h.b16 %v1118
        %v3635 = vunpack.c.l.b16 %v1119
        %v3636 = vunpack.c.h.b16 %v1119
        %v3637 = vunpack.c.l.b16 %v1120
        %v3638 = vunpack.c.h.b16 %v1120
        %v3639 = vunpack.c.l.b16 %v1121
        %v3640 = vunpack.c.h.b16 %v1121
        %v3641 = vunpack.c.l.b16 %v1122
        %v3642 = vunpack.c.h.b16 %v1122
        %v3643 = vunpack.c.l.b16 %v1123
        %v3644 = vunpack.c.h.b16 %v1123
        %v3645 = vunpack.c.l.b16 %v1124
        %v3646 = vunpack.c.h.b16 %v1124
        %v3647 = vunpack.c.l.b16 %v1125
        %v3648 = vunpack.c.h.b16 %v1125
        %v3649 = vunpack.c.l.b16 %v1126
        %v3650 = vunpack.c.h.b16 %v1126
        %v3651 = vunpack.c.l.b16 %v1127
        %v3652 = vunpack.c.h.b16 %v1127
        %v3653 = vunpack.c.l.b16 %v1128
        %v3654 = vunpack.c.h.b16 %v1128
        %v3655 = vunpack.c.l.b16 %v1129
        %v3656 = vunpack.c.h.b16 %v1129
        %v3657 = vunpack.c.l.b16 %v1130
        %v3658 = vunpack.c.h.b16 %v1130
        %v3659 = vunpack.c.l.b16 %v1131
        %v3660 = vunpack.c.h.b16 %v1131
        %v3661 = vunpack.c.l.b16 %v1132
        %v3662 = vunpack.c.h.b16 %v1132
        %v3663 = vunpack.c.l.b16 %v1133
        %v3664 = vunpack.c.h.b16 %v1133
        %v3665 = vunpack.c.l.b16 %v1134
        %v3666 = vunpack.c.h.b16 %v1134
        %v3667 = vunpack.c.l.b16 %v1135
        %v3668 = vunpack.c.h.b16 %v1135
        %v3669 = vunpack.c.l.b16 %v1136
        %v3670 = vunpack.c.h.b16 %v1136
        %v3671 = vunpack.c.l.b16 %v1137
        %v3672 = vunpack.c.h.b16 %v1137
        %v3673 = vunpack.c.l.b16 %v1138
        %v3674 = vunpack.c.h.b16 %v1138
        %v3675 = vunpack.c.l.b16 %v1139
        %v3676 = vunpack.c.h.b16 %v1139
        %v3677 = vunpack.c.l.b16 %v1140
        %v3678 = vunpack.c.h.b16 %v1140
        %v3679 = vunpack.c.l.b16 %v1141
        %v3680 = vunpack.c.h.b16 %v1141
        %v3681 = vunpack.c.l.b16 %v1142
        %v3682 = vunpack.c.h.b16 %v1142
        %v3683 = vunpack.c.l.b16 %v1143
        %v3684 = vunpack.c.h.b16 %v1143
        %v3685 = vunpack.c.l.b16 %v1144
        %v3686 = vunpack.c.h.b16 %v1144
        %v3687 = vunpack.c.l.b16 %v1145
        %v3688 = vunpack.c.h.b16 %v1145
        %v3689 = vunpack.c.l.b16 %v1146
        %v3690 = vunpack.c.h.b16 %v1146
        %v3691 = vunpack.c.l.b16 %v1147
        %v3692 = vunpack.c.h.b16 %v1147
        %v3693 = vunpack.c.l.b16 %v1148
        %v3694 = vunpack.c.h.b16 %v1148
        %v3695 = vunpack.c.l.b16 %v1149
        %v3696 = vunpack.c.h.b16 %v1149
        %v3697 = vunpack.c.l.b16 %v1150
        %v3698 = vunpack.c.h.b16 %v1150
        %v3699 = vunpack.c.l.b16 %v1151
        %v3700 = vunpack.c.h.b16 %v1151
        %v3701 = vunpack.c.l.b16 %v1152
        %v3702 = vunpack.c.h.b16 %v1152
        %v3703 = vunpack.c.l.b16 %v1153
        %v3704 = vunpack.c.h.b16 %v1153
        %v3705 = vunpack.c.l.b16 %v1154
        %v3706 = vunpack.c.h.b16 %v1154
        %v3707 = vunpack.c.l.b16 %v1155
        %v3708 = vunpack.c.h.b16 %v1155
        %v3709 = vunpack.c.l.b16 %v1156
        %v3710 = vunpack.c.h.b16 %v1156
        %v3711 = vunpack.c.l.b16 %v1157
        %v3712 = vunpack.c.h.b16 %v1157
        %v3713 = vunpack.c.l.b16 %v1158
        %v3714 = vunpack.c.h.b16 %v1158
        %v3715 = vunpack.c.l.b16 %v1159
        %v3716 = vunpack.c.h.b16 %v1159
        %v3717 = vunpack.c.l.b16 %v1160
        %v3718 = vunpack.c.h.b16 %v1160
        %v3719 = vunpack.c.l.b16 %v1161
        %v3720 = vunpack.c.h.b16 %v1161
        %v3721 = vunpack.c.l.b16 %v1162
        %v3722 = vunpack.c.h.b16 %v1162
        %v3723 = vunpack.c.l.b16 %v1163
        %v3724 = vunpack.c.h.b16 %v1163
        %v3725 = vunpack.c.l.b16 %v1164
        %v3726 = vunpack.c.h.b16 %v1164
        %v3727 = vunpack.c.l.b16 %v1165
        %v3728 = vunpack.c.h.b16 %v1165
        %v3729 = vunpack.c.l.b16 %v1166
        %v3730 = vunpack.c.h.b16 %v1166
        %v3731 = vunpack.c.l.b16 %v1167
        %v3732 = vunpack.c.h.b16 %v1167
        %v3733 = vunpack.c.l.b16 %v1168
        %v3734 = vunpack.c.h.b16 %v1168
        %v3735 = vunpack.c.l.b16 %v1169
        %v3736 = vunpack.c.h.b16 %v1169
        %v3737 = vunpack.c.l.b16 %v1170
        %v3738 = vunpack.c.h.b16 %v1170
        %v3739 = vunpack.c.l.b16 %v1171
        %v3740 = vunpack.c.h.b16 %v1171
        %v3741 = vunpack.c.l.b16 %v1172
        %v3742 = vunpack.c.h.b16 %v1172
        %v3743 = vunpack.c.l.b16 %v1173
        %v3744 = vunpack.c.h.b16 %v1173
        %v3745 = vunpack.c.l.b16 %v1174
        %v3746 = vunpack.c.h.b16 %v1174
        %v3747 = vunpack.c.l.b16 %v1175
        %v3748 = vunpack.c.h.b16 %v1175
        %v3749 = vunpack.c.l.b16 %v1176
        %v3750 = vunpack.c.h.b16 %v1176
        %v3751 = vunpack.c.l.b16 %v1177
        %v3752 = vunpack.c.h.b16 %v1177
        %v3753 = vunpack.c.l.b16 %v1178
        %v3754 = vunpack.c.h.b16 %v1178
        %v3755 = vunpack.c.l.b16 %v1179
        %v3756 = vunpack.c.h.b16 %v1179
        %v3757 = vunpack.c.l.b16 %v1180
        %v3758 = vunpack.c.h.b16 %v1180
        %v3759 = vunpack.c.l.b16 %v1181
        %v3760 = vunpack.c.h.b16 %v1181
        %v3761 = vunpack.c.l.b16 %v1182
        %v3762 = vunpack.c.h.b16 %v1182
        %v3763 = vunpack.c.l.b16 %v1183
        %v3764 = vunpack.c.h.b16 %v1183
        %v3765 = vunpack.c.l.b16 %v1184
        %v3766 = vunpack.c.h.b16 %v1184
        %v3767 = vunpack.c.l.b16 %v1185
        %v3768 = vunpack.c.h.b16 %v1185
        %v3769 = vunpack.c.l.b16 %v1186
        %v3770 = vunpack.c.h.b16 %v1186
        %v3771 = vunpack.c.l.b16 %v1187
        %v3772 = vunpack.c.h.b16 %v1187
        %v3773 = vunpack.c.l.b16 %v1188
        %v3774 = vunpack.c.h.b16 %v1188
        %v3775 = vunpack.c.l.b16 %v1189
        %v3776 = vunpack.c.h.b16 %v1189
        %v3777 = vunpack.c.l.b16 %v1190
        %v3778 = vunpack.c.h.b16 %v1190
        %v3779 = vunpack.c.l.b16 %v1191
        %v3780 = vunpack.c.h.b16 %v1191
        %v3781 = vunpack.c.l.b16 %v1192
        %v3782 = vunpack.c.h.b16 %v1192
        %v3783 = vunpack.c.l.b16 %v1193
        %v3784 = vunpack.c.h.b16 %v1193
        %v3785 = vunpack.c.l.b16 %v1194
        %v3786 = vunpack.c.h.b16 %v1194
        %v3787 = vunpack.c.l.b16 %v1195
        %v3788 = vunpack.c.h.b16 %v1195
        %v3789 = vunpack.c.l.b16 %v1196
        %v3790 = vunpack.c.h.b16 %v1196
        %v3791 = vunpack.c.l.b16 %v1197
        %v3792 = vunpack.c.h.b16 %v1197
        %v3793 = vunpack.c.l.b16 %v1198
        %v3794 = vunpack.c.h.b16 %v1198
        %v3795 = vunpack.c.l.b16 %v1199
        %v3796 = vunpack.c.h.b16 %v1199
        %v3797 = vunpack.c.l.b16 %v1200
        %v3798 = vunpack.c.h.b16 %v1200
        %v3799 = vunpack.c.l.b16 %v1201
        %v3800 = vunpack.c.h.b16 %v1201
        %v3801 = vunpack.c.l.b16 %v1202
        %v3802 = vunpack.c.h.b16 %v1202
        %v3803 = vunpack.c.l.b16 %v1203
        %v3804 = vunpack.c.h.b16 %v1203
        %v3805 = vunpack.c.l.b16 %v1204
        %v3806 = vunpack.c.h.b16 %v1204
        %v3807 = vunpack.c.l.b16 %v1205
        %v3808 = vunpack.c.h.b16 %v1205
        %v3809 = vunpack.c.l.b16 %v1206
        %v3810 = vunpack.c.h.b16 %v1206
        %v3811 = vunpack.c.l.b16 %v1207
        %v3812 = vunpack.c.h.b16 %v1207
        %v3813 = vunpack.c.l.b16 %v1208
        %v3814 = vunpack.c.h.b16 %v1208
        %v3815 = vunpack.c.l.b16 %v1209
        %v3816 = vunpack.c.h.b16 %v1209
        %v3817 = vunpack.c.l.b16 %v1210
        %v3818 = vunpack.c.h.b16 %v1210
        %v3819 = vunpack.c.l.b16 %v1211
        %v3820 = vunpack.c.h.b16 %v1211
        %v3821 = vunpack.c.l.b16 %v1212
        %v3822 = vunpack.c.h.b16 %v1212
        %v3823 = vunpack.c.l.b16 %v1213
        %v3824 = vunpack.c.h.b16 %v1213
        %v3825 = vunpack.c.l.b16 %v1214
        %v3826 = vunpack.c.h.b16 %v1214
        %v3827 = vunpack.c.l.b16 %v1215
        %v3828 = vunpack.c.h.b16 %v1215
        %v3829 = vunpack.c.l.b16 %v1216
        %v3830 = vunpack.c.h.b16 %v1216
        %v3831 = vunpack.c.l.b16 %v1217
        %v3832 = vunpack.c.h.b16 %v1217
        %v3833 = vunpack.c.l.b16 %v1218
        %v3834 = vunpack.c.h.b16 %v1218
        %v3835 = vunpack.c.l.b16 %v1219
        %v3836 = vunpack.c.h.b16 %v1219
        %v3837 = vunpack.c.l.b16 %v1220
        %v3838 = vunpack.c.h.b16 %v1220
        %v3839 = vunpack.c.l.b16 %v1221
        %v3840 = vunpack.c.h.b16 %v1221
        %v3841 = vunpack.c.l.b16 %v1222
        %v3842 = vunpack.c.h.b16 %v1222
        %v3843 = vunpack.c.l.b16 %v1223
        %v3844 = vunpack.c.h.b16 %v1223
        %v3845 = vunpack.c.l.b16 %v1224
        %v3846 = vunpack.c.h.b16 %v1224
        %v3847 = vunpack.c.l.b16 %v1225
        %v3848 = vunpack.c.h.b16 %v1225
        %v3849 = vunpack.c.l.b16 %v1226
        %v3850 = vunpack.c.h.b16 %v1226
        %v3851 = vunpack.c.l.b16 %v1227
        %v3852 = vunpack.c.h.b16 %v1227
        %v3853 = vunpack.c.l.b16 %v1228
        %v3854 = vunpack.c.h.b16 %v1228
        %v3855 = vunpack.c.l.b16 %v1229
        %v3856 = vunpack.c.h.b16 %v1229
        %v3857 = vunpack.c.l.b16 %v1230
        %v3858 = vunpack.c.h.b16 %v1230
        %v3859 = vunpack.c.l.b16 %v1231
        %v3860 = vunpack.c.h.b16 %v1231
        %v3861 = vunpack.c.l.b16 %v1232
        %v3862 = vunpack.c.h.b16 %v1232
        %v3863 = vunpack.c.l.b16 %v1233
        %v3864 = vunpack.c.h.b16 %v1233
        %v3865 = vunpack.c.l.b16 %v1234
        %v3866 = vunpack.c.h.b16 %v1234
        %v3867 = vunpack.c.l.b16 %v1235
        %v3868 = vunpack.c.h.b16 %v1235
        %v3869 = vunpack.c.l.b16 %v1236
        %v3870 = vunpack.c.h.b16 %v1236
        %v3871 = vunpack.c.l.b16 %v1237
        %v3872 = vunpack.c.h.b16 %v1237
        %v3873 = vunpack.c.l.b16 %v1238
        %v3874 = vunpack.c.h.b16 %v1238
        %v3875 = vunpack.c.l.b16 %v1239
        %v3876 = vunpack.c.h.b16 %v1239
        %v3877 = vunpack.c.l.b16 %v1240
        %v3878 = vunpack.c.h.b16 %v1240
        %v3879 = vunpack.c.l.b16 %v1241
        %v3880 = vunpack.c.h.b16 %v1241
        %v3881 = vunpack.c.l.b16 %v1242
        %v3882 = vunpack.c.h.b16 %v1242
        %v3883 = vunpack.c.l.b16 %v1243
        %v3884 = vunpack.c.h.b16 %v1243
        %v3885 = vunpack.c.l.b16 %v1244
        %v3886 = vunpack.c.h.b16 %v1244
        %v3887 = vunpack.c.l.b16 %v1245
        %v3888 = vunpack.c.h.b16 %v1245
        %v3889 = vunpack.c.l.b16 %v1246
        %v3890 = vunpack.c.h.b16 %v1246
        %v3891 = vunpack.c.l.b16 %v1247
        %v3892 = vunpack.c.h.b16 %v1247
        %v3893 = vunpack.c.l.b16 %v1248
        %v3894 = vunpack.c.h.b16 %v1248
        %v3895 = vunpack.c.l.b16 %v1249
        %v3896 = vunpack.c.h.b16 %v1249
        %v3897 = vunpack.c.l.b16 %v1250
        %v3898 = vunpack.c.h.b16 %v1250
        %v3899 = vunpack.c.l.b16 %v1251
        %v3900 = vunpack.c.h.b16 %v1251
        %v3901 = vunpack.c.l.b16 %v1252
        %v3902 = vunpack.c.h.b16 %v1252
        %v3903 = vunpack.c.l.b16 %v1253
        %v3904 = vunpack.c.h.b16 %v1253
        %v3905 = vunpack.c.l.b16 %v1254
        %v3906 = vunpack.c.h.b16 %v1254
        %v3907 = vunpack.c.l.b16 %v1255
        %v3908 = vunpack.c.h.b16 %v1255
        %v3909 = vunpack.c.l.b16 %v1256
        %v3910 = vunpack.c.h.b16 %v1256
        %v3911 = vunpack.c.l.b16 %v1257
        %v3912 = vunpack.c.h.b16 %v1257
        %v3913 = vunpack.c.l.b16 %v1258
        %v3914 = vunpack.c.h.b16 %v1258
        %v3915 = vunpack.c.l.b16 %v1259
        %v3916 = vunpack.c.h.b16 %v1259
        %v3917 = vunpack.c.l.b16 %v1260
        %v3918 = vunpack.c.h.b16 %v1260
        %v3919 = vunpack.c.l.b16 %v1261
        %v3920 = vunpack.c.h.b16 %v1261
        %v3921 = vunpack.c.l.b16 %v1262
        %v3922 = vunpack.c.h.b16 %v1262
        %v3923 = vunpack.c.l.b16 %v1263
        %v3924 = vunpack.c.h.b16 %v1263
        %v3925 = vunpack.c.l.b16 %v1264
        %v3926 = vunpack.c.h.b16 %v1264
        %v3927 = vunpack.c.l.b16 %v1265
        %v3928 = vunpack.c.h.b16 %v1265
        %v3929 = vunpack.c.l.b16 %v1266
        %v3930 = vunpack.c.h.b16 %v1266
        %v3931 = vunpack.c.l.b16 %v1267
        %v3932 = vunpack.c.h.b16 %v1267
        %v3933 = vunpack.c.l.b16 %v1268
        %v3934 = vunpack.c.h.b16 %v1268
        %v3935 = vunpack.c.l.b16 %v1269
        %v3936 = vunpack.c.h.b16 %v1269
        %v3937 = vunpack.c.l.b16 %v1270
        %v3938 = vunpack.c.h.b16 %v1270
        %v3939 = vunpack.c.l.b16 %v1271
        %v3940 = vunpack.c.h.b16 %v1271
        %v3941 = vunpack.c.l.b16 %v1272
        %v3942 = vunpack.c.h.b16 %v1272
        %v3943 = vunpack.c.l.b16 %v1273
        %v3944 = vunpack.c.h.b16 %v1273
        %v3945 = vunpack.c.l.b16 %v1274
        %v3946 = vunpack.c.h.b16 %v1274
        %v3947 = vunpack.c.l.b16 %v1275
        %v3948 = vunpack.c.h.b16 %v1275
        %v3949 = vunpack.c.l.b16 %v1276
        %v3950 = vunpack.c.h.b16 %v1276
        %v3951 = vunpack.c.l.b16 %v1277
        %v3952 = vunpack.c.h.b16 %v1277
        %v3953 = vunpack.c.l.b16 %v1278
        %v3954 = vunpack.c.h.b16 %v1278
        %v3955 = vunpack.c.l.b16 %v1279
        %v3956 = vunpack.c.h.b16 %v1279
        %v3957 = vunpack.c.l.b16 %v1280
        %v3958 = vunpack.c.h.b16 %v1280
        %v3959 = vunpack.c.l.b16 %v1281
        %v3960 = vunpack.c.h.b16 %v1281
        %v3961 = vunpack.c.l.b16 %v1282
        %v3962 = vunpack.c.h.b16 %v1282
        %v3963 = vunpack.c.l.b16 %v1283
        %v3964 = vunpack.c.h.b16 %v1283
        %v3965 = vunpack.c.l.b16 %v1284
        %v3966 = vunpack.c.h.b16 %v1284
        %v3967 = vunpack.c.l.b16 %v1285
        %v3968 = vunpack.c.h.b16 %v1285
        %v3969 = vunpack.c.l.b16 %v1286
        %v3970 = vunpack.c.h.b16 %v1286
        %v3971 = vunpack.c.l.b16 %v1287
        %v3972 = vunpack.c.h.b16 %v1287
        %v3973 = vunpack.c.l.b16 %v1288
        %v3974 = vunpack.c.h.b16 %v1288
        %v3975 = vunpack.c.l.b16 %v1289
        %v3976 = vunpack.c.h.b16 %v1289
        %v3977 = vunpack.c.l.b16 %v1290
        %v3978 = vunpack.c.h.b16 %v1290
        %v3979 = vunpack.c.l.b16 %v1291
        %v3980 = vunpack.c.h.b16 %v1291
        %v3981 = vunpack.c.l.b16 %v1292
        %v3982 = vunpack.c.h.b16 %v1292
        %v3983 = vunpack.c.l.b16 %v1293
        %v3984 = vunpack.c.h.b16 %v1293
        %v3985 = vunpack.c.l.b16 %v1294
        %v3986 = vunpack.c.h.b16 %v1294
        %v3987 = vunpack.c.l.b16 %v1295
        %v3988 = vunpack.c.h.b16 %v1295
        %v3989 = vunpack.c.l.b16 %v1296
        %v3990 = vunpack.c.h.b16 %v1296
        %v3991 = vunpack.c.l.b16 %v1297
        %v3992 = vunpack.c.h.b16 %v1297
        %v3993 = vunpack.c.l.b16 %v1298
        %v3994 = vunpack.c.h.b16 %v1298
        %v3995 = vunpack.c.l.b16 %v1299
        %v3996 = vunpack.c.h.b16 %v1299
        %v3997 = vunpack.c.l.b16 %v1300
        %v3998 = vunpack.c.h.b16 %v1300
        %v3999 = vunpack.c.l.b16 %v1301
        %v4000 = vunpack.c.h.b16 %v1301
        %v4001 = vunpack.c.l.b16 %v1302
        %v4002 = vunpack.c.h.b16 %v1302
        %v4003 = vunpack.c.l.b16 %v1303
        %v4004 = vunpack.c.h.b16 %v1303
        %v4005 = vunpack.c.l.b16 %v1304
        %v4006 = vunpack.c.h.b16 %v1304
        %v4007 = vunpack.c.l.b16 %v1305
        %v4008 = vunpack.c.h.b16 %v1305
        %v4009 = vunpack.c.l.b16 %v1306
        %v4010 = vunpack.c.h.b16 %v1306
        %v4011 = vunpack.c.l.b16 %v1307
        %v4012 = vunpack.c.h.b16 %v1307
        %v4013 = vunpack.c.l.b16 %v1308
        %v4014 = vunpack.c.h.b16 %v1308
        %v4015 = vunpack.c.l.b16 %v1309
        %v4016 = vunpack.c.h.b16 %v1309
        %v4017 = vunpack.c.l.b16 %v1310
        %v4018 = vunpack.c.h.b16 %v1310
        %v4019 = vunpack.c.l.b16 %v1311
        %v4020 = vunpack.c.h.b16 %v1311
        %v4021 = vunpack.c.l.b16 %v1312
        %v4022 = vunpack.c.h.b16 %v1312
        %v4023 = vunpack.c.l.b16 %v1313
        %v4024 = vunpack.c.h.b16 %v1313
        %v4025 = vunpack.c.l.b16 %v1314
        %v4026 = vunpack.c.h.b16 %v1314
        %v4027 = vunpack.c.l.b16 %v1315
        %v4028 = vunpack.c.h.b16 %v1315
        %v4029 = vunpack.c.l.b16 %v1316
        %v4030 = vunpack.c.h.b16 %v1316
        %v4031 = vunpack.c.l.b16 %v1317
        %v4032 = vunpack.c.h.b16 %v1317
        %v4033 = vunpack.c.l.b16 %v1318
        %v4034 = vunpack.c.h.b16 %v1318
        %v4035 = vunpack.c.l.b16 %v1319
        %v4036 = vunpack.c.h.b16 %v1319
        %v4037 = vunpack.c.l.b16 %v1320
        %v4038 = vunpack.c.h.b16 %v1320
        %v4039 = vunpack.c.l.b16 %v1321
        %v4040 = vunpack.c.h.b16 %v1321
        %v4041 = vunpack.c.l.b16 %v1322
        %v4042 = vunpack.c.h.b16 %v1322
        %v4043 = vunpack.c.l.b16 %v1323
        %v4044 = vunpack.c.h.b16 %v1323
        %v4045 = vunpack.c.l.b16 %v1324
        %v4046 = vunpack.c.h.b16 %v1324
        %v4047 = vunpack.c.l.b16 %v1325
        %v4048 = vunpack.c.h.b16 %v1325
        %v4049 = vunpack.c.l.b16 %v1326
        %v4050 = vunpack.c.h.b16 %v1326
        %v4051 = vunpack.c.l.b16 %v1327
        %v4052 = vunpack.c.h.b16 %v1327
        %v4053 = vunpack.c.l.b16 %v1328
        %v4054 = vunpack.c.h.b16 %v1328
        %v4055 = vunpack.c.l.b16 %v1329
        %v4056 = vunpack.c.h.b16 %v1329
        %v4057 = vunpack.c.l.b16 %v1330
        %v4058 = vunpack.c.h.b16 %v1330
        %v4059 = vpack.c.b16 %v2335, %v2331
        %v4060 = vpack.c.b16 %v2336, %v2332
        %v4061 = vpack.c.b16 %v2337, %v2333
        %v4062 = vpack.c.b16 %v2338, %v2334
        %v4063 = vpack.c.b16 %v2343, %v2339
        %v4064 = vpack.c.b16 %v2344, %v2340
        %v4065 = vpack.c.b16 %v2345, %v2341
        %v4066 = vpack.c.b16 %v2346, %v2342
        %v4067 = vpack.c.b16 %v2351, %v2347
        %v4068 = vpack.c.b16 %v2352, %v2348
        %v4069 = vpack.c.b16 %v2353, %v2349
        %v4070 = vpack.c.b16 %v2354, %v2350
        %v4071 = vpack.c.b16 %v2359, %v2355
        %v4072 = vpack.c.b16 %v2360, %v2356
        %v4073 = vpack.c.b16 %v2361, %v2357
        %v4074 = vpack.c.b16 %v2362, %v2358
        %v4075 = vpack.c.b16 %v2367, %v2363
        %v4076 = vpack.c.b16 %v2368, %v2364
        %v4077 = vpack.c.b16 %v2369, %v2365
        %v4078 = vpack.c.b16 %v2370, %v2366
        %v4079 = vpack.c.b16 %v2375, %v2371
        %v4080 = vpack.c.b16 %v2376, %v2372
        %v4081 = vpack.c.b16 %v2377, %v2373
        %v4082 = vpack.c.b16 %v2378, %v2374
        %v4083 = vpack.c.b16 %v2383, %v2379
        %v4084 = vpack.c.b16 %v2384, %v2380
        %v4085 = vpack.c.b16 %v2385, %v2381
        %v4086 = vpack.c.b16 %v2386, %v2382
        %v4087 = vpack.c.b16 %v2391, %v2387
        %v4088 = vpack.c.b16 %v2392, %v2388
        %v4089 = vpack.c.b16 %v2393, %v2389
        %v4090 = vpack.c.b16 %v2394, %v2390
        %v4091 = vpack.c.b16 %v2399, %v2395
        %v4092 = vpack.c.b16 %v2400, %v2396
        %v4093 = vpack.c.b16 %v2401, %v2397
        %v4094 = vpack.c.b16 %v2402, %v2398
        %v4095 = vpack.c.b16 %v2407, %v2403
        %v4096 = vpack.c.b16 %v2408, %v2404
        %v4097 = vpack.c.b16 %v2409, %v2405
        %v4098 = vpack.c.b16 %v2410, %v2406
        %v4099 = vpack.c.b16 %v2415, %v2411
        %v4100 = vpack.c.b16 %v2416, %v2412
        %v4101 = vpack.c.b16 %v2417, %v2413
        %v4102 = vpack.c.b16 %v2418, %v2414
        %v4103 = vpack.c.b16 %v2423, %v2419
        %v4104 = vpack.c.b16 %v2424, %v2420
        %v4105 = vpack.c.b16 %v2425, %v2421
        %v4106 = vpack.c.b16 %v2426, %v2422
        %v4107 = vpack.c.b16 %v2431, %v2427
        %v4108 = vpack.c.b16 %v2432, %v2428
        %v4109 = vpack.c.b16 %v2433, %v2429
        %v4110 = vpack.c.b16 %v2434, %v2430
        %v4111 = vpack.c.b16 %v2439, %v2435
        %v4112 = vpack.c.b16 %v2440, %v2436
        %v4113 = vpack.c.b16 %v2441, %v2437
        %v4114 = vpack.c.b16 %v2442, %v2438
        %v4115 = vpack.c.b16 %v2447, %v2443
        %v4116 = vpack.c.b16 %v2448, %v2444
        %v4117 = vpack.c.b16 %v2449, %v2445
        %v4118 = vpack.c.b16 %v2450, %v2446
        %v4119 = vpack.c.b16 %v2455, %v2451
        %v4120 = vpack.c.b16 %v2456, %v2452
        %v4121 = vpack.c.b16 %v2457, %v2453
        %v4122 = vpack.c.b16 %v2458, %v2454
        %v4123 = vpack.c.b16 %v2463, %v2459
        %v4124 = vpack.c.b16 %v2464, %v2460
        %v4125 = vpack.c.b16 %v2465, %v2461
        %v4126 = vpack.c.b16 %v2466, %v2462
        %v4127 = vpack.c.b16 %v2471, %v2467
        %v4128 = vpack.c.b16 %v2472, %v2468
        %v4129 = vpack.c.b16 %v2473, %v2469
        %v4130 = vpack.c.b16 %v2474, %v2470
        %v4131 = vpack.c.b16 %v2479, %v2475
        %v4132 = vpack.c.b16 %v2480, %v2476
        %v4133 = vpack.c.b16 %v2481, %v2477
        %v4134 = vpack.c.b16 %v2482, %v2478
        %v4135 = vpack.c.b16 %v2487, %v2483
        %v4136 = vpack.c.b16 %v2488, %v2484
        %v4137 = vpack.c.b16 %v2489, %v2485
        %v4138 = vpack.c.b16 %v2490, %v2486
        %v4139 = vpack.c.b16 %v2495, %v2491
        %v4140 = vpack.c.b16 %v2496, %v2492
        %v4141 = vpack.c.b16 %v2497, %v2493
        %v4142 = vpack.c.b16 %v2498, %v2494
        %v4143 = vpack.c.b16 %v2503, %v2499
        %v4144 = vpack.c.b16 %v2504, %v2500
        %v4145 = vpack.c.b16 %v2505, %v2501
        %v4146 = vpack.c.b16 %v2506, %v2502
        %v4147 = vpack.c.b16 %v2511, %v2507
        %v4148 = vpack.c.b16 %v2512, %v2508
        %v4149 = vpack.c.b16 %v2513, %v2509
        %v4150 = vpack.c.b16 %v2514, %v2510
        %v4151 = vpack.c.b16 %v2519, %v2515
        %v4152 = vpack.c.b16 %v2520, %v2516
        %v4153 = vpack.c.b16 %v2521, %v2517
        %v4154 = vpack.c.b16 %v2522, %v2518
        %v4155 = vpack.c.b16 %v2527, %v2523
        %v4156 = vpack.c.b16 %v2528, %v2524
        %v4157 = vpack.c.b16 %v2529, %v2525
        %v4158 = vpack.c.b16 %v2530, %v2526
        %v4159 = vpack.c.b16 %v2535, %v2531
        %v4160 = vpack.c.b16 %v2536, %v2532
        %v4161 = vpack.c.b16 %v2537, %v2533
        %v4162 = vpack.c.b16 %v2538, %v2534
        %v4163 = vpack.c.b16 %v2543, %v2539
        %v4164 = vpack.c.b16 %v2544, %v2540
        %v4165 = vpack.c.b16 %v2545, %v2541
        %v4166 = vpack.c.b16 %v2546, %v2542
        %v4167 = vpack.c.b16 %v2551, %v2547
        %v4168 = vpack.c.b16 %v2552, %v2548
        %v4169 = vpack.c.b16 %v2553, %v2549
        %v4170 = vpack.c.b16 %v2554, %v2550
        %v4171 = vpack.c.b16 %v2559, %v2555
        %v4172 = vpack.c.b16 %v2560, %v2556
        %v4173 = vpack.c.b16 %v2561, %v2557
        %v4174 = vpack.c.b16 %v2562, %v2558
        %v4175 = vpack.c.b16 %v2567, %v2563
        %v4176 = vpack.c.b16 %v2568, %v2564
        %v4177 = vpack.c.b16 %v2569, %v2565
        %v4178 = vpack.c.b16 %v2570, %v2566
        %v4179 = vpack.c.b16 %v2575, %v2571
        %v4180 = vpack.c.b16 %v2576, %v2572
        %v4181 = vpack.c.b16 %v2577, %v2573
        %v4182 = vpack.c.b16 %v2578, %v2574
        %v4183 = vpack.c.b16 %v2583, %v2579
        %v4184 = vpack.c.b16 %v2584, %v2580
        %v4185 = vpack.c.b16 %v2585, %v2581
        %v4186 = vpack.c.b16 %v2586, %v2582
        %v4187 = vpack.c.b16 %v2591, %v2587
        %v4188 = vpack.c.b16 %v2592, %v2588
        %v4189 = vpack.c.b16 %v2593, %v2589
        %v4190 = vpack.c.b16 %v2594, %v2590
        %v4191 = vpack.c.b16 %v2599, %v2595
        %v4192 = vpack.c.b16 %v2600, %v2596
        %v4193 = vpack.c.b16 %v2601, %v2597
        %v4194 = vpack.c.b16 %v2602, %v2598
        %v4195 = vpack.c.b16 %v2607, %v2603
        %v4196 = vpack.c.b16 %v2608, %v2604
        %v4197 = vpack.c.b16 %v2609, %v2605
        %v4198 = vpack.c.b16 %v2610, %v2606
        %v4199 = vpack.c.b16 %v2615, %v2611
        %v4200 = vpack.c.b16 %v2616, %v2612
        %v4201 = vpack.c.b16 %v2617, %v2613
        %v4202 = vpack.c.b16 %v2618, %v2614
        %v4203 = vpack.c.b16 %v2623, %v2619
        %v4204 = vpack.c.b16 %v2624, %v2620
        %v4205 = vpack.c.b16 %v2625, %v2621
        %v4206 = vpack.c.b16 %v2626, %v2622
        %v4207 = vpack.c.b16 %v2631, %v2627
        %v4208 = vpack.c.b16 %v2632, %v2628
        %v4209 = vpack.c.b16 %v2633, %v2629
        %v4210 = vpack.c.b16 %v2634, %v2630
        %v4211 = vpack.c.b16 %v2639, %v2635
        %v4212 = vpack.c.b16 %v2640, %v2636
        %v4213 = vpack.c.b16 %v2641, %v2637
        %v4214 = vpack.c.b16 %v2642, %v2638
        %v4215 = vpack.c.b16 %v2647, %v2643
        %v4216 = vpack.c.b16 %v2648, %v2644
        %v4217 = vpack.c.b16 %v2649, %v2645
        %v4218 = vpack.c.b16 %v2650, %v2646
        %v4219 = vpack.c.b16 %v2655, %v2651
        %v4220 = vpack.c.b16 %v2656, %v2652
        %v4221 = vpack.c.b16 %v2657, %v2653
        %v4222 = vpack.c.b16 %v2658, %v2654
        %v4223 = vpack.c.b16 %v2663, %v2659
        %v4224 = vpack.c.b16 %v2664, %v2660
        %v4225 = vpack.c.b16 %v2665, %v2661
        %v4226 = vpack.c.b16 %v2666, %v2662
        %v4227 = vpack.c.b16 %v2671, %v2667
        %v4228 = vpack.c.b16 %v2672, %v2668
        %v4229 = vpack.c.b16 %v2673, %v2669
        %v4230 = vpack.c.b16 %v2674, %v2670
        %v4231 = vpack.c.b16 %v2679, %v2675
        %v4232 = vpack.c.b16 %v2680, %v2676
        %v4233 = vpack.c.b16 %v2681, %v2677
        %v4234 = vpack.c.b16 %v2682, %v2678
        %v4235 = vpack.c.b16 %v2687, %v2683
        %v4236 = vpack.c.b16 %v2688, %v2684
        %v4237 = vpack.c.b16 %v2689, %v2685
        %v4238 = vpack.c.b16 %v2690, %v2686
        %v4239 = vpack.c.b16 %v2695, %v2691
        %v4240 = vpack.c.b16 %v2696, %v2692
        %v4241 = vpack.c.b16 %v2697, %v2693
        %v4242 = vpack.c.b16 %v2698, %v2694
        %v4243 = vpack.c.b16 %v2703, %v2699
        %v4244 = vpack.c.b16 %v2704, %v2700
        %v4245 = vpack.c.b16 %v2705, %v2701
        %v4246 = vpack.c.b16 %v2706, %v2702
        %v4247 = vpack.c.b16 %v2711, %v2707
        %v4248 = vpack.c.b16 %v2712, %v2708
        %v4249 = vpack.c.b16 %v2713, %v2709
        %v4250 = vpack.c.b16 %v2714, %v2710
        %v4251 = vpack.c.b16 %v2719, %v2715
        %v4252 = vpack.c.b16 %v2720, %v2716
        %v4253 = vpack.c.b16 %v2721, %v2717
        %v4254 = vpack.c.b16 %v2722, %v2718
        %v4255 = vpack.c.b16 %v2727, %v2723
        %v4256 = vpack.c.b16 %v2728, %v2724
        %v4257 = vpack.c.b16 %v2729, %v2725
        %v4258 = vpack.c.b16 %v2730, %v2726
        %v4259 = vpack.c.b16 %v2735, %v2731
        %v4260 = vpack.c.b16 %v2736, %v2732
        %v4261 = vpack.c.b16 %v2737, %v2733
        %v4262 = vpack.c.b16 %v2738, %v2734
        %v4263 = vpack.c.b16 %v2743, %v2739
        %v4264 = vpack.c.b16 %v2744, %v2740
        %v4265 = vpack.c.b16 %v2745, %v2741
        %v4266 = vpack.c.b16 %v2746, %v2742
        %v4267 = vpack.c.b16 %v2751, %v2747
        %v4268 = vpack.c.b16 %v2752, %v2748
        %v4269 = vpack.c.b16 %v2753, %v2749
        %v4270 = vpack.c.b16 %v2754, %v2750
        %v4271 = vpack.c.b16 %v2759, %v2755
        %v4272 = vpack.c.b16 %v2760, %v2756
        %v4273 = vpack.c.b16 %v2761, %v2757
        %v4274 = vpack.c.b16 %v2762, %v2758
        %v4275 = vpack.c.b16 %v2767, %v2763
        %v4276 = vpack.c.b16 %v2768, %v2764
        %v4277 = vpack.c.b16 %v2769, %v2765
        %v4278 = vpack.c.b16 %v2770, %v2766
        %v4279 = vpack.c.b16 %v2775, %v2771
        %v4280 = vpack.c.b16 %v2776, %v2772
        %v4281 = vpack.c.b16 %v2777, %v2773
        %v4282 = vpack.c.b16 %v2778, %v2774
        %v4283 = vpack.c.b16 %v2783, %v2779
        %v4284 = vpack.c.b16 %v2784, %v2780
        %v4285 = vpack.c.b16 %v2785, %v2781
        %v4286 = vpack.c.b16 %v2786, %v2782
        %v4287 = vpack.c.b16 %v2791, %v2787
        %v4288 = vpack.c.b16 %v2792, %v2788
        %v4289 = vpack.c.b16 %v2793, %v2789
        %v4290 = vpack.c.b16 %v2794, %v2790
        %v4291 = vpack.c.b16 %v2799, %v2795
        %v4292 = vpack.c.b16 %v2800, %v2796
        %v4293 = vpack.c.b16 %v2801, %v2797
        %v4294 = vpack.c.b16 %v2802, %v2798
        %v4295 = vpack.c.b16 %v2807, %v2803
        %v4296 = vpack.c.b16 %v2808, %v2804
        %v4297 = vpack.c.b16 %v2809, %v2805
        %v4298 = vpack.c.b16 %v2810, %v2806
        %v4299 = vpack.c.b16 %v2815, %v2811
        %v4300 = vpack.c.b16 %v2816, %v2812
        %v4301 = vpack.c.b16 %v2817, %v2813
        %v4302 = vpack.c.b16 %v2818, %v2814
        %v4303 = vpack.c.b16 %v2823, %v2819
        %v4304 = vpack.c.b16 %v2824, %v2820
        %v4305 = vpack.c.b16 %v2825, %v2821
        %v4306 = vpack.c.b16 %v2826, %v2822
        %v4307 = vpack.c.b16 %v2831, %v2827
        %v4308 = vpack.c.b16 %v2832, %v2828
        %v4309 = vpack.c.b16 %v2833, %v2829
        %v4310 = vpack.c.b16 %v2834, %v2830
        %v4311 = vpack.c.b16 %v2839, %v2835
        %v4312 = vpack.c.b16 %v2840, %v2836
        %v4313 = vpack.c.b16 %v2841, %v2837
        %v4314 = vpack.c.b16 %v2842, %v2838
        %v4315 = vpack.c.b16 %v2847, %v2843
        %v4316 = vpack.c.b16 %v2848, %v2844
        %v4317 = vpack.c.b16 %v2849, %v2845
        %v4318 = vpack.c.b16 %v2850, %v2846
        %v4319 = vpack.c.b16 %v2855, %v2851
        %v4320 = vpack.c.b16 %v2856, %v2852
        %v4321 = vpack.c.b16 %v2857, %v2853
        %v4322 = vpack.c.b16 %v2858, %v2854
        %v4323 = vpack.c.b16 %v2863, %v2859
        %v4324 = vpack.c.b16 %v2864, %v2860
        %v4325 = vpack.c.b16 %v2865, %v2861
        %v4326 = vpack.c.b16 %v2866, %v2862
        %v4327 = vpack.c.b16 %v2871, %v2867
        %v4328 = vpack.c.b16 %v2872, %v2868
        %v4329 = vpack.c.b16 %v2873, %v2869
        %v4330 = vpack.c.b16 %v2874, %v2870
        %v4331 = vpack.c.b16 %v2879, %v2875
        %v4332 = vpack.c.b16 %v2880, %v2876
        %v4333 = vpack.c.b16 %v2881, %v2877
        %v4334 = vpack.c.b16 %v2882, %v2878
        %v4335 = vpack.c.b16 %v2887, %v2883
        %v4336 = vpack.c.b16 %v2888, %v2884
        %v4337 = vpack.c.b16 %v2889, %v2885
        %v4338 = vpack.c.b16 %v2890, %v2886
        %v4339 = vpack.c.b16 %v2895, %v2891
        %v4340 = vpack.c.b16 %v2896, %v2892
        %v4341 = vpack.c.b16 %v2897, %v2893
        %v4342 = vpack.c.b16 %v2898, %v2894
        %v4343 = vpack.c.b16 %v2903, %v2899
        %v4344 = vpack.c.b16 %v2904, %v2900
        %v4345 = vpack.c.b16 %v2905, %v2901
        %v4346 = vpack.c.b16 %v2906, %v2902
        %v4347 = vpack.c.b16 %v2911, %v2907
        %v4348 = vpack.c.b16 %v2912, %v2908
        %v4349 = vpack.c.b16 %v2913, %v2909
        %v4350 = vpack.c.b16 %v2914, %v2910
        %v4351 = vpack.c.b16 %v2919, %v2915
        %v4352 = vpack.c.b16 %v2920, %v2916
        %v4353 = vpack.c.b16 %v2921, %v2917
        %v4354 = vpack.c.b16 %v2922, %v2918
        %v4355 = vpack.c.b16 %v2927, %v2923
        %v4356 = vpack.c.b16 %v2928, %v2924
        %v4357 = vpack.c.b16 %v2929, %v2925
        %v4358 = vpack.c.b16 %v2930, %v2926
        %v4359 = vpack.c.b16 %v2935, %v2931
        %v4360 = vpack.c.b16 %v2936, %v2932
        %v4361 = vpack.c.b16 %v2937, %v2933
        %v4362 = vpack.c.b16 %v2938, %v2934
        %v4363 = vpack.c.b16 %v2943, %v2939
        %v4364 = vpack.c.b16 %v2944, %v2940
        %v4365 = vpack.c.b16 %v2945, %v2941
        %v4366 = vpack.c.b16 %v2946, %v2942
        %v4367 = vpack.c.b16 %v2951, %v2947
        %v4368 = vpack.c.b16 %v2952, %v2948
        %v4369 = vpack.c.b16 %v2953, %v2949
        %v4370 = vpack.c.b16 %v2954, %v2950
        %v4371 = vpack.c.b16 %v2959, %v2955
        %v4372 = vpack.c.b16 %v2960, %v2956
        %v4373 = vpack.c.b16 %v2961, %v2957
        %v4374 = vpack.c.b16 %v2962, %v2958
        %v4375 = vpack.c.b16 %v2967, %v2963
        %v4376 = vpack.c.b16 %v2968, %v2964
        %v4377 = vpack.c.b16 %v2969, %v2965
        %v4378 = vpack.c.b16 %v2970, %v2966
        %v4379 = vpack.c.b16 %v2975, %v2971
        %v4380 = vpack.c.b16 %v2976, %v2972
        %v4381 = vpack.c.b16 %v2977, %v2973
        %v4382 = vpack.c.b16 %v2978, %v2974
        %v4383 = vpack.c.b16 %v2983, %v2979
        %v4384 = vpack.c.b16 %v2984, %v2980
        %v4385 = vpack.c.b16 %v2985, %v2981
        %v4386 = vpack.c.b16 %v2986, %v2982
        %v4387 = vpack.c.b16 %v2991, %v2987
        %v4388 = vpack.c.b16 %v2992, %v2988
        %v4389 = vpack.c.b16 %v2993, %v2989
        %v4390 = vpack.c.b16 %v2994, %v2990
        %v4391 = vpack.c.b16 %v2999, %v2995
        %v4392 = vpack.c.b16 %v3000, %v2996
        %v4393 = vpack.c.b16 %v3001, %v2997
        %v4394 = vpack.c.b16 %v3002, %v2998
        %v4395 = vpack.c.b16 %v3007, %v3003
        %v4396 = vpack.c.b16 %v3008, %v3004
        %v4397 = vpack.c.b16 %v3009, %v3005
        %v4398 = vpack.c.b16 %v3010, %v3006
        %v4399 = vpack.c.b16 %v3015, %v3011
        %v4400 = vpack.c.b16 %v3016, %v3012
        %v4401 = vpack.c.b16 %v3017, %v3013
        %v4402 = vpack.c.b16 %v3018, %v3014
        %v4403 = vpack.c.b16 %v3023, %v3019
        %v4404 = vpack.c.b16 %v3024, %v3020
        %v4405 = vpack.c.b16 %v3025, %v3021
        %v4406 = vpack.c.b16 %v3026, %v3022
        %v4407 = vpack.c.b16 %v3031, %v3027
        %v4408 = vpack.c.b16 %v3032, %v3028
        %v4409 = vpack.c.b16 %v3033, %v3029
        %v4410 = vpack.c.b16 %v3034, %v3030
        %v4411 = vpack.c.b16 %v3039, %v3035
        %v4412 = vpack.c.b16 %v3040, %v3036
        %v4413 = vpack.c.b16 %v3041, %v3037
        %v4414 = vpack.c.b16 %v3042, %v3038
        %v4415 = vpack.c.b16 %v3047, %v3043
        %v4416 = vpack.c.b16 %v3048, %v3044
        %v4417 = vpack.c.b16 %v3049, %v3045
        %v4418 = vpack.c.b16 %v3050, %v3046
        %v4419 = vpack.c.b16 %v3055, %v3051
        %v4420 = vpack.c.b16 %v3056, %v3052
        %v4421 = vpack.c.b16 %v3057, %v3053
        %v4422 = vpack.c.b16 %v3058, %v3054
        %v4423 = vpack.c.b16 %v3063, %v3059
        %v4424 = vpack.c.b16 %v3064, %v3060
        %v4425 = vpack.c.b16 %v3065, %v3061
        %v4426 = vpack.c.b16 %v3066, %v3062
        %v4427 = vpack.c.b16 %v3071, %v3067
        %v4428 = vpack.c.b16 %v3072, %v3068
        %v4429 = vpack.c.b16 %v3073, %v3069
        %v4430 = vpack.c.b16 %v3074, %v3070
        %v4431 = vpack.c.b16 %v3079, %v3075
        %v4432 = vpack.c.b16 %v3080, %v3076
        %v4433 = vpack.c.b16 %v3081, %v3077
        %v4434 = vpack.c.b16 %v3082, %v3078
        %v4435 = vpack.c.b16 %v3087, %v3083
        %v4436 = vpack.c.b16 %v3088, %v3084
        %v4437 = vpack.c.b16 %v3089, %v3085
        %v4438 = vpack.c.b16 %v3090, %v3086
        %v4439 = vpack.c.b16 %v3095, %v3091
        %v4440 = vpack.c.b16 %v3096, %v3092
        %v4441 = vpack.c.b16 %v3097, %v3093
        %v4442 = vpack.c.b16 %v3098, %v3094
        %v4443 = vpack.c.b16 %v3103, %v3099
        %v4444 = vpack.c.b16 %v3104, %v3100
        %v4445 = vpack.c.b16 %v3105, %v3101
        %v4446 = vpack.c.b16 %v3106, %v3102
        %v4447 = vpack.c.b16 %v3111, %v3107
        %v4448 = vpack.c.b16 %v3112, %v3108
        %v4449 = vpack.c.b16 %v3113, %v3109
        %v4450 = vpack.c.b16 %v3114, %v3110
        %v4451 = vpack.c.b16 %v3119, %v3115
        %v4452 = vpack.c.b16 %v3120, %v3116
        %v4453 = vpack.c.b16 %v3121, %v3117
        %v4454 = vpack.c.b16 %v3122, %v3118
        %v4455 = vpack.c.b16 %v3127, %v3123
        %v4456 = vpack.c.b16 %v3128, %v3124
        %v4457 = vpack.c.b16 %v3129, %v3125
        %v4458 = vpack.c.b16 %v3130, %v3126
        %v4459 = vpack.c.b16 %v3135, %v3131
        %v4460 = vpack.c.b16 %v3136, %v3132
        %v4461 = vpack.c.b16 %v3137, %v3133
        %v4462 = vpack.c.b16 %v3138, %v3134
        %v4463 = vpack.c.b16 %v3143, %v3139
        %v4464 = vpack.c.b16 %v3144, %v3140
        %v4465 = vpack.c.b16 %v3145, %v3141
        %v4466 = vpack.c.b16 %v3146, %v3142
        %v4467 = vpack.c.b16 %v3151, %v3147
        %v4468 = vpack.c.b16 %v3152, %v3148
        %v4469 = vpack.c.b16 %v3153, %v3149
        %v4470 = vpack.c.b16 %v3154, %v3150
        %v4471 = vpack.c.b16 %v3159, %v3155
        %v4472 = vpack.c.b16 %v3160, %v3156
        %v4473 = vpack.c.b16 %v3161, %v3157
        %v4474 = vpack.c.b16 %v3162, %v3158
        %v4475 = vpack.c.b16 %v3167, %v3163
        %v4476 = vpack.c.b16 %v3168, %v3164
        %v4477 = vpack.c.b16 %v3169, %v3165
        %v4478 = vpack.c.b16 %v3170, %v3166
        %v4479 = vpack.c.b16 %v3175, %v3171
        %v4480 = vpack.c.b16 %v3176, %v3172
        %v4481 = vpack.c.b16 %v3177, %v3173
        %v4482 = vpack.c.b16 %v3178, %v3174
        %v4483 = vpack.c.b16 %v3183, %v3179
        %v4484 = vpack.c.b16 %v3184, %v3180
        %v4485 = vpack.c.b16 %v3185, %v3181
        %v4486 = vpack.c.b16 %v3186, %v3182
        %v4487 = vpack.c.b16 %v3191, %v3187
        %v4488 = vpack.c.b16 %v3192, %v3188
        %v4489 = vpack.c.b16 %v3193, %v3189
        %v4490 = vpack.c.b16 %v3194, %v3190
        %v4491 = vpack.c.b16 %v3199, %v3195
        %v4492 = vpack.c.b16 %v3200, %v3196
        %v4493 = vpack.c.b16 %v3201, %v3197
        %v4494 = vpack.c.b16 %v3202, %v3198
        %v4495 = vpack.c.b16 %v3207, %v3203
        %v4496 = vpack.c.b16 %v3208, %v3204
        %v4497 = vpack.c.b16 %v3209, %v3205
        %v4498 = vpack.c.b16 %v3210, %v3206
        %v4499 = vpack.c.b16 %v3215, %v3211
        %v4500 = vpack.c.b16 %v3216, %v3212
        %v4501 = vpack.c.b16 %v3217, %v3213
        %v4502 = vpack.c.b16 %v3218, %v3214
        %v4503 = vpack.c.b16 %v3223, %v3219
        %v4504 = vpack.c.b16 %v3224, %v3220
        %v4505 = vpack.c.b16 %v3225, %v3221
        %v4506 = vpack.c.b16 %v3226, %v3222
        %v4507 = vpack.c.b16 %v3231, %v3227
        %v4508 = vpack.c.b16 %v3232, %v3228
        %v4509 = vpack.c.b16 %v3233, %v3229
        %v4510 = vpack.c.b16 %v3234, %v3230
        %v4511 = vpack.c.b16 %v3239, %v3235
        %v4512 = vpack.c.b16 %v3240, %v3236
        %v4513 = vpack.c.b16 %v3241, %v3237
        %v4514 = vpack.c.b16 %v3242, %v3238
        %v4515 = vpack.c.b16 %v3247, %v3243
        %v4516 = vpack.c.b16 %v3248, %v3244
        %v4517 = vpack.c.b16 %v3249, %v3245
        %v4518 = vpack.c.b16 %v3250, %v3246
        %v4519 = vpack.c.b16 %v3255, %v3251
        %v4520 = vpack.c.b16 %v3256, %v3252
        %v4521 = vpack.c.b16 %v3257, %v3253
        %v4522 = vpack.c.b16 %v3258, %v3254
        %v4523 = vpack.c.b16 %v3263, %v3259
        %v4524 = vpack.c.b16 %v3264, %v3260
        %v4525 = vpack.c.b16 %v3265, %v3261
        %v4526 = vpack.c.b16 %v3266, %v3262
        %v4527 = vpack.c.b16 %v3271, %v3267
        %v4528 = vpack.c.b16 %v3272, %v3268
        %v4529 = vpack.c.b16 %v3273, %v3269
        %v4530 = vpack.c.b16 %v3274, %v3270
        %v4531 = vpack.c.b16 %v3279, %v3275
        %v4532 = vpack.c.b16 %v3280, %v3276
        %v4533 = vpack.c.b16 %v3281, %v3277
        %v4534 = vpack.c.b16 %v3282, %v3278
        %v4535 = vpack.c.b16 %v3287, %v3283
        %v4536 = vpack.c.b16 %v3288, %v3284
        %v4537 = vpack.c.b16 %v3289, %v3285
        %v4538 = vpack.c.b16 %v3290, %v3286
        %v4539 = vpack.c.b16 %v3295, %v3291
        %v4540 = vpack.c.b16 %v3296, %v3292
        %v4541 = vpack.c.b16 %v3297, %v3293
        %v4542 = vpack.c.b16 %v3298, %v3294
        %v4543 = vpack.c.b16 %v3303, %v3299
        %v4544 = vpack.c.b16 %v3304, %v3300
        %v4545 = vpack.c.b16 %v3305, %v3301
        %v4546 = vpack.c.b16 %v3306, %v3302
        %v4547 = vpack.c.b16 %v3311, %v3307
        %v4548 = vpack.c.b16 %v3312, %v3308
        %v4549 = vpack.c.b16 %v3313, %v3309
        %v4550 = vpack.c.b16 %v3314, %v3310
        %v4551 = vpack.c.b16 %v3319, %v3315
        %v4552 = vpack.c.b16 %v3320, %v3316
        %v4553 = vpack.c.b16 %v3321, %v3317
        %v4554 = vpack.c.b16 %v3322, %v3318
        %v4555 = vpack.c.b16 %v3327, %v3323
        %v4556 = vpack.c.b16 %v3328, %v3324
        %v4557 = vpack.c.b16 %v3329, %v3325
        %v4558 = vpack.c.b16 %v3330, %v3326
        %v4559 = vpack.c.b16 %v3335, %v3331
        %v4560 = vpack.c.b16 %v3336, %v3332
        %v4561 = vpack.c.b16 %v3337, %v3333
        %v4562 = vpack.c.b16 %v3338, %v3334
        %v4563 = vpack.c.b16 %v3343, %v3339
        %v4564 = vpack.c.b16 %v3344, %v3340
        %v4565 = vpack.c.b16 %v3345, %v3341
        %v4566 = vpack.c.b16 %v3346, %v3342
        %v4567 = vpack.c.b16 %v3351, %v3347
        %v4568 = vpack.c.b16 %v3352, %v3348
        %v4569 = vpack.c.b16 %v3353, %v3349
        %v4570 = vpack.c.b16 %v3354, %v3350
        %v4571 = vpack.c.b16 %v3359, %v3355
        %v4572 = vpack.c.b16 %v3360, %v3356
        %v4573 = vpack.c.b16 %v3361, %v3357
        %v4574 = vpack.c.b16 %v3362, %v3358
        %v4575 = vpack.c.b16 %v3367, %v3363
        %v4576 = vpack.c.b16 %v3368, %v3364
        %v4577 = vpack.c.b16 %v3369, %v3365
        %v4578 = vpack.c.b16 %v3370, %v3366
        %v4579 = vpack.c.b16 %v3375, %v3371
        %v4580 = vpack.c.b16 %v3376, %v3372
        %v4581 = vpack.c.b16 %v3377, %v3373
        %v4582 = vpack.c.b16 %v3378, %v3374
        %v4583 = vpack.c.b16 %v3383, %v3379
        %v4584 = vpack.c.b16 %v3384, %v3380
        %v4585 = vpack.c.b16 %v3385, %v3381
        %v4586 = vpack.c.b16 %v3386, %v3382
        %v4587 = vpack.c.b16 %v3391, %v3387
        %v4588 = vpack.c.b16 %v3392, %v3388
        %v4589 = vpack.c.b16 %v3393, %v3389
        %v4590 = vpack.c.b16 %v3394, %v3390
        %v4591 = vpack.c.b16 %v3399, %v3395
        %v4592 = vpack.c.b16 %v3400, %v3396
        %v4593 = vpack.c.b16 %v3401, %v3397
        %v4594 = vpack.c.b16 %v3402, %v3398
        %v4595 = vpack.c.b16 %v3407, %v3403
        %v4596 = vpack.c.b16 %v3408, %v3404
        %v4597 = vpack.c.b16 %v3409, %v3405
        %v4598 = vpack.c.b16 %v3410, %v3406
        %v4599 = vpack.c.b16 %v3415, %v3411
        %v4600 = vpack.c.b16 %v3416, %v3412
        %v4601 = vpack.c.b16 %v3417, %v3413
        %v4602 = vpack.c.b16 %v3418, %v3414
        %v4603 = vpack.c.b16 %v3423, %v3419
        %v4604 = vpack.c.b16 %v3424, %v3420
        %v4605 = vpack.c.b16 %v3425, %v3421
        %v4606 = vpack.c.b16 %v3426, %v3422
        %v4607 = vpack.c.b16 %v3431, %v3427
        %v4608 = vpack.c.b16 %v3432, %v3428
        %v4609 = vpack.c.b16 %v3433, %v3429
        %v4610 = vpack.c.b16 %v3434, %v3430
        %v4611 = vpack.c.b16 %v3439, %v3435
        %v4612 = vpack.c.b16 %v3440, %v3436
        %v4613 = vpack.c.b16 %v3441, %v3437
        %v4614 = vpack.c.b16 %v3442, %v3438
        %v4615 = vpack.c.b16 %v3447, %v3443
        %v4616 = vpack.c.b16 %v3448, %v3444
        %v4617 = vpack.c.b16 %v3449, %v3445
        %v4618 = vpack.c.b16 %v3450, %v3446
        %v4619 = vpack.c.b16 %v3455, %v3451
        %v4620 = vpack.c.b16 %v3456, %v3452
        %v4621 = vpack.c.b16 %v3457, %v3453
        %v4622 = vpack.c.b16 %v3458, %v3454
        %v4623 = vpack.c.b16 %v3463, %v3459
        %v4624 = vpack.c.b16 %v3464, %v3460
        %v4625 = vpack.c.b16 %v3465, %v3461
        %v4626 = vpack.c.b16 %v3466, %v3462
        %v4627 = vpack.c.b16 %v3471, %v3467
        %v4628 = vpack.c.b16 %v3472, %v3468
        %v4629 = vpack.c.b16 %v3473, %v3469
        %v4630 = vpack.c.b16 %v3474, %v3470
        %v4631 = vpack.c.b16 %v3479, %v3475
        %v4632 = vpack.c.b16 %v3480, %v3476
        %v4633 = vpack.c.b16 %v3481, %v3477
        %v4634 = vpack.c.b16 %v3482, %v3478
        %v4635 = vpack.c.b16 %v3487, %v3483
        %v4636 = vpack.c.b16 %v3488, %v3484
        %v4637 = vpack.c.b16 %v3489, %v3485
        %v4638 = vpack.c.b16 %v3490, %v3486
        %v4639 = vpack.c.b16 %v3495, %v3491
        %v4640 = vpack.c.b16 %v3496, %v3492
        %v4641 = vpack.c.b16 %v3497, %v3493
        %v4642 = vpack.c.b16 %v3498, %v3494
        %v4643 = vpack.c.b16 %v3503, %v3499
        %v4644 = vpack.c.b16 %v3504, %v3500
        %v4645 = vpack.c.b16 %v3505, %v3501
        %v4646 = vpack.c.b16 %v3506, %v3502
        %v4647 = vpack.c.b16 %v3511, %v3507
        %v4648 = vpack.c.b16 %v3512, %v3508
        %v4649 = vpack.c.b16 %v3513, %v3509
        %v4650 = vpack.c.b16 %v3514, %v3510
        %v4651 = vpack.c.b16 %v3519, %v3515
        %v4652 = vpack.c.b16 %v3520, %v3516
        %v4653 = vpack.c.b16 %v3521, %v3517
        %v4654 = vpack.c.b16 %v3522, %v3518
        %v4655 = vpack.c.b16 %v3527, %v3523
        %v4656 = vpack.c.b16 %v3528, %v3524
        %v4657 = vpack.c.b16 %v3529, %v3525
        %v4658 = vpack.c.b16 %v3530, %v3526
        %v4659 = vpack.c.b16 %v3535, %v3531
        %v4660 = vpack.c.b16 %v3536, %v3532
        %v4661 = vpack.c.b16 %v3537, %v3533
        %v4662 = vpack.c.b16 %v3538, %v3534
        %v4663 = vpack.c.b16 %v3543, %v3539
        %v4664 = vpack.c.b16 %v3544, %v3540
        %v4665 = vpack.c.b16 %v3545, %v3541
        %v4666 = vpack.c.b16 %v3546, %v3542
        %v4667 = vpack.c.b16 %v3551, %v3547
        %v4668 = vpack.c.b16 %v3552, %v3548
        %v4669 = vpack.c.b16 %v3553, %v3549
        %v4670 = vpack.c.b16 %v3554, %v3550
        %v4671 = vpack.c.b16 %v3559, %v3555
        %v4672 = vpack.c.b16 %v3560, %v3556
        %v4673 = vpack.c.b16 %v3561, %v3557
        %v4674 = vpack.c.b16 %v3562, %v3558
        %v4675 = vpack.c.b16 %v3567, %v3563
        %v4676 = vpack.c.b16 %v3568, %v3564
        %v4677 = vpack.c.b16 %v3569, %v3565
        %v4678 = vpack.c.b16 %v3570, %v3566
        %v4679 = vpack.c.b16 %v3575, %v3571
        %v4680 = vpack.c.b16 %v3576, %v3572
        %v4681 = vpack.c.b16 %v3577, %v3573
        %v4682 = vpack.c.b16 %v3578, %v3574
        %v4683 = vpack.c.b16 %v3583, %v3579
        %v4684 = vpack.c.b16 %v3584, %v3580
        %v4685 = vpack.c.b16 %v3585, %v3581
        %v4686 = vpack.c.b16 %v3586, %v3582
        %v4687 = vpack.c.b16 %v3591, %v3587
        %v4688 = vpack.c.b16 %v3592, %v3588
        %v4689 = vpack.c.b16 %v3593, %v3589
        %v4690 = vpack.c.b16 %v3594, %v3590
        %v4691 = vpack.c.b16 %v3599, %v3595
        %v4692 = vpack.c.b16 %v3600, %v3596
        %v4693 = vpack.c.b16 %v3601, %v3597
        %v4694 = vpack.c.b16 %v3602, %v3598
        %v4695 = vpack.c.b16 %v3607, %v3603
        %v4696 = vpack.c.b16 %v3608, %v3604
        %v4697 = vpack.c.b16 %v3609, %v3605
        %v4698 = vpack.c.b16 %v3610, %v3606
        %v4699 = vpack.c.b16 %v3615, %v3611
        %v4700 = vpack.c.b16 %v3616, %v3612
        %v4701 = vpack.c.b16 %v3617, %v3613
        %v4702 = vpack.c.b16 %v3618, %v3614
        %v4703 = vpack.c.b16 %v3623, %v3619
        %v4704 = vpack.c.b16 %v3624, %v3620
        %v4705 = vpack.c.b16 %v3625, %v3621
        %v4706 = vpack.c.b16 %v3626, %v3622
        %v4707 = vpack.c.b16 %v3631, %v3627
        %v4708 = vpack.c.b16 %v3632, %v3628
        %v4709 = vpack.c.b16 %v3633, %v3629
        %v4710 = vpack.c.b16 %v3634, %v3630
        %v4711 = vpack.c.b16 %v3639, %v3635
        %v4712 = vpack.c.b16 %v3640, %v3636
        %v4713 = vpack.c.b16 %v3641, %v3637
        %v4714 = vpack.c.b16 %v3642, %v3638
        %v4715 = vpack.c.b16 %v3647, %v3643
        %v4716 = vpack.c.b16 %v3648, %v3644
        %v4717 = vpack.c.b16 %v3649, %v3645
        %v4718 = vpack.c.b16 %v3650, %v3646
        %v4719 = vpack.c.b16 %v3655, %v3651
        %v4720 = vpack.c.b16 %v3656, %v3652
        %v4721 = vpack.c.b16 %v3657, %v3653
        %v4722 = vpack.c.b16 %v3658, %v3654
        %v4723 = vpack.c.b16 %v3663, %v3659
        %v4724 = vpack.c.b16 %v3664, %v3660
        %v4725 = vpack.c.b16 %v3665, %v3661
        %v4726 = vpack.c.b16 %v3666, %v3662
        %v4727 = vpack.c.b16 %v3671, %v3667
        %v4728 = vpack.c.b16 %v3672, %v3668
        %v4729 = vpack.c.b16 %v3673, %v3669
        %v4730 = vpack.c.b16 %v3674, %v3670
        %v4731 = vpack.c.b16 %v3679, %v3675
        %v4732 = vpack.c.b16 %v3680, %v3676
        %v4733 = vpack.c.b16 %v3681, %v3677
        %v4734 = vpack.c.b16 %v3682, %v3678
        %v4735 = vpack.c.b16 %v3687, %v3683
        %v4736 = vpack.c.b16 %v3688, %v3684
        %v4737 = vpack.c.b16 %v3689, %v3685
        %v4738 = vpack.c.b16 %v3690, %v3686
        %v4739 = vpack.c.b16 %v3695, %v3691
        %v4740 = vpack.c.b16 %v3696, %v3692
        %v4741 = vpack.c.b16 %v3697, %v3693
        %v4742 = vpack.c.b16 %v3698, %v3694
        %v4743 = vpack.c.b16 %v3703, %v3699
        %v4744 = vpack.c.b16 %v3704, %v3700
        %v4745 = vpack.c.b16 %v3705, %v3701
        %v4746 = vpack.c.b16 %v3706, %v3702
        %v4747 = vpack.c.b16 %v3711, %v3707
        %v4748 = vpack.c.b16 %v3712, %v3708
        %v4749 = vpack.c.b16 %v3713, %v3709
        %v4750 = vpack.c.b16 %v3714, %v3710
        %v4751 = vpack.c.b16 %v3719, %v3715
        %v4752 = vpack.c.b16 %v3720, %v3716
        %v4753 = vpack.c.b16 %v3721, %v3717
        %v4754 = vpack.c.b16 %v3722, %v3718
        %v4755 = vpack.c.b16 %v3727, %v3723
        %v4756 = vpack.c.b16 %v3728, %v3724
        %v4757 = vpack.c.b16 %v3729, %v3725
        %v4758 = vpack.c.b16 %v3730, %v3726
        %v4759 = vpack.c.b16 %v3735, %v3731
        %v4760 = vpack.c.b16 %v3736, %v3732
        %v4761 = vpack.c.b16 %v3737, %v3733
        %v4762 = vpack.c.b16 %v3738, %v3734
        %v4763 = vpack.c.b16 %v3743, %v3739
        %v4764 = vpack.c.b16 %v3744, %v3740
        %v4765 = vpack.c.b16 %v3745, %v3741
        %v4766 = vpack.c.b16 %v3746, %v3742
        %v4767 = vpack.c.b16 %v3751, %v3747
        %v4768 = vpack.c.b16 %v3752, %v3748
        %v4769 = vpack.c.b16 %v3753, %v3749
        %v4770 = vpack.c.b16 %v3754, %v3750
        %v4771 = vpack.c.b16 %v3759, %v3755
        %v4772 = vpack.c.b16 %v3760, %v3756
        %v4773 = vpack.c.b16 %v3761, %v3757
        %v4774 = vpack.c.b16 %v3762, %v3758
        %v4775 = vpack.c.b16 %v3767, %v3763
        %v4776 = vpack.c.b16 %v3768, %v3764
        %v4777 = vpack.c.b16 %v3769, %v3765
        %v4778 = vpack.c.b16 %v3770, %v3766
        %v4779 = vpack.c.b16 %v3775, %v3771
        %v4780 = vpack.c.b16 %v3776, %v3772
        %v4781 = vpack.c.b16 %v3777, %v3773
        %v4782 = vpack.c.b16 %v3778, %v3774
        %v4783 = vpack.c.b16 %v3783, %v3779
        %v4784 = vpack.c.b16 %v3784, %v3780
        %v4785 = vpack.c.b16 %v3785, %v3781
        %v4786 = vpack.c.b16 %v3786, %v3782
        %v4787 = vpack.c.b16 %v3791, %v3787
        %v4788 = vpack.c.b16 %v3792, %v3788
        %v4789 = vpack.c.b16 %v3793, %v3789
        %v4790 = vpack.c.b16 %v3794, %v3790
        %v4791 = vpack.c.b16 %v3799, %v3795
        %v4792 = vpack.c.b16 %v3800, %v3796
        %v4793 = vpack.c.b16 %v3801, %v3797
        %v4794 = vpack.c.b16 %v3802, %v3798
        %v4795 = vpack.c.b16 %v3807, %v3803
        %v4796 = vpack.c.b16 %v3808, %v3804
        %v4797 = vpack.c.b16 %v3809, %v3805
        %v4798 = vpack.c.b16 %v3810, %v3806
        %v4799 = vpack.c.b16 %v3815, %v3811
        %v4800 = vpack.c.b16 %v3816, %v3812
        %v4801 = vpack.c.b16 %v3817, %v3813
        %v4802 = vpack.c.b16 %v3818, %v3814
        %v4803 = vpack.c.b16 %v3823, %v3819
        %v4804 = vpack.c.b16 %v3824, %v3820
        %v4805 = vpack.c.b16 %v3825, %v3821
        %v4806 = vpack.c.b16 %v3826, %v3822
        %v4807 = vpack.c.b16 %v3831, %v3827
        %v4808 = vpack.c.b16 %v3832, %v3828
        %v4809 = vpack.c.b16 %v3833, %v3829
        %v4810 = vpack.c.b16 %v3834, %v3830
        %v4811 = vpack.c.b16 %v3839, %v3835
        %v4812 = vpack.c.b16 %v3840, %v3836
        %v4813 = vpack.c.b16 %v3841, %v3837
        %v4814 = vpack.c.b16 %v3842, %v3838
        %v4815 = vpack.c.b16 %v3847, %v3843
        %v4816 = vpack.c.b16 %v3848, %v3844
        %v4817 = vpack.c.b16 %v3849, %v3845
        %v4818 = vpack.c.b16 %v3850, %v3846
        %v4819 = vpack.c.b16 %v3855, %v3851
        %v4820 = vpack.c.b16 %v3856, %v3852
        %v4821 = vpack.c.b16 %v3857, %v3853
        %v4822 = vpack.c.b16 %v3858, %v3854
        %v4823 = vpack.c.b16 %v3863, %v3859
        %v4824 = vpack.c.b16 %v3864, %v3860
        %v4825 = vpack.c.b16 %v3865, %v3861
        %v4826 = vpack.c.b16 %v3866, %v3862
        %v4827 = vpack.c.b16 %v3871, %v3867
        %v4828 = vpack.c.b16 %v3872, %v3868
        %v4829 = vpack.c.b16 %v3873, %v3869
        %v4830 = vpack.c.b16 %v3874, %v3870
        %v4831 = vpack.c.b16 %v3879, %v3875
        %v4832 = vpack.c.b16 %v3880, %v3876
        %v4833 = vpack.c.b16 %v3881, %v3877
        %v4834 = vpack.c.b16 %v3882, %v3878
        %v4835 = vpack.c.b16 %v3887, %v3883
        %v4836 = vpack.c.b16 %v3888, %v3884
        %v4837 = vpack.c.b16 %v3889, %v3885
        %v4838 = vpack.c.b16 %v3890, %v3886
        %v4839 = vpack.c.b16 %v3895, %v3891
        %v4840 = vpack.c.b16 %v3896, %v3892
        %v4841 = vpack.c.b16 %v3897, %v3893
        %v4842 = vpack.c.b16 %v3898, %v3894
        %v4843 = vpack.c.b16 %v3903, %v3899
        %v4844 = vpack.c.b16 %v3904, %v3900
        %v4845 = vpack.c.b16 %v3905, %v3901
        %v4846 = vpack.c.b16 %v3906, %v3902
        %v4847 = vpack.c.b16 %v3911, %v3907
        %v4848 = vpack.c.b16 %v3912, %v3908
        %v4849 = vpack.c.b16 %v3913, %v3909
        %v4850 = vpack.c.b16 %v3914, %v3910
        %v4851 = vpack.c.b16 %v3919, %v3915
        %v4852 = vpack.c.b16 %v3920, %v3916
        %v4853 = vpack.c.b16 %v3921, %v3917
        %v4854 = vpack.c.b16 %v3922, %v3918
        %v4855 = vpack.c.b16 %v3927, %v3923
        %v4856 = vpack.c.b16 %v3928, %v3924
        %v4857 = vpack.c.b16 %v3929, %v3925
        %v4858 = vpack.c.b16 %v3930, %v3926
        %v4859 = vpack.c.b16 %v3935, %v3931
        %v4860 = vpack.c.b16 %v3936, %v3932
        %v4861 = vpack.c.b16 %v3937, %v3933
        %v4862 = vpack.c.b16 %v3938, %v3934
        %v4863 = vpack.c.b16 %v3943, %v3939
        %v4864 = vpack.c.b16 %v3944, %v3940
        %v4865 = vpack.c.b16 %v3945, %v3941
        %v4866 = vpack.c.b16 %v3946, %v3942
        %v4867 = vpack.c.b16 %v3951, %v3947
        %v4868 = vpack.c.b16 %v3952, %v3948
        %v4869 = vpack.c.b16 %v3953, %v3949
        %v4870 = vpack.c.b16 %v3954, %v3950
        %v4871 = vpack.c.b16 %v3959, %v3955
        %v4872 = vpack.c.b16 %v3960, %v3956
        %v4873 = vpack.c.b16 %v3961, %v3957
        %v4874 = vpack.c.b16 %v3962, %v3958
        %v4875 = vpack.c.b16 %v3967, %v3963
        %v4876 = vpack.c.b16 %v3968, %v3964
        %v4877 = vpack.c.b16 %v3969, %v3965
        %v4878 = vpack.c.b16 %v3970, %v3966
        %v4879 = vpack.c.b16 %v3975, %v3971
        %v4880 = vpack.c.b16 %v3976, %v3972
        %v4881 = vpack.c.b16 %v3977, %v3973
        %v4882 = vpack.c.b16 %v3978, %v3974
        %v4883 = vpack.c.b16 %v3983, %v3979
        %v4884 = vpack.c.b16 %v3984, %v3980
        %v4885 = vpack.c.b16 %v3985, %v3981
        %v4886 = vpack.c.b16 %v3986, %v3982
        %v4887 = vpack.c.b16 %v3991, %v3987
        %v4888 = vpack.c.b16 %v3992, %v3988
        %v4889 = vpack.c.b16 %v3993, %v3989
        %v4890 = vpack.c.b16 %v3994, %v3990
        %v4891 = vpack.c.b16 %v3999, %v3995
        %v4892 = vpack.c.b16 %v4000, %v3996
        %v4893 = vpack.c.b16 %v4001, %v3997
        %v4894 = vpack.c.b16 %v4002, %v3998
        %v4895 = vpack.c.b16 %v4007, %v4003
        %v4896 = vpack.c.b16 %v4008, %v4004
        %v4897 = vpack.c.b16 %v4009, %v4005
        %v4898 = vpack.c.b16 %v4010, %v4006
        %v4899 = vpack.c.b16 %v4015, %v4011
        %v4900 = vpack.c.b16 %v4016, %v4012
        %v4901 = vpack.c.b16 %v4017, %v4013
        %v4902 = vpack.c.b16 %v4018, %v4014
        %v4903 = vpack.c.b16 %v4023, %v4019
        %v4904 = vpack.c.b16 %v4024, %v4020
        %v4905 = vpack.c.b16 %v4025, %v4021
        %v4906 = vpack.c.b16 %v4026, %v4022
        %v4907 = vpack.c.b16 %v4031, %v4027
        %v4908 = vpack.c.b16 %v4032, %v4028
        %v4909 = vpack.c.b16 %v4033, %v4029
        %v4910 = vpack.c.b16 %v4034, %v4030
        %v4911 = vpack.c.b16 %v4039, %v4035
        %v4912 = vpack.c.b16 %v4040, %v4036
        %v4913 = vpack.c.b16 %v4041, %v4037
        %v4914 = vpack.c.b16 %v4042, %v4038
        %v4915 = vpack.c.b16 %v4047, %v4043
        %v4916 = vpack.c.b16 %v4048, %v4044
        %v4917 = vpack.c.b16 %v4049, %v4045
        %v4918 = vpack.c.b16 %v4050, %v4046
        %v4919 = vpack.c.b16 %v4055, %v4051
        %v4920 = vpack.c.b16 %v4056, %v4052
        %v4921 = vpack.c.b16 %v4057, %v4053
        %v4922 = vpack.c.b16 %v4058, %v4054
        %5787 = vmatprep.subr.bf16.mxu0 %v4060
        %5788 = vmatpush1.bf16.msra.mxu0 %v4059
        %5789 = vmatprep.subr.bf16.mxu0 %v4064
        %5790 = vmatpush1.bf16.msra.mxu0 %v4063
        %5791 = vmatprep.subr.bf16.mxu0 %v4068
        %5792 = vmatpush1.bf16.msra.mxu0 %v4067
        %5793 = vmatprep.subr.bf16.mxu0 %v4072
        %5794 = vmatpush1.bf16.msra.mxu0 %v4071
        %5795 = vmatprep.subr.bf16.mxu0 %v4076
        %5796 = vmatpush1.bf16.msra.mxu0 %v4075
        %5797 = vmatprep.subr.bf16.mxu0 %v4080
        %5798 = vmatpush1.bf16.msra.mxu0 %v4079
        %5799 = vmatprep.subr.bf16.mxu0 %v4084
        %5800 = vmatpush1.bf16.msra.mxu0 %v4083
        %5801 = vmatprep.subr.bf16.mxu0 %v4088
        %5802 = vmatpush1.bf16.msra.mxu0 %v4087
        %5803 = vmatprep.subr.bf16.mxu0 %v4092
        %5804 = vmatpush1.bf16.msra.mxu0 %v4091
        %5805 = vmatprep.subr.bf16.mxu0 %v4096
        %5806 = vmatpush1.bf16.msra.mxu0 %v4095
        %5807 = vmatprep.subr.bf16.mxu0 %v4100
        %5808 = vmatpush1.bf16.msra.mxu0 %v4099
        %5809 = vmatprep.subr.bf16.mxu0 %v4104
        %5810 = vmatpush1.bf16.msra.mxu0 %v4103
        %5811 = vmatprep.subr.bf16.mxu0 %v4108
        %5812 = vmatpush1.bf16.msra.mxu0 %v4107
        %5813 = vmatprep.subr.bf16.mxu0 %v4112
        %5814 = vmatpush1.bf16.msra.mxu0 %v4111
        %5815 = vmatprep.subr.bf16.mxu0 %v4116
        %5816 = vmatpush1.bf16.msra.mxu0 %v4115
        %5817 = vmatprep.subr.bf16.mxu0 %v4120
        %5818 = vmatpush1.bf16.msra.mxu0 %v4119
        %5819 = vmatprep.mubr.bf16.mxu0 %v1414
        %5820 = vmatmul.mubr.bf16.gmra.mrb[0].mxu0 %v1413
        %v5821 = vpop.f32.mrb[0].mxu0
        %v5822 = vadd.f32 0.0, %v5821
        %v5823 = vpop.f32.mrb[0].mxu0
        %v5824 = vadd.f32 0.0, %v5823
        %v5825 = vpop.f32.mrb[0].mxu0
        %v5826 = vadd.f32 0.0, %v5825
        %v5827 = vpop.f32.mrb[0].mxu0
        %v5828 = vadd.f32 0.0, %v5827
        %5829 = vdwg.mxu0
        %5830 = vmatprep.subr.bf16.mxu0 %v4124
        %5831 = vmatpush1.bf16.msra.mxu0 %v4123
        %5832 = vmatprep.subr.bf16.mxu0 %v4128
        %5833 = vmatpush1.bf16.msra.mxu0 %v4127
        %5834 = vmatprep.subr.bf16.mxu0 %v4132
        %5835 = vmatpush1.bf16.msra.mxu0 %v4131
        %5836 = vmatprep.subr.bf16.mxu0 %v4136
        %5837 = vmatpush1.bf16.msra.mxu0 %v4135
        %5838 = vmatprep.subr.bf16.mxu0 %v4140
        %5839 = vmatpush1.bf16.msra.mxu0 %v4139
        %5840 = vmatprep.subr.bf16.mxu0 %v4144
        %5841 = vmatpush1.bf16.msra.mxu0 %v4143
        %5842 = vmatprep.subr.bf16.mxu0 %v4148
        %5843 = vmatpush1.bf16.msra.mxu0 %v4147
        %5844 = vmatprep.subr.bf16.mxu0 %v4152
        %5845 = vmatpush1.bf16.msra.mxu0 %v4151
        %5846 = vmatprep.subr.bf16.mxu0 %v4156
        %5847 = vmatpush1.bf16.msra.mxu0 %v4155
        %5848 = vmatprep.subr.bf16.mxu0 %v4160
        %5849 = vmatpush1.bf16.msra.mxu0 %v4159
        %5850 = vmatprep.subr.bf16.mxu0 %v4164
        %5851 = vmatpush1.bf16.msra.mxu0 %v4163
        %5852 = vmatprep.subr.bf16.mxu0 %v4168
        %5853 = vmatpush1.bf16.msra.mxu0 %v4167
        %5854 = vmatprep.subr.bf16.mxu0 %v4172
        %5855 = vmatpush1.bf16.msra.mxu0 %v4171
        %5856 = vmatprep.subr.bf16.mxu0 %v4176
        %5857 = vmatpush1.bf16.msra.mxu0 %v4175
        %5858 = vmatprep.subr.bf16.mxu0 %v4180
        %5859 = vmatpush1.bf16.msra.mxu0 %v4179
        %5860 = vmatprep.subr.bf16.mxu0 %v4184
        %5861 = vmatpush1.bf16.msra.mxu0 %v4183
        %5862 = vmatprep.mubr.bf16.mxu0 %v1416
        %5863 = vmatmul.mubr.bf16.gmra.mrb[0].mxu0 %v1415
        %v5864 = vpop.f32.mrb[0].mxu0
        %v5865 = vadd.f32 %v5822, %v5864
        %v5866 = vpop.f32.mrb[0].mxu0
        %v5867 = vadd.f32 %v5824, %v5866
        %v5868 = vpop.f32.mrb[0].mxu0
        %v5869 = vadd.f32 %v5826, %v5868
        %v5870 = vpop.f32.mrb[0].mxu0
        %v5871 = vadd.f32 %v5828, %v5870
        %5872 = vdwg.mxu0
        %5873 = vmatprep.subr.bf16.mxu0 %v4188
        %5874 = vmatpush1.bf16.msra.mxu0 %v4187
        %5875 = vmatprep.subr.bf16.mxu0 %v4192
        %5876 = vmatpush1.bf16.msra.mxu0 %v4191
        %5877 = vmatprep.subr.bf16.mxu0 %v4196
        %5878 = vmatpush1.bf16.msra.mxu0 %v4195
        %5879 = vmatprep.subr.bf16.mxu0 %v4200
        %5880 = vmatpush1.bf16.msra.mxu0 %v4199
        %5881 = vmatprep.subr.bf16.mxu0 %v4204
        %5882 = vmatpush1.bf16.msra.mxu0 %v4203
        %5883 = vmatprep.subr.bf16.mxu0 %v4208
        %5884 = vmatpush1.bf16.msra.mxu0 %v4207
        %5885 = vmatprep.subr.bf16.mxu0 %v4212
        %5886 = vmatpush1.bf16.msra.mxu0 %v4211
        %5887 = vmatprep.subr.bf16.mxu0 %v4216
        %5888 = vmatpush1.bf16.msra.mxu0 %v4215
        %5889 = vmatprep.subr.bf16.mxu0 %v4220
        %5890 = vmatpush1.bf16.msra.mxu0 %v4219
        %5891 = vmatprep.subr.bf16.mxu0 %v4224
        %5892 = vmatpush1.bf16.msra.mxu0 %v4223
        %5893 = vmatprep.subr.bf16.mxu0 %v4228
        %5894 = vmatpush1.bf16.msra.mxu0 %v4227
        %5895 = vmatprep.subr.bf16.mxu0 %v4232
        %5896 = vmatpush1.bf16.msra.mxu0 %v4231
        %5897 = vmatprep.subr.bf16.mxu0 %v4236
        %5898 = vmatpush1.bf16.msra.mxu0 %v4235
        %5899 = vmatprep.subr.bf16.mxu0 %v4240
        %5900 = vmatpush1.bf16.msra.mxu0 %v4239
        %5901 = vmatprep.subr.bf16.mxu0 %v4244
        %5902 = vmatpush1.bf16.msra.mxu0 %v4243
        %5903 = vmatprep.subr.bf16.mxu0 %v4248
        %5904 = vmatpush1.bf16.msra.mxu0 %v4247
        %5905 = vmatprep.mubr.bf16.mxu0 %v1418
        %5906 = vmatmul.mubr.bf16.gmra.mrb[0].mxu0 %v1417
        %v5907 = vpop.f32.mrb[0].mxu0
        %v5908 = vadd.f32 %v5865, %v5907
        %v5909 = vpop.f32.mrb[0].mxu0
        %v5910 = vadd.f32 %v5867, %v5909
        %v5911 = vpop.f32.mrb[0].mxu0
        %v5912 = vadd.f32 %v5869, %v5911
        %v5913 = vpop.f32.mrb[0].mxu0
        %v5914 = vadd.f32 %v5871, %v5913
        %5915 = vdwg.mxu0
        %5916 = vmatprep.subr.bf16.mxu0 %v4252
        %5917 = vmatpush1.bf16.msra.mxu0 %v4251
        %5918 = vmatprep.subr.bf16.mxu0 %v4256
        %5919 = vmatpush1.bf16.msra.mxu0 %v4255
        %5920 = vmatprep.subr.bf16.mxu0 %v4260
        %5921 = vmatpush1.bf16.msra.mxu0 %v4259
        %5922 = vmatprep.subr.bf16.mxu0 %v4264
        %5923 = vmatpush1.bf16.msra.mxu0 %v4263
        %5924 = vmatprep.subr.bf16.mxu0 %v4268
        %5925 = vmatpush1.bf16.msra.mxu0 %v4267
        %5926 = vmatprep.subr.bf16.mxu0 %v4272
        %5927 = vmatpush1.bf16.msra.mxu0 %v4271
        %5928 = vmatprep.subr.bf16.mxu0 %v4276
        %5929 = vmatpush1.bf16.msra.mxu0 %v4275
        %5930 = vmatprep.subr.bf16.mxu0 %v4280
        %5931 = vmatpush1.bf16.msra.mxu0 %v4279
        %5932 = vmatprep.subr.bf16.mxu0 %v4284
        %5933 = vmatpush1.bf16.msra.mxu0 %v4283
        %5934 = vmatprep.subr.bf16.mxu0 %v4288
        %5935 = vmatpush1.bf16.msra.mxu0 %v4287
        %5936 = vmatprep.subr.bf16.mxu0 %v4292
        %5937 = vmatpush1.bf16.msra.mxu0 %v4291
        %5938 = vmatprep.subr.bf16.mxu0 %v4296
        %5939 = vmatpush1.bf16.msra.mxu0 %v4295
        %5940 = vmatprep.subr.bf16.mxu0 %v4300
        %5941 = vmatpush1.bf16.msra.mxu0 %v4299
        %5942 = vmatprep.subr.bf16.mxu0 %v4304
        %5943 = vmatpush1.bf16.msra.mxu0 %v4303
        %5944 = vmatprep.subr.bf16.mxu0 %v4308
        %5945 = vmatpush1.bf16.msra.mxu0 %v4307
        %5946 = vmatprep.subr.bf16.mxu0 %v4312
        %5947 = vmatpush1.bf16.msra.mxu0 %v4311
        %5948 = vmatprep.mubr.bf16.mxu0 %v1420
        %5949 = vmatmul.mubr.bf16.gmra.mrb[0].mxu0 %v1419
        %v5950 = vpop.f32.mrb[0].mxu0
        %v5951 = vadd.f32 %v5908, %v5950
        %v5952 = vpop.f32.mrb[0].mxu0
        %v5953 = vadd.f32 %v5910, %v5952
        %v5954 = vpop.f32.mrb[0].mxu0
        %v5955 = vadd.f32 %v5912, %v5954
        %v5956 = vpop.f32.mrb[0].mxu0
        %v5957 = vadd.f32 %v5914, %v5956
        %5958 = vdwg.mxu0
        %5959 = vmatprep.subr.bf16.mxu0 %v4316
        %5960 = vmatpush1.bf16.msra.mxu0 %v4315
        %5961 = vmatprep.subr.bf16.mxu0 %v4320
        %5962 = vmatpush1.bf16.msra.mxu0 %v4319
        %5963 = vmatprep.subr.bf16.mxu0 %v4324
        %5964 = vmatpush1.bf16.msra.mxu0 %v4323
        %5965 = vmatprep.subr.bf16.mxu0 %v4328
        %5966 = vmatpush1.bf16.msra.mxu0 %v4327
        %5967 = vmatprep.subr.bf16.mxu0 %v4332
        %5968 = vmatpush1.bf16.msra.mxu0 %v4331
        %5969 = vmatprep.subr.bf16.mxu0 %v4336
        %5970 = vmatpush1.bf16.msra.mxu0 %v4335
        %5971 = vmatprep.subr.bf16.mxu0 %v4340
        %5972 = vmatpush1.bf16.msra.mxu0 %v4339
        %5973 = vmatprep.subr.bf16.mxu0 %v4344
        %5974 = vmatpush1.bf16.msra.mxu0 %v4343
        %5975 = vmatprep.subr.bf16.mxu0 %v4348
        %5976 = vmatpush1.bf16.msra.mxu0 %v4347
        %5977 = vmatprep.subr.bf16.mxu0 %v4352
        %5978 = vmatpush1.bf16.msra.mxu0 %v4351
        %5979 = vmatprep.subr.bf16.mxu0 %v4356
        %5980 = vmatpush1.bf16.msra.mxu0 %v4355
        %5981 = vmatprep.subr.bf16.mxu0 %v4360
        %5982 = vmatpush1.bf16.msra.mxu0 %v4359
        %5983 = vmatprep.subr.bf16.mxu0 %v4364
        %5984 = vmatpush1.bf16.msra.mxu0 %v4363
        %5985 = vmatprep.subr.bf16.mxu0 %v4368
        %5986 = vmatpush1.bf16.msra.mxu0 %v4367
        %5987 = vmatprep.subr.bf16.mxu0 %v4372
        %5988 = vmatpush1.bf16.msra.mxu0 %v4371
        %5989 = vmatprep.subr.bf16.mxu0 %v4376
        %5990 = vmatpush1.bf16.msra.mxu0 %v4375
        %5991 = vmatprep.mubr.bf16.mxu0 %v1422
        %5992 = vmatmul.mubr.bf16.gmra.mrb[0].mxu0 %v1421
        %v5993 = vpop.f32.mrb[0].mxu0
        %v5994 = vadd.f32 %v5951, %v5993
        %v5995 = vpop.f32.mrb[0].mxu0
        %v5996 = vadd.f32 %v5953, %v5995
        %v5997 = vpop.f32.mrb[0].mxu0
        %v5998 = vadd.f32 %v5955, %v5997
        %v5999 = vpop.f32.mrb[0].mxu0
        %v6000 = vadd.f32 %v5957, %v5999
        %6001 = vdwg.mxu0
        %6002 = vmatprep.subr.bf16.mxu0 %v4380
        %6003 = vmatpush1.bf16.msra.mxu0 %v4379
        %6004 = vmatprep.subr.bf16.mxu0 %v4384
        %6005 = vmatpush1.bf16.msra.mxu0 %v4383
        %6006 = vmatprep.subr.bf16.mxu0 %v4388
        %6007 = vmatpush1.bf16.msra.mxu0 %v4387
        %6008 = vmatprep.subr.bf16.mxu0 %v4392
        %6009 = vmatpush1.bf16.msra.mxu0 %v4391
        %6010 = vmatprep.subr.bf16.mxu0 %v4396
        %6011 = vmatpush1.bf16.msra.mxu0 %v4395
        %6012 = vmatprep.subr.bf16.mxu0 %v4400
        %6013 = vmatpush1.bf16.msra.mxu0 %v4399
        %6014 = vmatprep.subr.bf16.mxu0 %v4404
        %6015 = vmatpush1.bf16.msra.mxu0 %v4403
        %6016 = vmatprep.subr.bf16.mxu0 %v4408
        %6017 = vmatpush1.bf16.msra.mxu0 %v4407
        %6018 = vmatprep.subr.bf16.mxu0 %v4412
        %6019 = vmatpush1.bf16.msra.mxu0 %v4411
        %6020 = vmatprep.subr.bf16.mxu0 %v4416
        %6021 = vmatpush1.bf16.msra.mxu0 %v4415
        %6022 = vmatprep.subr.bf16.mxu0 %v4420
        %6023 = vmatpush1.bf16.msra.mxu0 %v4419
        %6024 = vmatprep.subr.bf16.mxu0 %v4424
        %6025 = vmatpush1.bf16.msra.mxu0 %v4423
        %6026 = vmatprep.subr.bf16.mxu0 %v4428
        %6027 = vmatpush1.bf16.msra.mxu0 %v4427
        %6028 = vmatprep.subr.bf16.mxu0 %v4432
        %6029 = vmatpush1.bf16.msra.mxu0 %v4431
        %6030 = vmatprep.subr.bf16.mxu0 %v4436
        %6031 = vmatpush1.bf16.msra.mxu0 %v4435
        %6032 = vmatprep.subr.bf16.mxu0 %v4440
        %6033 = vmatpush1.bf16.msra.mxu0 %v4439
        %6034 = vmatprep.mubr.bf16.mxu0 %v1424
        %6035 = vmatmul.mubr.bf16.gmra.mrb[0].mxu0 %v1423
        %v6036 = vpop.f32.mrb[0].mxu0
        %v6037 = vadd.f32 %v5994, %v6036
        %v6038 = vpop.f32.mrb[0].mxu0
        %v6039 = vadd.f32 %v5996, %v6038
        %v6040 = vpop.f32.mrb[0].mxu0
        %v6041 = vadd.f32 %v5998, %v6040
        %v6042 = vpop.f32.mrb[0].mxu0
        %v6043 = vadd.f32 %v6000, %v6042
        %6044 = vdwg.mxu0
        %6045 = vmatprep.subr.bf16.mxu0 %v4444
        %6046 = vmatpush1.bf16.msra.mxu0 %v4443
        %6047 = vmatprep.subr.bf16.mxu0 %v4448
        %6048 = vmatpush1.bf16.msra.mxu0 %v4447
        %6049 = vmatprep.subr.bf16.mxu0 %v4452
        %6050 = vmatpush1.bf16.msra.mxu0 %v4451
        %6051 = vmatprep.subr.bf16.mxu0 %v4456
        %6052 = vmatpush1.bf16.msra.mxu0 %v4455
        %6053 = vmatprep.subr.bf16.mxu0 %v4460
        %6054 = vmatpush1.bf16.msra.mxu0 %v4459
        %6055 = vmatprep.subr.bf16.mxu0 %v4464
        %6056 = vmatpush1.bf16.msra.mxu0 %v4463
        %6057 = vmatprep.subr.bf16.mxu0 %v4468
        %6058 = vmatpush1.bf16.msra.mxu0 %v4467
        %6059 = vmatprep.subr.bf16.mxu0 %v4472
        %6060 = vmatpush1.bf16.msra.mxu0 %v4471
        %6061 = vmatprep.subr.bf16.mxu0 %v4476
        %6062 = vmatpush1.bf16.msra.mxu0 %v4475
        %6063 = vmatprep.subr.bf16.mxu0 %v4480
        %6064 = vmatpush1.bf16.msra.mxu0 %v4479
        %6065 = vmatprep.subr.bf16.mxu0 %v4484
        %6066 = vmatpush1.bf16.msra.mxu0 %v4483
        %6067 = vmatprep.subr.bf16.mxu0 %v4488
        %6068 = vmatpush1.bf16.msra.mxu0 %v4487
        %6069 = vmatprep.subr.bf16.mxu0 %v4492
        %6070 = vmatpush1.bf16.msra.mxu0 %v4491
        %6071 = vmatprep.subr.bf16.mxu0 %v4496
        %6072 = vmatpush1.bf16.msra.mxu0 %v4495
        %6073 = vmatprep.subr.bf16.mxu0 %v4500
        %6074 = vmatpush1.bf16.msra.mxu0 %v4499
        %6075 = vmatprep.subr.bf16.mxu0 %v4504
        %6076 = vmatpush1.bf16.msra.mxu0 %v4503
        %6077 = vmatprep.mubr.bf16.mxu0 %v1426
        %6078 = vmatmul.mubr.bf16.gmra.mrb[0].mxu0 %v1425
        %v6079 = vpop.f32.mrb[0].mxu0
        %v6080 = vadd.f32 %v6037, %v6079
        %v6081 = vpop.f32.mrb[0].mxu0
        %v6082 = vadd.f32 %v6039, %v6081
        %v6083 = vpop.f32.mrb[0].mxu0
        %v6084 = vadd.f32 %v6041, %v6083
        %v6085 = vpop.f32.mrb[0].mxu0
        %v6086 = vadd.f32 %v6043, %v6085
        %6087 = vdwg.mxu0
        %6088 = vmatprep.subr.bf16.mxu0 %v4508
        %6089 = vmatpush1.bf16.msra.mxu0 %v4507
        %6090 = vmatprep.subr.bf16.mxu0 %v4512
        %6091 = vmatpush1.bf16.msra.mxu0 %v4511
        %6092 = vmatprep.subr.bf16.mxu0 %v4516
        %6093 = vmatpush1.bf16.msra.mxu0 %v4515
        %6094 = vmatprep.subr.bf16.mxu0 %v4520
        %6095 = vmatpush1.bf16.msra.mxu0 %v4519
        %6096 = vmatprep.subr.bf16.mxu0 %v4524
        %6097 = vmatpush1.bf16.msra.mxu0 %v4523
        %6098 = vmatprep.subr.bf16.mxu0 %v4528
        %6099 = vmatpush1.bf16.msra.mxu0 %v4527
        %6100 = vmatprep.subr.bf16.mxu0 %v4532
        %6101 = vmatpush1.bf16.msra.mxu0 %v4531
        %6102 = vmatprep.subr.bf16.mxu0 %v4536
        %6103 = vmatpush1.bf16.msra.mxu0 %v4535
        %6104 = vmatprep.subr.bf16.mxu0 %v4540
        %6105 = vmatpush1.bf16.msra.mxu0 %v4539
        %6106 = vmatprep.subr.bf16.mxu0 %v4544
        %6107 = vmatpush1.bf16.msra.mxu0 %v4543
        %6108 = vmatprep.subr.bf16.mxu0 %v4548
        %6109 = vmatpush1.bf16.msra.mxu0 %v4547
        %6110 = vmatprep.subr.bf16.mxu0 %v4552
        %6111 = vmatpush1.bf16.msra.mxu0 %v4551
        %6112 = vmatprep.subr.bf16.mxu0 %v4556
        %6113 = vmatpush1.bf16.msra.mxu0 %v4555
        %6114 = vmatprep.subr.bf16.mxu0 %v4560
        %6115 = vmatpush1.bf16.msra.mxu0 %v4559
        %6116 = vmatprep.subr.bf16.mxu0 %v4564
        %6117 = vmatpush1.bf16.msra.mxu0 %v4563
        %6118 = vmatprep.subr.bf16.mxu0 %v4568
        %6119 = vmatpush1.bf16.msra.mxu0 %v4567
        %6120 = vmatprep.mubr.bf16.mxu0 %v1428
        %6121 = vmatmul.mubr.bf16.gmra.mrb[0].mxu0 %v1427
        %v6122 = vpop.f32.mrb[0].mxu0
        %v6123 = vadd.f32 %v6080, %v6122
        %v6124 = vpop.f32.mrb[0].mxu0
        %v6125 = vadd.f32 %v6082, %v6124
        %v6126 = vpop.f32.mrb[0].mxu0
        %v6127 = vadd.f32 %v6084, %v6126
        %v6128 = vpop.f32.mrb[0].mxu0
        %v6129 = vadd.f32 %v6086, %v6128
        %6130 = vdwg.mxu0
        %6131 = vmatprep.subr.bf16.mxu0 %v4572
        %6132 = vmatpush1.bf16.msra.mxu0 %v4571
        %6133 = vmatprep.subr.bf16.mxu0 %v4576
        %6134 = vmatpush1.bf16.msra.mxu0 %v4575
        %6135 = vmatprep.subr.bf16.mxu0 %v4580
        %6136 = vmatpush1.bf16.msra.mxu0 %v4579
        %6137 = vmatprep.subr.bf16.mxu0 %v4584
        %6138 = vmatpush1.bf16.msra.mxu0 %v4583
        %6139 = vmatprep.subr.bf16.mxu0 %v4588
        %6140 = vmatpush1.bf16.msra.mxu0 %v4587
        %6141 = vmatprep.subr.bf16.mxu0 %v4592
        %6142 = vmatpush1.bf16.msra.mxu0 %v4591
        %6143 = vmatprep.subr.bf16.mxu0 %v4596
        %6144 = vmatpush1.bf16.msra.mxu0 %v4595
        %6145 = vmatprep.subr.bf16.mxu0 %v4600
        %6146 = vmatpush1.bf16.msra.mxu0 %v4599
        %6147 = vmatprep.subr.bf16.mxu0 %v4604
        %6148 = vmatpush1.bf16.msra.mxu0 %v4603
        %6149 = vmatprep.subr.bf16.mxu0 %v4608
        %6150 = vmatpush1.bf16.msra.mxu0 %v4607
        %6151 = vmatprep.subr.bf16.mxu0 %v4612
        %6152 = vmatpush1.bf16.msra.mxu0 %v4611
        %6153 = vmatprep.subr.bf16.mxu0 %v4616
        %6154 = vmatpush1.bf16.msra.mxu0 %v4615
        %6155 = vmatprep.subr.bf16.mxu0 %v4620
        %6156 = vmatpush1.bf16.msra.mxu0 %v4619
        %6157 = vmatprep.subr.bf16.mxu0 %v4624
        %6158 = vmatpush1.bf16.msra.mxu0 %v4623
        %6159 = vmatprep.subr.bf16.mxu0 %v4628
        %6160 = vmatpush1.bf16.msra.mxu0 %v4627
        %6161 = vmatprep.subr.bf16.mxu0 %v4632
        %6162 = vmatpush1.bf16.msra.mxu0 %v4631
        %6163 = vmatprep.mubr.bf16.mxu0 %v1430
        %6164 = vmatmul.mubr.bf16.gmra.mrb[0].mxu0 %v1429
        %v6165 = vpop.f32.mrb[0].mxu0
        %v6166 = vadd.f32 %v6123, %v6165
        %v6167 = vpop.f32.mrb[0].mxu0
        %v6168 = vadd.f32 %v6125, %v6167
        %v6169 = vpop.f32.mrb[0].mxu0
        %v6170 = vadd.f32 %v6127, %v6169
        %v6171 = vpop.f32.mrb[0].mxu0
        %v6172 = vadd.f32 %v6129, %v6171
        %6173 = vdwg.mxu0
        %6174 = vmatprep.subr.bf16.mxu0 %v4636
        %6175 = vmatpush1.bf16.msra.mxu0 %v4635
        %6176 = vmatprep.subr.bf16.mxu0 %v4640
        %6177 = vmatpush1.bf16.msra.mxu0 %v4639
        %6178 = vmatprep.subr.bf16.mxu0 %v4644
        %6179 = vmatpush1.bf16.msra.mxu0 %v4643
        %6180 = vmatprep.subr.bf16.mxu0 %v4648
        %6181 = vmatpush1.bf16.msra.mxu0 %v4647
        %6182 = vmatprep.subr.bf16.mxu0 %v4652
        %6183 = vmatpush1.bf16.msra.mxu0 %v4651
        %6184 = vmatprep.subr.bf16.mxu0 %v4656
        %6185 = vmatpush1.bf16.msra.mxu0 %v4655
        %6186 = vmatprep.subr.bf16.mxu0 %v4660
        %6187 = vmatpush1.bf16.msra.mxu0 %v4659
        %6188 = vmatprep.subr.bf16.mxu0 %v4664
        %6189 = vmatpush1.bf16.msra.mxu0 %v4663
        %6190 = vmatprep.subr.bf16.mxu0 %v4668
        %6191 = vmatpush1.bf16.msra.mxu0 %v4667
        %6192 = vmatprep.subr.bf16.mxu0 %v4672
        %6193 = vmatpush1.bf16.msra.mxu0 %v4671
        %6194 = vmatprep.subr.bf16.mxu0 %v4676
        %6195 = vmatpush1.bf16.msra.mxu0 %v4675
        %6196 = vmatprep.subr.bf16.mxu0 %v4680
        %6197 = vmatpush1.bf16.msra.mxu0 %v4679
        %6198 = vmatprep.subr.bf16.mxu0 %v4684
        %6199 = vmatpush1.bf16.msra.mxu0 %v4683
        %6200 = vmatprep.subr.bf16.mxu0 %v4688
        %6201 = vmatpush1.bf16.msra.mxu0 %v4687
        %6202 = vmatprep.subr.bf16.mxu0 %v4692
        %6203 = vmatpush1.bf16.msra.mxu0 %v4691
        %6204 = vmatprep.subr.bf16.mxu0 %v4696
        %6205 = vmatpush1.bf16.msra.mxu0 %v4695
        %6206 = vmatprep.mubr.bf16.mxu0 %v1432
        %6207 = vmatmul.mubr.bf16.gmra.mrb[0].mxu0 %v1431
        %v6208 = vpop.f32.mrb[0].mxu0
        %v6209 = vadd.f32 %v6166, %v6208
        %v6210 = vpop.f32.mrb[0].mxu0
        %v6211 = vadd.f32 %v6168, %v6210
        %v6212 = vpop.f32.mrb[0].mxu0
        %v6213 = vadd.f32 %v6170, %v6212
        %v6214 = vpop.f32.mrb[0].mxu0
        %v6215 = vadd.f32 %v6172, %v6214
        %6216 = vdwg.mxu0
        %6217 = vmatprep.subr.bf16.mxu0 %v4700
        %6218 = vmatpush1.bf16.msra.mxu0 %v4699
        %6219 = vmatprep.subr.bf16.mxu0 %v4704
        %6220 = vmatpush1.bf16.msra.mxu0 %v4703
        %6221 = vmatprep.subr.bf16.mxu0 %v4708
        %6222 = vmatpush1.bf16.msra.mxu0 %v4707
        %6223 = vmatprep.subr.bf16.mxu0 %v4712
        %6224 = vmatpush1.bf16.msra.mxu0 %v4711
        %6225 = vmatprep.subr.bf16.mxu0 %v4716
        %6226 = vmatpush1.bf16.msra.mxu0 %v4715
        %6227 = vmatprep.subr.bf16.mxu0 %v4720
        %6228 = vmatpush1.bf16.msra.mxu0 %v4719
        %6229 = vmatprep.subr.bf16.mxu0 %v4724
        %6230 = vmatpush1.bf16.msra.mxu0 %v4723
        %6231 = vmatprep.subr.bf16.mxu0 %v4728
        %6232 = vmatpush1.bf16.msra.mxu0 %v4727
        %6233 = vmatprep.subr.bf16.mxu0 %v4732
        %6234 = vmatpush1.bf16.msra.mxu0 %v4731
        %6235 = vmatprep.subr.bf16.mxu0 %v4736
        %6236 = vmatpush1.bf16.msra.mxu0 %v4735
        %6237 = vmatprep.subr.bf16.mxu0 %v4740
        %6238 = vmatpush1.bf16.msra.mxu0 %v4739
        %6239 = vmatprep.subr.bf16.mxu0 %v4744
        %6240 = vmatpush1.bf16.msra.mxu0 %v4743
        %6241 = vmatprep.subr.bf16.mxu0 %v4748
        %6242 = vmatpush1.bf16.msra.mxu0 %v4747
        %6243 = vmatprep.subr.bf16.mxu0 %v4752
        %6244 = vmatpush1.bf16.msra.mxu0 %v4751
        %6245 = vmatprep.subr.bf16.mxu0 %v4756
        %6246 = vmatpush1.bf16.msra.mxu0 %v4755
        %6247 = vmatprep.subr.bf16.mxu0 %v4760
        %6248 = vmatpush1.bf16.msra.mxu0 %v4759
        %6249 = vmatprep.mubr.bf16.mxu0 %v1434
        %6250 = vmatmul.mubr.bf16.gmra.mrb[0].mxu0 %v1433
        %v6251 = vpop.f32.mrb[0].mxu0
        %v6252 = vadd.f32 %v6209, %v6251
        %v6253 = vpop.f32.mrb[0].mxu0
        %v6254 = vadd.f32 %v6211, %v6253
        %v6255 = vpop.f32.mrb[0].mxu0
        %v6256 = vadd.f32 %v6213, %v6255
        %v6257 = vpop.f32.mrb[0].mxu0
        %v6258 = vadd.f32 %v6215, %v6257
        %6259 = vdwg.mxu0
        %6260 = vmatprep.subr.bf16.mxu0 %v4764
        %6261 = vmatpush1.bf16.msra.mxu0 %v4763
        %6262 = vmatprep.subr.bf16.mxu0 %v4768
        %6263 = vmatpush1.bf16.msra.mxu0 %v4767
        %6264 = vmatprep.subr.bf16.mxu0 %v4772
        %6265 = vmatpush1.bf16.msra.mxu0 %v4771
        %6266 = vmatprep.subr.bf16.mxu0 %v4776
        %6267 = vmatpush1.bf16.msra.mxu0 %v4775
        %6268 = vmatprep.subr.bf16.mxu0 %v4780
        %6269 = vmatpush1.bf16.msra.mxu0 %v4779
        %6270 = vmatprep.subr.bf16.mxu0 %v4784
        %6271 = vmatpush1.bf16.msra.mxu0 %v4783
        %6272 = vmatprep.subr.bf16.mxu0 %v4788
        %6273 = vmatpush1.bf16.msra.mxu0 %v4787
        %6274 = vmatprep.subr.bf16.mxu0 %v4792
        %6275 = vmatpush1.bf16.msra.mxu0 %v4791
        %6276 = vmatprep.subr.bf16.mxu0 %v4796
        %6277 = vmatpush1.bf16.msra.mxu0 %v4795
        %6278 = vmatprep.subr.bf16.mxu0 %v4800
        %6279 = vmatpush1.bf16.msra.mxu0 %v4799
        %6280 = vmatprep.subr.bf16.mxu0 %v4804
        %6281 = vmatpush1.bf16.msra.mxu0 %v4803
        %6282 = vmatprep.subr.bf16.mxu0 %v4808
        %6283 = vmatpush1.bf16.msra.mxu0 %v4807
        %6284 = vmatprep.subr.bf16.mxu0 %v4812
        %6285 = vmatpush1.bf16.msra.mxu0 %v4811
        %6286 = vmatprep.subr.bf16.mxu0 %v4816
        %6287 = vmatpush1.bf16.msra.mxu0 %v4815
        %6288 = vmatprep.subr.bf16.mxu0 %v4820
        %6289 = vmatpush1.bf16.msra.mxu0 %v4819
        %6290 = vmatprep.subr.bf16.mxu0 %v4824
        %6291 = vmatpush1.bf16.msra.mxu0 %v4823
        %6292 = vmatprep.mubr.bf16.mxu0 %v1436
        %6293 = vmatmul.mubr.bf16.gmra.mrb[0].mxu0 %v1435
        %v6294 = vpop.f32.mrb[0].mxu0
        %v6295 = vadd.f32 %v6252, %v6294
        %v6296 = vpop.f32.mrb[0].mxu0
        %v6297 = vadd.f32 %v6254, %v6296
        %v6298 = vpop.f32.mrb[0].mxu0
        %v6299 = vadd.f32 %v6256, %v6298
        %v6300 = vpop.f32.mrb[0].mxu0
        %v6301 = vadd.f32 %v6258, %v6300
        %6302 = vdwg.mxu0
        %6303 = vmatprep.subr.bf16.mxu0 %v4828
        %6304 = vmatpush1.bf16.msra.mxu0 %v4827
        %6305 = vmatprep.subr.bf16.mxu0 %v4832
        %6306 = vmatpush1.bf16.msra.mxu0 %v4831
        %6307 = vmatprep.subr.bf16.mxu0 %v4836
        %6308 = vmatpush1.bf16.msra.mxu0 %v4835
        %6309 = vmatprep.subr.bf16.mxu0 %v4840
        %6310 = vmatpush1.bf16.msra.mxu0 %v4839
        %6311 = vmatprep.subr.bf16.mxu0 %v4844
        %6312 = vmatpush1.bf16.msra.mxu0 %v4843
        %6313 = vmatprep.subr.bf16.mxu0 %v4848
        %6314 = vmatpush1.bf16.msra.mxu0 %v4847
        %6315 = vmatprep.subr.bf16.mxu0 %v4852
        %6316 = vmatpush1.bf16.msra.mxu0 %v4851
        %6317 = vmatprep.subr.bf16.mxu0 %v4856
        %6318 = vmatpush1.bf16.msra.mxu0 %v4855
        %6319 = vmatprep.subr.bf16.mxu0 %v4860
        %6320 = vmatpush1.bf16.msra.mxu0 %v4859
        %6321 = vmatprep.subr.bf16.mxu0 %v4864
        %6322 = vmatpush1.bf16.msra.mxu0 %v4863
        %6323 = vmatprep.subr.bf16.mxu0 %v4868
        %6324 = vmatpush1.bf16.msra.mxu0 %v4867
        %6325 = vmatprep.subr.bf16.mxu0 %v4872
        %6326 = vmatpush1.bf16.msra.mxu0 %v4871
        %6327 = vmatprep.subr.bf16.mxu0 %v4876
        %6328 = vmatpush1.bf16.msra.mxu0 %v4875
        %6329 = vmatprep.subr.bf16.mxu0 %v4880
        %6330 = vmatpush1.bf16.msra.mxu0 %v4879
        %6331 = vmatprep.subr.bf16.mxu0 %v4884
        %6332 = vmatpush1.bf16.msra.mxu0 %v4883
        %6333 = vmatprep.subr.bf16.mxu0 %v4888
        %6334 = vmatpush1.bf16.msra.mxu0 %v4887
        %6335 = vmatprep.mubr.bf16.mxu0 %v1438
        %6336 = vmatmul.mubr.bf16.gmra.mrb[0].mxu0 %v1437
        %v6337 = vpop.f32.mrb[0].mxu0
        %v6338 = vadd.f32 %v6295, %v6337
        %v6339 = vpop.f32.mrb[0].mxu0
        %v6340 = vadd.f32 %v6297, %v6339
        %v6341 = vpop.f32.mrb[0].mxu0
        %v6342 = vadd.f32 %v6299, %v6341
        %v6343 = vpop.f32.mrb[0].mxu0
        %v6344 = vadd.f32 %v6301, %v6343
        %6345 = vdwg.mxu0
        %6346 = vmatprep.subr.bf16.mxu0 %v4892
        %6347 = vmatpush1.bf16.msra.mxu0 %v4891
        %6348 = vmatprep.subr.bf16.mxu0 %v4896
        %6349 = vmatpush1.bf16.msra.mxu0 %v4895
        %6350 = vmatprep.subr.bf16.mxu0 %v4900
        %6351 = vmatpush1.bf16.msra.mxu0 %v4899
        %6352 = vmatprep.subr.bf16.mxu0 %v4904
        %6353 = vmatpush1.bf16.msra.mxu0 %v4903
        %6354 = vmatprep.subr.bf16.mxu0 %v4908
        %6355 = vmatpush1.bf16.msra.mxu0 %v4907
        %6356 = vmatprep.subr.bf16.mxu0 %v4912
        %6357 = vmatpush1.bf16.msra.mxu0 %v4911
        %6358 = vmatprep.subr.bf16.mxu0 %v4916
        %6359 = vmatpush1.bf16.msra.mxu0 %v4915
        %6360 = vmatprep.subr.bf16.mxu0 %v4920
        %6361 = vmatpush1.bf16.msra.mxu0 %v4919
        %6362 = vmatprep.subr.bf16.mxu0 0
        %6363 = vmatpush1.bf16.msra.mxu0 0
        %6364 = vmatprep.subr.bf16.mxu0 0
        %6365 = vmatpush1.bf16.msra.mxu0 0
        %6366 = vmatprep.subr.bf16.mxu0 0
        %6367 = vmatpush1.bf16.msra.mxu0 0
        %6368 = vmatprep.subr.bf16.mxu0 0
        %6369 = vmatpush1.bf16.msra.mxu0 0
        %6370 = vmatprep.subr.bf16.mxu0 0
        %6371 = vmatpush1.bf16.msra.mxu0 0
        %6372 = vmatprep.subr.bf16.mxu0 0
        %6373 = vmatpush1.bf16.msra.mxu0 0
        %6374 = vmatprep.subr.bf16.mxu0 0
        %6375 = vmatpush1.bf16.msra.mxu0 0
        %6376 = vmatprep.subr.bf16.mxu0 0
        %6377 = vmatpush1.bf16.msra.mxu0 0
        %6378 = vmatprep.mubr.bf16.mxu0 0
        %6379 = vmatmul.mubr.bf16.gmra.mrb[0].mxu0 %v1439
        %v6380 = vpop.f32.mrb[0].mxu0
        %v6381 = vadd.f32 %v6338, %v6380
        %v6382 = vpop.f32.mrb[0].mxu0
        %v6383 = vadd.f32 %v6340, %v6382
        %v6384 = vpop.f32.mrb[0].mxu0
        %v6385 = vadd.f32 %v6342, %v6384
        %v6386 = vpop.f32.mrb[0].mxu0
        %v6387 = vadd.f32 %v6344, %v6386
        %6388 = vdwg.mxu0
        %6389 = vmatprep.subr.bf16.mxu0 %v4062
        %6390 = vmatpush1.bf16.msra.mxu0 %v4061
        %6391 = vmatprep.subr.bf16.mxu0 %v4066
        %6392 = vmatpush1.bf16.msra.mxu0 %v4065
        %6393 = vmatprep.subr.bf16.mxu0 %v4070
        %6394 = vmatpush1.bf16.msra.mxu0 %v4069
        %6395 = vmatprep.subr.bf16.mxu0 %v4074
        %6396 = vmatpush1.bf16.msra.mxu0 %v4073
        %6397 = vmatprep.subr.bf16.mxu0 %v4078
        %6398 = vmatpush1.bf16.msra.mxu0 %v4077
        %6399 = vmatprep.subr.bf16.mxu0 %v4082
        %6400 = vmatpush1.bf16.msra.mxu0 %v4081
        %6401 = vmatprep.subr.bf16.mxu0 %v4086
        %6402 = vmatpush1.bf16.msra.mxu0 %v4085
        %6403 = vmatprep.subr.bf16.mxu0 %v4090
        %6404 = vmatpush1.bf16.msra.mxu0 %v4089
        %6405 = vmatprep.subr.bf16.mxu0 %v4094
        %6406 = vmatpush1.bf16.msra.mxu0 %v4093
        %6407 = vmatprep.subr.bf16.mxu0 %v4098
        %6408 = vmatpush1.bf16.msra.mxu0 %v4097
        %6409 = vmatprep.subr.bf16.mxu0 %v4102
        %6410 = vmatpush1.bf16.msra.mxu0 %v4101
        %6411 = vmatprep.subr.bf16.mxu0 %v4106
        %6412 = vmatpush1.bf16.msra.mxu0 %v4105
        %6413 = vmatprep.subr.bf16.mxu0 %v4110
        %6414 = vmatpush1.bf16.msra.mxu0 %v4109
        %6415 = vmatprep.subr.bf16.mxu0 %v4114
        %6416 = vmatpush1.bf16.msra.mxu0 %v4113
        %6417 = vmatprep.subr.bf16.mxu0 %v4118
        %6418 = vmatpush1.bf16.msra.mxu0 %v4117
        %6419 = vmatprep.subr.bf16.mxu0 %v4122
        %6420 = vmatpush1.bf16.msra.mxu0 %v4121
        %6421 = vmatprep.mubr.bf16.mxu0 %v1414
        %6422 = vmatmul.mubr.bf16.gmra.mrb[0].mxu0 %v1413
        %v6423 = vpop.f32.mrb[0].mxu0
        %v6424 = vadd.f32 0.0, %v6423
        %v6425 = vpop.f32.mrb[0].mxu0
        %v6426 = vadd.f32 0.0, %v6425
        %v6427 = vpop.f32.mrb[0].mxu0
        %v6428 = vadd.f32 0.0, %v6427
        %v6429 = vpop.f32.mrb[0].mxu0
        %v6430 = vadd.f32 0.0, %v6429
        %6431 = vdwg.mxu0
        %6432 = vmatprep.subr.bf16.mxu0 %v4126
        %6433 = vmatpush1.bf16.msra.mxu0 %v4125
        %6434 = vmatprep.subr.bf16.mxu0 %v4130
        %6435 = vmatpush1.bf16.msra.mxu0 %v4129
        %6436 = vmatprep.subr.bf16.mxu0 %v4134
        %6437 = vmatpush1.bf16.msra.mxu0 %v4133
        %6438 = vmatprep.subr.bf16.mxu0 %v4138
        %6439 = vmatpush1.bf16.msra.mxu0 %v4137
        %6440 = vmatprep.subr.bf16.mxu0 %v4142
        %6441 = vmatpush1.bf16.msra.mxu0 %v4141
        %6442 = vmatprep.subr.bf16.mxu0 %v4146
        %6443 = vmatpush1.bf16.msra.mxu0 %v4145
        %6444 = vmatprep.subr.bf16.mxu0 %v4150
        %6445 = vmatpush1.bf16.msra.mxu0 %v4149
        %6446 = vmatprep.subr.bf16.mxu0 %v4154
        %6447 = vmatpush1.bf16.msra.mxu0 %v4153
        %6448 = vmatprep.subr.bf16.mxu0 %v4158
        %6449 = vmatpush1.bf16.msra.mxu0 %v4157
        %6450 = vmatprep.subr.bf16.mxu0 %v4162
        %6451 = vmatpush1.bf16.msra.mxu0 %v4161
        %6452 = vmatprep.subr.bf16.mxu0 %v4166
        %6453 = vmatpush1.bf16.msra.mxu0 %v4165
        %6454 = vmatprep.subr.bf16.mxu0 %v4170
        %6455 = vmatpush1.bf16.msra.mxu0 %v4169
        %6456 = vmatprep.subr.bf16.mxu0 %v4174
        %6457 = vmatpush1.bf16.msra.mxu0 %v4173
        %6458 = vmatprep.subr.bf16.mxu0 %v4178
        %6459 = vmatpush1.bf16.msra.mxu0 %v4177
        %6460 = vmatprep.subr.bf16.mxu0 %v4182
        %6461 = vmatpush1.bf16.msra.mxu0 %v4181
        %6462 = vmatprep.subr.bf16.mxu0 %v4186
        %6463 = vmatpush1.bf16.msra.mxu0 %v4185
        %6464 = vmatprep.mubr.bf16.mxu0 %v1416
        %6465 = vmatmul.mubr.bf16.gmra.mrb[0].mxu0 %v1415
        %v6466 = vpop.f32.mrb[0].mxu0
        %v6467 = vadd.f32 %v6424, %v6466
        %v6468 = vpop.f32.mrb[0].mxu0
        %v6469 = vadd.f32 %v6426, %v6468
        %v6470 = vpop.f32.mrb[0].mxu0
        %v6471 = vadd.f32 %v6428, %v6470
        %v6472 = vpop.f32.mrb[0].mxu0
        %v6473 = vadd.f32 %v6430, %v6472
        %6474 = vdwg.mxu0
        %6475 = vmatprep.subr.bf16.mxu0 %v4190
        %6476 = vmatpush1.bf16.msra.mxu0 %v4189
        %6477 = vmatprep.subr.bf16.mxu0 %v4194
        %6478 = vmatpush1.bf16.msra.mxu0 %v4193
        %6479 = vmatprep.subr.bf16.mxu0 %v4198
        %6480 = vmatpush1.bf16.msra.mxu0 %v4197
        %6481 = vmatprep.subr.bf16.mxu0 %v4202
        %6482 = vmatpush1.bf16.msra.mxu0 %v4201
        %6483 = vmatprep.subr.bf16.mxu0 %v4206
        %6484 = vmatpush1.bf16.msra.mxu0 %v4205
        %6485 = vmatprep.subr.bf16.mxu0 %v4210
        %6486 = vmatpush1.bf16.msra.mxu0 %v4209
        %6487 = vmatprep.subr.bf16.mxu0 %v4214
        %6488 = vmatpush1.bf16.msra.mxu0 %v4213
        %6489 = vmatprep.subr.bf16.mxu0 %v4218
        %6490 = vmatpush1.bf16.msra.mxu0 %v4217
        %6491 = vmatprep.subr.bf16.mxu0 %v4222
        %6492 = vmatpush1.bf16.msra.mxu0 %v4221
        %6493 = vmatprep.subr.bf16.mxu0 %v4226
        %6494 = vmatpush1.bf16.msra.mxu0 %v4225
        %6495 = vmatprep.subr.bf16.mxu0 %v4230
        %6496 = vmatpush1.bf16.msra.mxu0 %v4229
        %6497 = vmatprep.subr.bf16.mxu0 %v4234
        %6498 = vmatpush1.bf16.msra.mxu0 %v4233
        %6499 = vmatprep.subr.bf16.mxu0 %v4238
        %6500 = vmatpush1.bf16.msra.mxu0 %v4237
        %6501 = vmatprep.subr.bf16.mxu0 %v4242
        %6502 = vmatpush1.bf16.msra.mxu0 %v4241
        %6503 = vmatprep.subr.bf16.mxu0 %v4246
        %6504 = vmatpush1.bf16.msra.mxu0 %v4245
        %6505 = vmatprep.subr.bf16.mxu0 %v4250
        %6506 = vmatpush1.bf16.msra.mxu0 %v4249
        %6507 = vmatprep.mubr.bf16.mxu0 %v1418
        %6508 = vmatmul.mubr.bf16.gmra.mrb[0].mxu0 %v1417
        %v6509 = vpop.f32.mrb[0].mxu0
        %v6510 = vadd.f32 %v6467, %v6509
        %v6511 = vpop.f32.mrb[0].mxu0
        %v6512 = vadd.f32 %v6469, %v6511
        %v6513 = vpop.f32.mrb[0].mxu0
        %v6514 = vadd.f32 %v6471, %v6513
        %v6515 = vpop.f32.mrb[0].mxu0
        %v6516 = vadd.f32 %v6473, %v6515
        %6517 = vdwg.mxu0
        %6518 = vmatprep.subr.bf16.mxu0 %v4254
        %6519 = vmatpush1.bf16.msra.mxu0 %v4253
        %6520 = vmatprep.subr.bf16.mxu0 %v4258
        %6521 = vmatpush1.bf16.msra.mxu0 %v4257
        %6522 = vmatprep.subr.bf16.mxu0 %v4262
        %6523 = vmatpush1.bf16.msra.mxu0 %v4261
        %6524 = vmatprep.subr.bf16.mxu0 %v4266
        %6525 = vmatpush1.bf16.msra.mxu0 %v4265
        %6526 = vmatprep.subr.bf16.mxu0 %v4270
        %6527 = vmatpush1.bf16.msra.mxu0 %v4269
        %6528 = vmatprep.subr.bf16.mxu0 %v4274
        %6529 = vmatpush1.bf16.msra.mxu0 %v4273
        %6530 = vmatprep.subr.bf16.mxu0 %v4278
        %6531 = vmatpush1.bf16.msra.mxu0 %v4277
        %6532 = vmatprep.subr.bf16.mxu0 %v4282
        %6533 = vmatpush1.bf16.msra.mxu0 %v4281
        %6534 = vmatprep.subr.bf16.mxu0 %v4286
        %6535 = vmatpush1.bf16.msra.mxu0 %v4285
        %6536 = vmatprep.subr.bf16.mxu0 %v4290
        %6537 = vmatpush1.bf16.msra.mxu0 %v4289
        %6538 = vmatprep.subr.bf16.mxu0 %v4294
        %6539 = vmatpush1.bf16.msra.mxu0 %v4293
        %6540 = vmatprep.subr.bf16.mxu0 %v4298
        %6541 = vmatpush1.bf16.msra.mxu0 %v4297
        %6542 = vmatprep.subr.bf16.mxu0 %v4302
        %6543 = vmatpush1.bf16.msra.mxu0 %v4301
        %6544 = vmatprep.subr.bf16.mxu0 %v4306
        %6545 = vmatpush1.bf16.msra.mxu0 %v4305
        %6546 = vmatprep.subr.bf16.mxu0 %v4310
        %6547 = vmatpush1.bf16.msra.mxu0 %v4309
        %6548 = vmatprep.subr.bf16.mxu0 %v4314
        %6549 = vmatpush1.bf16.msra.mxu0 %v4313
        %6550 = vmatprep.mubr.bf16.mxu0 %v1420
        %6551 = vmatmul.mubr.bf16.gmra.mrb[0].mxu0 %v1419
        %v6552 = vpop.f32.mrb[0].mxu0
        %v6553 = vadd.f32 %v6510, %v6552
        %v6554 = vpop.f32.mrb[0].mxu0
        %v6555 = vadd.f32 %v6512, %v6554
        %v6556 = vpop.f32.mrb[0].mxu0
        %v6557 = vadd.f32 %v6514, %v6556
        %v6558 = vpop.f32.mrb[0].mxu0
        %v6559 = vadd.f32 %v6516, %v6558
        %6560 = vdwg.mxu0
        %6561 = vmatprep.subr.bf16.mxu0 %v4318
        %6562 = vmatpush1.bf16.msra.mxu0 %v4317
        %6563 = vmatprep.subr.bf16.mxu0 %v4322
        %6564 = vmatpush1.bf16.msra.mxu0 %v4321
        %6565 = vmatprep.subr.bf16.mxu0 %v4326
        %6566 = vmatpush1.bf16.msra.mxu0 %v4325
        %6567 = vmatprep.subr.bf16.mxu0 %v4330
        %6568 = vmatpush1.bf16.msra.mxu0 %v4329
        %6569 = vmatprep.subr.bf16.mxu0 %v4334
        %6570 = vmatpush1.bf16.msra.mxu0 %v4333
        %6571 = vmatprep.subr.bf16.mxu0 %v4338
        %6572 = vmatpush1.bf16.msra.mxu0 %v4337
        %6573 = vmatprep.subr.bf16.mxu0 %v4342
        %6574 = vmatpush1.bf16.msra.mxu0 %v4341
        %6575 = vmatprep.subr.bf16.mxu0 %v4346
        %6576 = vmatpush1.bf16.msra.mxu0 %v4345
        %6577 = vmatprep.subr.bf16.mxu0 %v4350
        %6578 = vmatpush1.bf16.msra.mxu0 %v4349
        %6579 = vmatprep.subr.bf16.mxu0 %v4354
        %6580 = vmatpush1.bf16.msra.mxu0 %v4353
        %6581 = vmatprep.subr.bf16.mxu0 %v4358
        %6582 = vmatpush1.bf16.msra.mxu0 %v4357
        %6583 = vmatprep.subr.bf16.mxu0 %v4362
        %6584 = vmatpush1.bf16.msra.mxu0 %v4361
        %6585 = vmatprep.subr.bf16.mxu0 %v4366
        %6586 = vmatpush1.bf16.msra.mxu0 %v4365
        %6587 = vmatprep.subr.bf16.mxu0 %v4370
        %6588 = vmatpush1.bf16.msra.mxu0 %v4369
        %6589 = vmatprep.subr.bf16.mxu0 %v4374
        %6590 = vmatpush1.bf16.msra.mxu0 %v4373
        %6591 = vmatprep.subr.bf16.mxu0 %v4378
        %6592 = vmatpush1.bf16.msra.mxu0 %v4377
        %6593 = vmatprep.mubr.bf16.mxu0 %v1422
        %6594 = vmatmul.mubr.bf16.gmra.mrb[0].mxu0 %v1421
        %v6595 = vpop.f32.mrb[0].mxu0
        %v6596 = vadd.f32 %v6553, %v6595
        %v6597 = vpop.f32.mrb[0].mxu0
        %v6598 = vadd.f32 %v6555, %v6597
        %v6599 = vpop.f32.mrb[0].mxu0
        %v6600 = vadd.f32 %v6557, %v6599
        %v6601 = vpop.f32.mrb[0].mxu0
        %v6602 = vadd.f32 %v6559, %v6601
        %6603 = vdwg.mxu0
        %6604 = vmatprep.subr.bf16.mxu0 %v4382
        %6605 = vmatpush1.bf16.msra.mxu0 %v4381
        %6606 = vmatprep.subr.bf16.mxu0 %v4386
        %6607 = vmatpush1.bf16.msra.mxu0 %v4385
        %6608 = vmatprep.subr.bf16.mxu0 %v4390
        %6609 = vmatpush1.bf16.msra.mxu0 %v4389
        %6610 = vmatprep.subr.bf16.mxu0 %v4394
        %6611 = vmatpush1.bf16.msra.mxu0 %v4393
        %6612 = vmatprep.subr.bf16.mxu0 %v4398
        %6613 = vmatpush1.bf16.msra.mxu0 %v4397
        %6614 = vmatprep.subr.bf16.mxu0 %v4402
        %6615 = vmatpush1.bf16.msra.mxu0 %v4401
        %6616 = vmatprep.subr.bf16.mxu0 %v4406
        %6617 = vmatpush1.bf16.msra.mxu0 %v4405
        %6618 = vmatprep.subr.bf16.mxu0 %v4410
        %6619 = vmatpush1.bf16.msra.mxu0 %v4409
        %6620 = vmatprep.subr.bf16.mxu0 %v4414
        %6621 = vmatpush1.bf16.msra.mxu0 %v4413
        %6622 = vmatprep.subr.bf16.mxu0 %v4418
        %6623 = vmatpush1.bf16.msra.mxu0 %v4417
        %6624 = vmatprep.subr.bf16.mxu0 %v4422
        %6625 = vmatpush1.bf16.msra.mxu0 %v4421
        %6626 = vmatprep.subr.bf16.mxu0 %v4426
        %6627 = vmatpush1.bf16.msra.mxu0 %v4425
        %6628 = vmatprep.subr.bf16.mxu0 %v4430
        %6629 = vmatpush1.bf16.msra.mxu0 %v4429
        %6630 = vmatprep.subr.bf16.mxu0 %v4434
        %6631 = vmatpush1.bf16.msra.mxu0 %v4433
        %6632 = vmatprep.subr.bf16.mxu0 %v4438
        %6633 = vmatpush1.bf16.msra.mxu0 %v4437
        %6634 = vmatprep.subr.bf16.mxu0 %v4442
        %6635 = vmatpush1.bf16.msra.mxu0 %v4441
        %6636 = vmatprep.mubr.bf16.mxu0 %v1424
        %6637 = vmatmul.mubr.bf16.gmra.mrb[0].mxu0 %v1423
        %v6638 = vpop.f32.mrb[0].mxu0
        %v6639 = vadd.f32 %v6596, %v6638
        %v6640 = vpop.f32.mrb[0].mxu0
        %v6641 = vadd.f32 %v6598, %v6640
        %v6642 = vpop.f32.mrb[0].mxu0
        %v6643 = vadd.f32 %v6600, %v6642
        %v6644 = vpop.f32.mrb[0].mxu0
        %v6645 = vadd.f32 %v6602, %v6644
        %6646 = vdwg.mxu0
        %6647 = vmatprep.subr.bf16.mxu0 %v4446
        %6648 = vmatpush1.bf16.msra.mxu0 %v4445
        %6649 = vmatprep.subr.bf16.mxu0 %v4450
        %6650 = vmatpush1.bf16.msra.mxu0 %v4449
        %6651 = vmatprep.subr.bf16.mxu0 %v4454
        %6652 = vmatpush1.bf16.msra.mxu0 %v4453
        %6653 = vmatprep.subr.bf16.mxu0 %v4458
        %6654 = vmatpush1.bf16.msra.mxu0 %v4457
        %6655 = vmatprep.subr.bf16.mxu0 %v4462
        %6656 = vmatpush1.bf16.msra.mxu0 %v4461
        %6657 = vmatprep.subr.bf16.mxu0 %v4466
        %6658 = vmatpush1.bf16.msra.mxu0 %v4465
        %6659 = vmatprep.subr.bf16.mxu0 %v4470
        %6660 = vmatpush1.bf16.msra.mxu0 %v4469
        %6661 = vmatprep.subr.bf16.mxu0 %v4474
        %6662 = vmatpush1.bf16.msra.mxu0 %v4473
        %6663 = vmatprep.subr.bf16.mxu0 %v4478
        %6664 = vmatpush1.bf16.msra.mxu0 %v4477
        %6665 = vmatprep.subr.bf16.mxu0 %v4482
        %6666 = vmatpush1.bf16.msra.mxu0 %v4481
        %6667 = vmatprep.subr.bf16.mxu0 %v4486
        %6668 = vmatpush1.bf16.msra.mxu0 %v4485
        %6669 = vmatprep.subr.bf16.mxu0 %v4490
        %6670 = vmatpush1.bf16.msra.mxu0 %v4489
        %6671 = vmatprep.subr.bf16.mxu0 %v4494
        %6672 = vmatpush1.bf16.msra.mxu0 %v4493
        %6673 = vmatprep.subr.bf16.mxu0 %v4498
        %6674 = vmatpush1.bf16.msra.mxu0 %v4497
        %6675 = vmatprep.subr.bf16.mxu0 %v4502
        %6676 = vmatpush1.bf16.msra.mxu0 %v4501
        %6677 = vmatprep.subr.bf16.mxu0 %v4506
        %6678 = vmatpush1.bf16.msra.mxu0 %v4505
        %6679 = vmatprep.mubr.bf16.mxu0 %v1426
        %6680 = vmatmul.mubr.bf16.gmra.mrb[0].mxu0 %v1425
        %v6681 = vpop.f32.mrb[0].mxu0
        %v6682 = vadd.f32 %v6639, %v6681
        %v6683 = vpop.f32.mrb[0].mxu0
        %v6684 = vadd.f32 %v6641, %v6683
        %v6685 = vpop.f32.mrb[0].mxu0
        %v6686 = vadd.f32 %v6643, %v6685
        %v6687 = vpop.f32.mrb[0].mxu0
        %v6688 = vadd.f32 %v6645, %v6687
        %6689 = vdwg.mxu0
        %6690 = vmatprep.subr.bf16.mxu0 %v4510
        %6691 = vmatpush1.bf16.msra.mxu0 %v4509
        %6692 = vmatprep.subr.bf16.mxu0 %v4514
        %6693 = vmatpush1.bf16.msra.mxu0 %v4513
        %6694 = vmatprep.subr.bf16.mxu0 %v4518
        %6695 = vmatpush1.bf16.msra.mxu0 %v4517
        %6696 = vmatprep.subr.bf16.mxu0 %v4522
        %6697 = vmatpush1.bf16.msra.mxu0 %v4521
        %6698 = vmatprep.subr.bf16.mxu0 %v4526
        %6699 = vmatpush1.bf16.msra.mxu0 %v4525
        %6700 = vmatprep.subr.bf16.mxu0 %v4530
        %6701 = vmatpush1.bf16.msra.mxu0 %v4529
        %6702 = vmatprep.subr.bf16.mxu0 %v4534
        %6703 = vmatpush1.bf16.msra.mxu0 %v4533
        %6704 = vmatprep.subr.bf16.mxu0 %v4538
        %6705 = vmatpush1.bf16.msra.mxu0 %v4537
        %6706 = vmatprep.subr.bf16.mxu0 %v4542
        %6707 = vmatpush1.bf16.msra.mxu0 %v4541
        %6708 = vmatprep.subr.bf16.mxu0 %v4546
        %6709 = vmatpush1.bf16.msra.mxu0 %v4545
        %6710 = vmatprep.subr.bf16.mxu0 %v4550
        %6711 = vmatpush1.bf16.msra.mxu0 %v4549
        %6712 = vmatprep.subr.bf16.mxu0 %v4554
        %6713 = vmatpush1.bf16.msra.mxu0 %v4553
        %6714 = vmatprep.subr.bf16.mxu0 %v4558
        %6715 = vmatpush1.bf16.msra.mxu0 %v4557
        %6716 = vmatprep.subr.bf16.mxu0 %v4562
        %6717 = vmatpush1.bf16.msra.mxu0 %v4561
        %6718 = vmatprep.subr.bf16.mxu0 %v4566
        %6719 = vmatpush1.bf16.msra.mxu0 %v4565
        %6720 = vmatprep.subr.bf16.mxu0 %v4570
        %6721 = vmatpush1.bf16.msra.mxu0 %v4569
        %6722 = vmatprep.mubr.bf16.mxu0 %v1428
        %6723 = vmatmul.mubr.bf16.gmra.mrb[0].mxu0 %v1427
        %v6724 = vpop.f32.mrb[0].mxu0
        %v6725 = vadd.f32 %v6682, %v6724
        %v6726 = vpop.f32.mrb[0].mxu0
        %v6727 = vadd.f32 %v6684, %v6726
        %v6728 = vpop.f32.mrb[0].mxu0
        %v6729 = vadd.f32 %v6686, %v6728
        %v6730 = vpop.f32.mrb[0].mxu0
        %v6731 = vadd.f32 %v6688, %v6730
        %6732 = vdwg.mxu0
        %6733 = vmatprep.subr.bf16.mxu0 %v4574
        %6734 = vmatpush1.bf16.msra.mxu0 %v4573
        %6735 = vmatprep.subr.bf16.mxu0 %v4578
        %6736 = vmatpush1.bf16.msra.mxu0 %v4577
        %6737 = vmatprep.subr.bf16.mxu0 %v4582
        %6738 = vmatpush1.bf16.msra.mxu0 %v4581
        %6739 = vmatprep.subr.bf16.mxu0 %v4586
        %6740 = vmatpush1.bf16.msra.mxu0 %v4585
        %6741 = vmatprep.subr.bf16.mxu0 %v4590
        %6742 = vmatpush1.bf16.msra.mxu0 %v4589
        %6743 = vmatprep.subr.bf16.mxu0 %v4594
        %6744 = vmatpush1.bf16.msra.mxu0 %v4593
        %6745 = vmatprep.subr.bf16.mxu0 %v4598
        %6746 = vmatpush1.bf16.msra.mxu0 %v4597
        %6747 = vmatprep.subr.bf16.mxu0 %v4602
        %6748 = vmatpush1.bf16.msra.mxu0 %v4601
        %6749 = vmatprep.subr.bf16.mxu0 %v4606
        %6750 = vmatpush1.bf16.msra.mxu0 %v4605
        %6751 = vmatprep.subr.bf16.mxu0 %v4610
        %6752 = vmatpush1.bf16.msra.mxu0 %v4609
        %6753 = vmatprep.subr.bf16.mxu0 %v4614
        %6754 = vmatpush1.bf16.msra.mxu0 %v4613
        %6755 = vmatprep.subr.bf16.mxu0 %v4618
        %6756 = vmatpush1.bf16.msra.mxu0 %v4617
        %6757 = vmatprep.subr.bf16.mxu0 %v4622
        %6758 = vmatpush1.bf16.msra.mxu0 %v4621
        %6759 = vmatprep.subr.bf16.mxu0 %v4626
        %6760 = vmatpush1.bf16.msra.mxu0 %v4625
        %6761 = vmatprep.subr.bf16.mxu0 %v4630
        %6762 = vmatpush1.bf16.msra.mxu0 %v4629
        %6763 = vmatprep.subr.bf16.mxu0 %v4634
        %6764 = vmatpush1.bf16.msra.mxu0 %v4633
        %6765 = vmatprep.mubr.bf16.mxu0 %v1430
        %6766 = vmatmul.mubr.bf16.gmra.mrb[0].mxu0 %v1429
        %v6767 = vpop.f32.mrb[0].mxu0
        %v6768 = vadd.f32 %v6725, %v6767
        %v6769 = vpop.f32.mrb[0].mxu0
        %v6770 = vadd.f32 %v6727, %v6769
        %v6771 = vpop.f32.mrb[0].mxu0
        %v6772 = vadd.f32 %v6729, %v6771
        %v6773 = vpop.f32.mrb[0].mxu0
        %v6774 = vadd.f32 %v6731, %v6773
        %6775 = vdwg.mxu0
        %6776 = vmatprep.subr.bf16.mxu0 %v4638
        %6777 = vmatpush1.bf16.msra.mxu0 %v4637
        %6778 = vmatprep.subr.bf16.mxu0 %v4642
        %6779 = vmatpush1.bf16.msra.mxu0 %v4641
        %6780 = vmatprep.subr.bf16.mxu0 %v4646
        %6781 = vmatpush1.bf16.msra.mxu0 %v4645
        %6782 = vmatprep.subr.bf16.mxu0 %v4650
        %6783 = vmatpush1.bf16.msra.mxu0 %v4649
        %6784 = vmatprep.subr.bf16.mxu0 %v4654
        %6785 = vmatpush1.bf16.msra.mxu0 %v4653
        %6786 = vmatprep.subr.bf16.mxu0 %v4658
        %6787 = vmatpush1.bf16.msra.mxu0 %v4657
        %6788 = vmatprep.subr.bf16.mxu0 %v4662
        %6789 = vmatpush1.bf16.msra.mxu0 %v4661
        %6790 = vmatprep.subr.bf16.mxu0 %v4666
        %6791 = vmatpush1.bf16.msra.mxu0 %v4665
        %6792 = vmatprep.subr.bf16.mxu0 %v4670
        %6793 = vmatpush1.bf16.msra.mxu0 %v4669
        %6794 = vmatprep.subr.bf16.mxu0 %v4674
        %6795 = vmatpush1.bf16.msra.mxu0 %v4673
        %6796 = vmatprep.subr.bf16.mxu0 %v4678
        %6797 = vmatpush1.bf16.msra.mxu0 %v4677
        %6798 = vmatprep.subr.bf16.mxu0 %v4682
        %6799 = vmatpush1.bf16.msra.mxu0 %v4681
        %6800 = vmatprep.subr.bf16.mxu0 %v4686
        %6801 = vmatpush1.bf16.msra.mxu0 %v4685
        %6802 = vmatprep.subr.bf16.mxu0 %v4690
        %6803 = vmatpush1.bf16.msra.mxu0 %v4689
        %6804 = vmatprep.subr.bf16.mxu0 %v4694
        %6805 = vmatpush1.bf16.msra.mxu0 %v4693
        %6806 = vmatprep.subr.bf16.mxu0 %v4698
        %6807 = vmatpush1.bf16.msra.mxu0 %v4697
        %6808 = vmatprep.mubr.bf16.mxu0 %v1432
        %6809 = vmatmul.mubr.bf16.gmra.mrb[0].mxu0 %v1431
        %v6810 = vpop.f32.mrb[0].mxu0
        %v6811 = vadd.f32 %v6768, %v6810
        %v6812 = vpop.f32.mrb[0].mxu0
        %v6813 = vadd.f32 %v6770, %v6812
        %v6814 = vpop.f32.mrb[0].mxu0
        %v6815 = vadd.f32 %v6772, %v6814
        %v6816 = vpop.f32.mrb[0].mxu0
        %v6817 = vadd.f32 %v6774, %v6816
        %6818 = vdwg.mxu0
        %6819 = vmatprep.subr.bf16.mxu0 %v4702
        %6820 = vmatpush1.bf16.msra.mxu0 %v4701
        %6821 = vmatprep.subr.bf16.mxu0 %v4706
        %6822 = vmatpush1.bf16.msra.mxu0 %v4705
        %6823 = vmatprep.subr.bf16.mxu0 %v4710
        %6824 = vmatpush1.bf16.msra.mxu0 %v4709
        %6825 = vmatprep.subr.bf16.mxu0 %v4714
        %6826 = vmatpush1.bf16.msra.mxu0 %v4713
        %6827 = vmatprep.subr.bf16.mxu0 %v4718
        %6828 = vmatpush1.bf16.msra.mxu0 %v4717
        %6829 = vmatprep.subr.bf16.mxu0 %v4722
        %6830 = vmatpush1.bf16.msra.mxu0 %v4721
        %6831 = vmatprep.subr.bf16.mxu0 %v4726
        %6832 = vmatpush1.bf16.msra.mxu0 %v4725
        %6833 = vmatprep.subr.bf16.mxu0 %v4730
        %6834 = vmatpush1.bf16.msra.mxu0 %v4729
        %6835 = vmatprep.subr.bf16.mxu0 %v4734
        %6836 = vmatpush1.bf16.msra.mxu0 %v4733
        %6837 = vmatprep.subr.bf16.mxu0 %v4738
        %6838 = vmatpush1.bf16.msra.mxu0 %v4737
        %6839 = vmatprep.subr.bf16.mxu0 %v4742
        %6840 = vmatpush1.bf16.msra.mxu0 %v4741
        %6841 = vmatprep.subr.bf16.mxu0 %v4746
        %6842 = vmatpush1.bf16.msra.mxu0 %v4745
        %6843 = vmatprep.subr.bf16.mxu0 %v4750
        %6844 = vmatpush1.bf16.msra.mxu0 %v4749
        %6845 = vmatprep.subr.bf16.mxu0 %v4754
        %6846 = vmatpush1.bf16.msra.mxu0 %v4753
        %6847 = vmatprep.subr.bf16.mxu0 %v4758
        %6848 = vmatpush1.bf16.msra.mxu0 %v4757
        %6849 = vmatprep.subr.bf16.mxu0 %v4762
        %6850 = vmatpush1.bf16.msra.mxu0 %v4761
        %6851 = vmatprep.mubr.bf16.mxu0 %v1434
        %6852 = vmatmul.mubr.bf16.gmra.mrb[0].mxu0 %v1433
        %v6853 = vpop.f32.mrb[0].mxu0
        %v6854 = vadd.f32 %v6811, %v6853
        %v6855 = vpop.f32.mrb[0].mxu0
        %v6856 = vadd.f32 %v6813, %v6855
        %v6857 = vpop.f32.mrb[0].mxu0
        %v6858 = vadd.f32 %v6815, %v6857
        %v6859 = vpop.f32.mrb[0].mxu0
        %v6860 = vadd.f32 %v6817, %v6859
        %6861 = vdwg.mxu0
        %6862 = vmatprep.subr.bf16.mxu0 %v4766
        %6863 = vmatpush1.bf16.msra.mxu0 %v4765
        %6864 = vmatprep.subr.bf16.mxu0 %v4770
        %6865 = vmatpush1.bf16.msra.mxu0 %v4769
        %6866 = vmatprep.subr.bf16.mxu0 %v4774
        %6867 = vmatpush1.bf16.msra.mxu0 %v4773
        %6868 = vmatprep.subr.bf16.mxu0 %v4778
        %6869 = vmatpush1.bf16.msra.mxu0 %v4777
        %6870 = vmatprep.subr.bf16.mxu0 %v4782
        %6871 = vmatpush1.bf16.msra.mxu0 %v4781
        %6872 = vmatprep.subr.bf16.mxu0 %v4786
        %6873 = vmatpush1.bf16.msra.mxu0 %v4785
        %6874 = vmatprep.subr.bf16.mxu0 %v4790
        %6875 = vmatpush1.bf16.msra.mxu0 %v4789
        %6876 = vmatprep.subr.bf16.mxu0 %v4794
        %6877 = vmatpush1.bf16.msra.mxu0 %v4793
        %6878 = vmatprep.subr.bf16.mxu0 %v4798
        %6879 = vmatpush1.bf16.msra.mxu0 %v4797
        %6880 = vmatprep.subr.bf16.mxu0 %v4802
        %6881 = vmatpush1.bf16.msra.mxu0 %v4801
        %6882 = vmatprep.subr.bf16.mxu0 %v4806
        %6883 = vmatpush1.bf16.msra.mxu0 %v4805
        %6884 = vmatprep.subr.bf16.mxu0 %v4810
        %6885 = vmatpush1.bf16.msra.mxu0 %v4809
        %6886 = vmatprep.subr.bf16.mxu0 %v4814
        %6887 = vmatpush1.bf16.msra.mxu0 %v4813
        %6888 = vmatprep.subr.bf16.mxu0 %v4818
        %6889 = vmatpush1.bf16.msra.mxu0 %v4817
        %6890 = vmatprep.subr.bf16.mxu0 %v4822
        %6891 = vmatpush1.bf16.msra.mxu0 %v4821
        %6892 = vmatprep.subr.bf16.mxu0 %v4826
        %6893 = vmatpush1.bf16.msra.mxu0 %v4825
        %6894 = vmatprep.mubr.bf16.mxu0 %v1436
        %6895 = vmatmul.mubr.bf16.gmra.mrb[0].mxu0 %v1435
        %v6896 = vpop.f32.mrb[0].mxu0
        %v6897 = vadd.f32 %v6854, %v6896
        %v6898 = vpop.f32.mrb[0].mxu0
        %v6899 = vadd.f32 %v6856, %v6898
        %v6900 = vpop.f32.mrb[0].mxu0
        %v6901 = vadd.f32 %v6858, %v6900
        %v6902 = vpop.f32.mrb[0].mxu0
        %v6903 = vadd.f32 %v6860, %v6902
        %6904 = vdwg.mxu0
        %6905 = vmatprep.subr.bf16.mxu0 %v4830
        %6906 = vmatpush1.bf16.msra.mxu0 %v4829
        %6907 = vmatprep.subr.bf16.mxu0 %v4834
        %6908 = vmatpush1.bf16.msra.mxu0 %v4833
        %6909 = vmatprep.subr.bf16.mxu0 %v4838
        %6910 = vmatpush1.bf16.msra.mxu0 %v4837
        %6911 = vmatprep.subr.bf16.mxu0 %v4842
        %6912 = vmatpush1.bf16.msra.mxu0 %v4841
        %6913 = vmatprep.subr.bf16.mxu0 %v4846
        %6914 = vmatpush1.bf16.msra.mxu0 %v4845
        %6915 = vmatprep.subr.bf16.mxu0 %v4850
        %6916 = vmatpush1.bf16.msra.mxu0 %v4849
        %6917 = vmatprep.subr.bf16.mxu0 %v4854
        %6918 = vmatpush1.bf16.msra.mxu0 %v4853
        %6919 = vmatprep.subr.bf16.mxu0 %v4858
        %6920 = vmatpush1.bf16.msra.mxu0 %v4857
        %6921 = vmatprep.subr.bf16.mxu0 %v4862
        %6922 = vmatpush1.bf16.msra.mxu0 %v4861
        %6923 = vmatprep.subr.bf16.mxu0 %v4866
        %6924 = vmatpush1.bf16.msra.mxu0 %v4865
        %6925 = vmatprep.subr.bf16.mxu0 %v4870
        %6926 = vmatpush1.bf16.msra.mxu0 %v4869
        %6927 = vmatprep.subr.bf16.mxu0 %v4874
        %6928 = vmatpush1.bf16.msra.mxu0 %v4873
        %6929 = vmatprep.subr.bf16.mxu0 %v4878
        %6930 = vmatpush1.bf16.msra.mxu0 %v4877
        %6931 = vmatprep.subr.bf16.mxu0 %v4882
        %6932 = vmatpush1.bf16.msra.mxu0 %v4881
        %6933 = vmatprep.subr.bf16.mxu0 %v4886
        %6934 = vmatpush1.bf16.msra.mxu0 %v4885
        %6935 = vmatprep.subr.bf16.mxu0 %v4890
        %6936 = vmatpush1.bf16.msra.mxu0 %v4889
        %6937 = vmatprep.mubr.bf16.mxu0 %v1438
        %6938 = vmatmul.mubr.bf16.gmra.mrb[0].mxu0 %v1437
        %v6939 = vpop.f32.mrb[0].mxu0
        %v6940 = vadd.f32 %v6897, %v6939
        %v6941 = vpop.f32.mrb[0].mxu0
        %v6942 = vadd.f32 %v6899, %v6941
        %v6943 = vpop.f32.mrb[0].mxu0
        %v6944 = vadd.f32 %v6901, %v6943
        %v6945 = vpop.f32.mrb[0].mxu0
        %v6946 = vadd.f32 %v6903, %v6945
        %6947 = vdwg.mxu0
        %6948 = vmatprep.subr.bf16.mxu0 %v4894
        %6949 = vmatpush1.bf16.msra.mxu0 %v4893
        %6950 = vmatprep.subr.bf16.mxu0 %v4898
        %6951 = vmatpush1.bf16.msra.mxu0 %v4897
        %6952 = vmatprep.subr.bf16.mxu0 %v4902
        %6953 = vmatpush1.bf16.msra.mxu0 %v4901
        %6954 = vmatprep.subr.bf16.mxu0 %v4906
        %6955 = vmatpush1.bf16.msra.mxu0 %v4905
        %6956 = vmatprep.subr.bf16.mxu0 %v4910
        %6957 = vmatpush1.bf16.msra.mxu0 %v4909
        %6958 = vmatprep.subr.bf16.mxu0 %v4914
        %6959 = vmatpush1.bf16.msra.mxu0 %v4913
        %6960 = vmatprep.subr.bf16.mxu0 %v4918
        %6961 = vmatpush1.bf16.msra.mxu0 %v4917
        %6962 = vmatprep.subr.bf16.mxu0 %v4922
        %6963 = vmatpush1.bf16.msra.mxu0 %v4921
        %6964 = vmatprep.subr.bf16.mxu0 0
        %6965 = vmatpush1.bf16.msra.mxu0 0
        %6966 = vmatprep.subr.bf16.mxu0 0
        %6967 = vmatpush1.bf16.msra.mxu0 0
        %6968 = vmatprep.subr.bf16.mxu0 0
        %6969 = vmatpush1.bf16.msra.mxu0 0
        %6970 = vmatprep.subr.bf16.mxu0 0
        %6971 = vmatpush1.bf16.msra.mxu0 0
        %6972 = vmatprep.subr.bf16.mxu0 0
        %6973 = vmatpush1.bf16.msra.mxu0 0
        %6974 = vmatprep.subr.bf16.mxu0 0
        %6975 = vmatpush1.bf16.msra.mxu0 0
        %6976 = vmatprep.subr.bf16.mxu0 0
        %6977 = vmatpush1.bf16.msra.mxu0 0
        %6978 = vmatprep.subr.bf16.mxu0 0
        %6979 = vmatpush1.bf16.msra.mxu0 0
        %6980 = vmatprep.mubr.bf16.mxu0 0
        %6981 = vmatmul.mubr.bf16.gmra.mrb[0].mxu0 %v1439
        %v6982 = vpop.f32.mrb[0].mxu0
        %v6983 = vadd.f32 %v6940, %v6982
        %v6984 = vpop.f32.mrb[0].mxu0
        %v6985 = vadd.f32 %v6942, %v6984
        %v6986 = vpop.f32.mrb[0].mxu0
        %v6987 = vadd.f32 %v6944, %v6986
        %v6988 = vpop.f32.mrb[0].mxu0
        %v6989 = vadd.f32 %v6946, %v6988
        %6990 = vdwg.mxu0
        %v6991 = vadd.f32 %v431, %v6381
        %v6992 = vadd.f32 %v432, %v6383
        %v6993 = vadd.f32 %v433, %v6983
        %v6994 = vadd.f32 %v434, %v6985
        %v6995 = vadd.f32 %v435, %v6385
        %v6996 = vadd.f32 %v436, %v6387
        %v6997 = vadd.f32 %v437, %v6987
        %v6998 = vadd.f32 %v438, %v6989
        %6999 = vst [vmem:[#allocation2] sm:$0xff] %v6991
        %7000 = vst [vmem:[#allocation2 + $0x8] sm:$0xff] %v6992
        %7001 = vst [vmem:[#allocation2 + $0x10] sm:$0xff] %v6993
        %7002 = vst [vmem:[#allocation2 + $0x18] sm:$0xff] %v6994
        %7003 = vst [vmem:[#allocation2 + $0x20] sm:$0xff] %v6995
        %7004 = vst [vmem:[#allocation2 + $0x28] sm:$0xff] %v6996
        %7005 = vst [vmem:[#allocation2 + $0x30] sm:$0xff] %v6997
        %7006 = vst [vmem:[#allocation2 + $0x38] sm:$0xff] %v6998
        %p7007 = scmp.eq.s32.totalorder %s32, 1
        // Predicated region
        $region81: #{tpu_custom_call.1} parent=47 // pred_check
          %p7008 = pneg %p7007
        $region82: #{tpu_custom_call.1} parent=47 // pred_check_branch
          %7010 = sbr.rel (%p7008) target = $region84
        $region83: #{tpu_custom_call.1} parent=47 // pred_region
          %v7011 = vld [vmem:[#allocation2] sm:$0xff]
          %v7012 = vld [vmem:[#allocation2 + $0x8] sm:$0xff]
          %v7013 = vld [vmem:[#allocation2 + $0x10] sm:$0xff]
          %v7014 = vld [vmem:[#allocation2 + $0x18] sm:$0xff]
          %v7015 = vld [vmem:[#allocation2 + $0x20] sm:$0xff]
          %v7016 = vld [vmem:[#allocation2 + $0x28] sm:$0xff]
          %v7017 = vld [vmem:[#allocation2 + $0x30] sm:$0xff]
          %v7018 = vld [vmem:[#allocation2 + $0x38] sm:$0xff]
          %v7019 = vld [vmem:[#allocation8] sm:$0xf]
          %v7021 = vlaneseq
          %v7022 = vshrl.u32 %v7021, 7
          %v7023 = vsub.s32 0, %v7022
          %v7024 = vrot.slane %v7019, %v7023
          %v7025 = vlaneseq
          %v7026 = vshrl.u32 %v7025, 7
          %v7027 = vsub.s32 1, %v7026
          %v7028 = vrot.slane %v7019, %v7027
          %v7029 = vlaneseq
          %v7030 = vshrl.u32 %v7029, 7
          %v7031 = vsub.s32 2, %v7030
          %v7032 = vrot.slane %v7019, %v7031
          %v7033 = vlaneseq
          %v7034 = vshrl.u32 %v7033, 7
          %v7035 = vsub.s32 3, %v7034
          %v7036 = vrot.slane %v7019, %v7035
          %v7041 = vadd.f32 %v7011, %v7024
          %v7042 = vadd.f32 %v7012, %v7028
          %v7043 = vadd.f32 %v7013, %v7032
          %v7044 = vadd.f32 %v7014, %v7036
          %v7045 = vadd.f32 %v7015, %v7024
          %v7046 = vadd.f32 %v7016, %v7028
          %v7047 = vadd.f32 %v7017, %v7032
          %v7048 = vadd.f32 %v7018, %v7036
          %v7049 = vmax.f32 %v7041, 0.0
          %v7050 = vmax.f32 %v7042, 0.0
          %v7051 = vmax.f32 %v7043, 0.0
          %v7052 = vmax.f32 %v7044, 0.0
          %v7053 = vmax.f32 %v7045, 0.0
          %v7054 = vmax.f32 %v7046, 0.0
          %v7055 = vmax.f32 %v7047, 0.0
          %v7056 = vmax.f32 %v7048, 0.0
          %v7057 = vld [vmem:[#allocation9] sm:$0xff]
          %v7058 = vld [vmem:[#allocation9 + $0x8] sm:$0xff]
          %v7059 = vld [vmem:[#allocation9 + $0x10] sm:$0xff]
          %v7060 = vld [vmem:[#allocation9 + $0x18] sm:$0xff]
          %v7061 = vld [vmem:[#allocation9 + $0x20] sm:$0xff]
          %v7062 = vld [vmem:[#allocation9 + $0x28] sm:$0xff]
          %v7063 = vld [vmem:[#allocation9 + $0x30] sm:$0xff]
          %v7064 = vld [vmem:[#allocation9 + $0x38] sm:$0xff]
          %v7065 = vld [vmem:[#allocation9 + $0x40] sm:$0xff]
          %v7066 = vld [vmem:[#allocation9 + $0x48] sm:$0xff]
          %v7067 = vld [vmem:[#allocation9 + $0x50] sm:$0xff]
          %v7068 = vld [vmem:[#allocation9 + $0x58] sm:$0xff]
          %v7069 = vld [vmem:[#allocation9 + $0x60] sm:$0xff]
          %v7070 = vld [vmem:[#allocation9 + $0x68] sm:$0xff]
          %v7071 = vld [vmem:[#allocation9 + $0x70] sm:$0xff]
          %v7072 = vld [vmem:[#allocation9 + $0x78] sm:$0xff]
          %v7073 = vld [vmem:[#allocation9 + $0x80] sm:$0xff]
          %v7074 = vld [vmem:[#allocation9 + $0x88] sm:$0xff]
          %v7075 = vld [vmem:[#allocation9 + $0x90] sm:$0xff]
          %v7076 = vld [vmem:[#allocation9 + $0x98] sm:$0xff]
          %v7077 = vld [vmem:[#allocation9 + $0xa0] sm:$0xff]
          %v7078 = vld [vmem:[#allocation9 + $0xa8] sm:$0xff]
          %v7079 = vld [vmem:[#allocation9 + $0xb0] sm:$0xff]
          %v7080 = vld [vmem:[#allocation9 + $0xb8] sm:$0xff]
          %v7081 = vld [vmem:[#allocation9 + $0xc0] sm:$0xff]
          %v7082 = vld [vmem:[#allocation9 + $0xc8] sm:$0xff]
          %v7083 = vld [vmem:[#allocation9 + $0xd0] sm:$0xff]
          %v7084 = vld [vmem:[#allocation9 + $0xd8] sm:$0xff]
          %v7085 = vld [vmem:[#allocation9 + $0xe0] sm:$0xff]
          %v7086 = vld [vmem:[#allocation9 + $0xe8] sm:$0xff]
          %v7087 = vld [vmem:[#allocation9 + $0xf0] sm:$0xff]
          %v7088 = vld [vmem:[#allocation9 + $0xf8] sm:$0xff]
          %v7089 = vld [vmem:[#allocation9 + $0x100] sm:$0xff]
          %v7090 = vld [vmem:[#allocation9 + $0x108] sm:$0xff]
          %v7091 = vld [vmem:[#allocation9 + $0x110] sm:$0xff]
          %v7092 = vld [vmem:[#allocation9 + $0x118] sm:$0xff]
          %v7093 = vld [vmem:[#allocation9 + $0x120] sm:$0xff]
          %v7094 = vld [vmem:[#allocation9 + $0x128] sm:$0xff]
          %v7095 = vld [vmem:[#allocation9 + $0x130] sm:$0xff]
          %v7096 = vld [vmem:[#allocation9 + $0x138] sm:$0xff]
          %v7097 = vld [vmem:[#allocation9 + $0x140] sm:$0xff]
          %v7098 = vld [vmem:[#allocation9 + $0x148] sm:$0xff]
          %v7099 = vld [vmem:[#allocation9 + $0x150] sm:$0xff]
          %v7100 = vld [vmem:[#allocation9 + $0x158] sm:$0xff]
          %v7101 = vld [vmem:[#allocation9 + $0x160] sm:$0xff]
          %v7102 = vld [vmem:[#allocation9 + $0x168] sm:$0xff]
          %v7103 = vld [vmem:[#allocation9 + $0x170] sm:$0xff]
          %v7104 = vld [vmem:[#allocation9 + $0x178] sm:$0xff]
          %v7105 = vld [vmem:[#allocation9 + $0x180] sm:$0xff]
          %v7106 = vld [vmem:[#allocation9 + $0x188] sm:$0xff]
          %v7107 = vld [vmem:[#allocation9 + $0x190] sm:$0xff]
          %v7108 = vld [vmem:[#allocation9 + $0x198] sm:$0xff]
          %v7109 = vld [vmem:[#allocation9 + $0x1a0] sm:$0xff]
          %v7110 = vld [vmem:[#allocation9 + $0x1a8] sm:$0xff]
          %v7111 = vld [vmem:[#allocation9 + $0x1b0] sm:$0xff]
          %v7112 = vld [vmem:[#allocation9 + $0x1b8] sm:$0xff]
          %v7113 = vld [vmem:[#allocation9 + $0x1c0] sm:$0xff]
          %v7114 = vld [vmem:[#allocation9 + $0x1c8] sm:$0xff]
          %v7115 = vld [vmem:[#allocation9 + $0x1d0] sm:$0xff]
          %v7116 = vld [vmem:[#allocation9 + $0x1d8] sm:$0xff]
          %v7117 = vld [vmem:[#allocation9 + $0x1e0] sm:$0xff]
          %v7118 = vld [vmem:[#allocation9 + $0x1e8] sm:$0xff]
          %v7119 = vld [vmem:[#allocation9 + $0x1f0] sm:$0xff]
          %v7120 = vld [vmem:[#allocation9 + $0x1f8] sm:$0xff]
          %v7121 = vld [vmem:[#allocation11] sm:$0x1]
          %v7123 = vlaneseq
          %v7124 = vshrl.u32 %v7123, 7
          %v7125 = vsub.s32 0, %v7124
          %v7126 = vrot.slane %v7121, %v7125
          %7128 = vmatprep.subr.mxu0 0.0
          %7129 = vmatpush1.msra.mxu0 %v7057
          %7130 = vmatprep.subr.mxu0 0.0
          %7131 = vmatpush1.msra.mxu0 %v7058
          %7132 = vmatprep.subr.mxu0 0.0
          %7133 = vmatpush1.msra.mxu0 %v7059
          %7134 = vmatprep.subr.mxu0 0.0
          %7135 = vmatpush1.msra.mxu0 %v7060
          %7136 = vmatprep.subr.mxu0 0.0
          %7137 = vmatpush1.msra.mxu0 %v7061
          %7138 = vmatprep.subr.mxu0 0.0
          %7139 = vmatpush1.msra.mxu0 %v7062
          %7140 = vmatprep.subr.mxu0 0.0
          %7141 = vmatpush1.msra.mxu0 %v7063
          %7142 = vmatprep.subr.mxu0 0.0
          %7143 = vmatpush1.msra.mxu0 %v7064
          %7144 = vmatprep.subr.mxu0 0.0
          %7145 = vmatpush1.msra.mxu0 %v7065
          %7146 = vmatprep.subr.mxu0 0.0
          %7147 = vmatpush1.msra.mxu0 %v7066
          %7148 = vmatprep.subr.mxu0 0.0
          %7149 = vmatpush1.msra.mxu0 %v7067
          %7150 = vmatprep.subr.mxu0 0.0
          %7151 = vmatpush1.msra.mxu0 %v7068
          %7152 = vmatprep.subr.mxu0 0.0
          %7153 = vmatpush1.msra.mxu0 %v7069
          %7154 = vmatprep.subr.mxu0 0.0
          %7155 = vmatpush1.msra.mxu0 %v7070
          %7156 = vmatprep.subr.mxu0 0.0
          %7157 = vmatpush1.msra.mxu0 %v7071
          %7158 = vmatprep.subr.mxu0 0.0
          %7159 = vmatpush1.msra.mxu0 %v7072
          %7160 = vmatprep.subr.mxu0 0.0
          %7161 = vmatpush1.msra.mxu0 %v7073
          %7162 = vmatprep.subr.mxu0 0.0
          %7163 = vmatpush1.msra.mxu0 %v7074
          %7164 = vmatprep.subr.mxu0 0.0
          %7165 = vmatpush1.msra.mxu0 %v7075
          %7166 = vmatprep.subr.mxu0 0.0
          %7167 = vmatpush1.msra.mxu0 %v7076
          %7168 = vmatprep.subr.mxu0 0.0
          %7169 = vmatpush1.msra.mxu0 %v7077
          %7170 = vmatprep.subr.mxu0 0.0
          %7171 = vmatpush1.msra.mxu0 %v7078
          %7172 = vmatprep.subr.mxu0 0.0
          %7173 = vmatpush1.msra.mxu0 %v7079
          %7174 = vmatprep.subr.mxu0 0.0
          %7175 = vmatpush1.msra.mxu0 %v7080
          %7176 = vmatprep.subr.mxu0 0.0
          %7177 = vmatpush1.msra.mxu0 %v7081
          %7178 = vmatprep.subr.mxu0 0.0
          %7179 = vmatpush1.msra.mxu0 %v7082
          %7180 = vmatprep.subr.mxu0 0.0
          %7181 = vmatpush1.msra.mxu0 %v7083
          %7182 = vmatprep.subr.mxu0 0.0
          %7183 = vmatpush1.msra.mxu0 %v7084
          %7184 = vmatprep.subr.mxu0 0.0
          %7185 = vmatpush1.msra.mxu0 %v7085
          %7186 = vmatprep.subr.mxu0 0.0
          %7187 = vmatpush1.msra.mxu0 %v7086
          %7188 = vmatprep.subr.mxu0 0.0
          %7189 = vmatpush1.msra.mxu0 %v7087
          %7190 = vmatprep.subr.mxu0 0.0
          %7191 = vmatpush1.msra.mxu0 %v7088
          %7192 = vmatprep.mubr.f32.mxu0 %v7050
          %7193 = vmatmul.mubr.f32.gmra.mrb[0].mxu0 %v7049
          %v7194 = vpop.f32.mrb[0].mxu0
          %v7195 = vadd.f32 %v7126, %v7194
          %v7196 = vpop.f32.mrb[0].mxu0
          %7197 = vmatprep.mubr.f32.mxu0 %v7054
          %7198 = vmatmul.mubr.f32.gmra.mrb[0].mxu0 %v7053
          %v7199 = vpop.f32.mrb[0].mxu0
          %v7200 = vadd.f32 %v7126, %v7199
          %v7201 = vpop.f32.mrb[0].mxu0
          %7202 = vdwg.mxu0
          %7203 = vmatprep.subr.mxu0 0.0
          %7204 = vmatpush1.msra.mxu0 %v7089
          %7205 = vmatprep.subr.mxu0 0.0
          %7206 = vmatpush1.msra.mxu0 %v7090
          %7207 = vmatprep.subr.mxu0 0.0
          %7208 = vmatpush1.msra.mxu0 %v7091
          %7209 = vmatprep.subr.mxu0 0.0
          %7210 = vmatpush1.msra.mxu0 %v7092
          %7211 = vmatprep.subr.mxu0 0.0
          %7212 = vmatpush1.msra.mxu0 %v7093
          %7213 = vmatprep.subr.mxu0 0.0
          %7214 = vmatpush1.msra.mxu0 %v7094
          %7215 = vmatprep.subr.mxu0 0.0
          %7216 = vmatpush1.msra.mxu0 %v7095
          %7217 = vmatprep.subr.mxu0 0.0
          %7218 = vmatpush1.msra.mxu0 %v7096
          %7219 = vmatprep.subr.mxu0 0.0
          %7220 = vmatpush1.msra.mxu0 %v7097
          %7221 = vmatprep.subr.mxu0 0.0
          %7222 = vmatpush1.msra.mxu0 %v7098
          %7223 = vmatprep.subr.mxu0 0.0
          %7224 = vmatpush1.msra.mxu0 %v7099
          %7225 = vmatprep.subr.mxu0 0.0
          %7226 = vmatpush1.msra.mxu0 %v7100
          %7227 = vmatprep.subr.mxu0 0.0
          %7228 = vmatpush1.msra.mxu0 %v7101
          %7229 = vmatprep.subr.mxu0 0.0
          %7230 = vmatpush1.msra.mxu0 %v7102
          %7231 = vmatprep.subr.mxu0 0.0
          %7232 = vmatpush1.msra.mxu0 %v7103
          %7233 = vmatprep.subr.mxu0 0.0
          %7234 = vmatpush1.msra.mxu0 %v7104
          %7235 = vmatprep.subr.mxu0 0.0
          %7236 = vmatpush1.msra.mxu0 %v7105
          %7237 = vmatprep.subr.mxu0 0.0
          %7238 = vmatpush1.msra.mxu0 %v7106
          %7239 = vmatprep.subr.mxu0 0.0
          %7240 = vmatpush1.msra.mxu0 %v7107
          %7241 = vmatprep.subr.mxu0 0.0
          %7242 = vmatpush1.msra.mxu0 %v7108
          %7243 = vmatprep.subr.mxu0 0.0
          %7244 = vmatpush1.msra.mxu0 %v7109
          %7245 = vmatprep.subr.mxu0 0.0
          %7246 = vmatpush1.msra.mxu0 %v7110
          %7247 = vmatprep.subr.mxu0 0.0
          %7248 = vmatpush1.msra.mxu0 %v7111
          %7249 = vmatprep.subr.mxu0 0.0
          %7250 = vmatpush1.msra.mxu0 %v7112
          %7251 = vmatprep.subr.mxu0 0.0
          %7252 = vmatpush1.msra.mxu0 %v7113
          %7253 = vmatprep.subr.mxu0 0.0
          %7254 = vmatpush1.msra.mxu0 %v7114
          %7255 = vmatprep.subr.mxu0 0.0
          %7256 = vmatpush1.msra.mxu0 %v7115
          %7257 = vmatprep.subr.mxu0 0.0
          %7258 = vmatpush1.msra.mxu0 %v7116
          %7259 = vmatprep.subr.mxu0 0.0
          %7260 = vmatpush1.msra.mxu0 %v7117
          %7261 = vmatprep.subr.mxu0 0.0
          %7262 = vmatpush1.msra.mxu0 %v7118
          %7263 = vmatprep.subr.mxu0 0.0
          %7264 = vmatpush1.msra.mxu0 %v7119
          %7265 = vmatprep.subr.mxu0 0.0
          %7266 = vmatpush1.msra.mxu0 %v7120
          %7267 = vmatprep.mubr.f32.mxu0 %v7052
          %7268 = vmatmul.mubr.f32.gmra.mrb[0].mxu0 %v7051
          %v7269 = vpop.f32.mrb[0].mxu0
          %v7270 = vadd.f32 %v7195, %v7269
          %v7271 = vpop.f32.mrb[0].mxu0
          %7272 = vmatprep.mubr.f32.mxu0 %v7056
          %7273 = vmatmul.mubr.f32.gmra.mrb[0].mxu0 %v7055
          %v7274 = vpop.f32.mrb[0].mxu0
          %v7275 = vadd.f32 %v7200, %v7274
          %v7276 = vpop.f32.mrb[0].mxu0
          %7277 = vdwg.mxu0
          %v7278 = vmax.f32 %v7270, 0.0
          %v7279 = vmax.f32 %v7275, 0.0
          %v7280 = vld [vmem:[#allocation12] sm:$0xff]
          %v7281 = vld [vmem:[#allocation12 + $0x8] sm:$0xff]
          %v7282 = vld [vmem:[#allocation12 + $0x10] sm:$0xff]
          %v7283 = vld [vmem:[#allocation12 + $0x18] sm:$0xff]
          %v7284 = vld [vmem:[#allocation12 + $0x20] sm:$0xff]
          %v7285 = vld [vmem:[#allocation12 + $0x28] sm:$0xff]
          %v7286 = vld [vmem:[#allocation12 + $0x30] sm:$0xff]
          %v7287 = vld [vmem:[#allocation12 + $0x38] sm:$0xff]
          %v7288 = vld [vmem:[#allocation12 + $0x40] sm:$0xff]
          %v7289 = vld [vmem:[#allocation12 + $0x48] sm:$0xff]
          %v7290 = vld [vmem:[#allocation12 + $0x50] sm:$0xff]
          %v7291 = vld [vmem:[#allocation12 + $0x58] sm:$0xff]
          %v7292 = vld [vmem:[#allocation12 + $0x60] sm:$0xff]
          %v7293 = vld [vmem:[#allocation12 + $0x68] sm:$0xff]
          %v7294 = vld [vmem:[#allocation12 + $0x70] sm:$0xff]
          %v7295 = vld [vmem:[#allocation12 + $0x78] sm:$0xff]
          %v7296 = vld [vmem:[#allocation14] sm:$0x1]
          %v7298 = vlaneseq
          %v7299 = vshrl.u32 %v7298, 7
          %v7300 = vsub.s32 0, %v7299
          %v7301 = vrot.slane %v7296, %v7300
          %7303 = vmatprep.subr.mxu0 0.0
          %7304 = vmatpush1.msra.mxu0 %v7280
          %7305 = vmatprep.subr.mxu0 0.0
          %7306 = vmatpush1.msra.mxu0 %v7281
          %7307 = vmatprep.subr.mxu0 0.0
          %7308 = vmatpush1.msra.mxu0 %v7282
          %7309 = vmatprep.subr.mxu0 0.0
          %7310 = vmatpush1.msra.mxu0 %v7283
          %7311 = vmatprep.subr.mxu0 0.0
          %7312 = vmatpush1.msra.mxu0 %v7284
          %7313 = vmatprep.subr.mxu0 0.0
          %7314 = vmatpush1.msra.mxu0 %v7285
          %7315 = vmatprep.subr.mxu0 0.0
          %7316 = vmatpush1.msra.mxu0 %v7286
          %7317 = vmatprep.subr.mxu0 0.0
          %7318 = vmatpush1.msra.mxu0 %v7287
          %7319 = vmatprep.subr.mxu0 0.0
          %7320 = vmatpush1.msra.mxu0 %v7288
          %7321 = vmatprep.subr.mxu0 0.0
          %7322 = vmatpush1.msra.mxu0 %v7289
          %7323 = vmatprep.subr.mxu0 0.0
          %7324 = vmatpush1.msra.mxu0 %v7290
          %7325 = vmatprep.subr.mxu0 0.0
          %7326 = vmatpush1.msra.mxu0 %v7291
          %7327 = vmatprep.subr.mxu0 0.0
          %7328 = vmatpush1.msra.mxu0 %v7292
          %7329 = vmatprep.subr.mxu0 0.0
          %7330 = vmatpush1.msra.mxu0 %v7293
          %7331 = vmatprep.subr.mxu0 0.0
          %7332 = vmatpush1.msra.mxu0 %v7294
          %7333 = vmatprep.subr.mxu0 0.0
          %7334 = vmatpush1.msra.mxu0 %v7295
          %7335 = vmatprep.subr.mxu0 0.0
          %7336 = vmatpush1.msra.mxu0 0.0
          %7337 = vmatprep.subr.mxu0 0.0
          %7338 = vmatpush1.msra.mxu0 0.0
          %7339 = vmatprep.subr.mxu0 0.0
          %7340 = vmatpush1.msra.mxu0 0.0
          %7341 = vmatprep.subr.mxu0 0.0
          %7342 = vmatpush1.msra.mxu0 0.0
          %7343 = vmatprep.subr.mxu0 0.0
          %7344 = vmatpush1.msra.mxu0 0.0
          %7345 = vmatprep.subr.mxu0 0.0
          %7346 = vmatpush1.msra.mxu0 0.0
          %7347 = vmatprep.subr.mxu0 0.0
          %7348 = vmatpush1.msra.mxu0 0.0
          %7349 = vmatprep.subr.mxu0 0.0
          %7350 = vmatpush1.msra.mxu0 0.0
          %7351 = vmatprep.subr.mxu0 0.0
          %7352 = vmatpush1.msra.mxu0 0.0
          %7353 = vmatprep.subr.mxu0 0.0
          %7354 = vmatpush1.msra.mxu0 0.0
          %7355 = vmatprep.subr.mxu0 0.0
          %7356 = vmatpush1.msra.mxu0 0.0
          %7357 = vmatprep.subr.mxu0 0.0
          %7358 = vmatpush1.msra.mxu0 0.0
          %7359 = vmatprep.subr.mxu0 0.0
          %7360 = vmatpush1.msra.mxu0 0.0
          %7361 = vmatprep.subr.mxu0 0.0
          %7362 = vmatpush1.msra.mxu0 0.0
          %7363 = vmatprep.subr.mxu0 0.0
          %7364 = vmatpush1.msra.mxu0 0.0
          %7365 = vmatprep.subr.mxu0 0.0
          %7366 = vmatpush1.msra.mxu0 0.0
          %7367 = vmatprep.mubr.f32.mxu0 0.0
          %7368 = vmatmul.mubr.f32.gmra.mrb[0].mxu0 %v7278
          %v7369 = vpop.f32.mrb[0].mxu0
          %v7370 = vadd.f32 %v7301, %v7369
          %v7371 = vpop.f32.mrb[0].mxu0
          %7372 = vmatprep.mubr.f32.mxu0 0.0
          %7373 = vmatmul.mubr.f32.gmra.mrb[0].mxu0 %v7279
          %v7374 = vpop.f32.mrb[0].mxu0
          %v7375 = vadd.f32 %v7301, %v7374
          %v7376 = vpop.f32.mrb[0].mxu0
          %7377 = vdwg.mxu0
          %7378 = vst [vmem:[#allocation15] sm:$0xff] %v7370
          %7379 = vst [vmem:[#allocation15 + $0x8] sm:$0xff] %v7375
        $region84: #{tpu_custom_call.1} parent=47 // pred_fallthru
          _
        // Predicated region
        $region85: #{tpu_custom_call.1} parent=47 // pred_check
          %p7380 = pneg %p216
        $region86: #{tpu_custom_call.1} parent=47 // pred_check_branch
          %7382 = sbr.rel (%p7380) target = $region88
        $region87: #{tpu_custom_call.1} parent=47 // pred_region
          %s7383 = smul.u32 2, %s31
          %s7385 = ssub.s32 256, 256
          %7386 = vsyncadd [#allocation5], %s7385
          %s7387 = smul.addr %s7383, 128
          %s7388 = scalar_lea.hbm %s7, %s7387
          %s7389 = sshll.u32 [#allocation15], 4
          %s7390 = int_to_ptr.vmem [resolvable:$true] %s7389
          %7395 = dma.vmem_to_hbm [thread:$0]  %s7390, 256, %s7388, [#allocation5], 128, 128, 8
        $region88: #{tpu_custom_call.1} parent=47 // pred_fallthru
          _
        // Predicated region
        $region89: #{tpu_custom_call.1} parent=47 // pred_check
          %p7396 = pneg %p216
        $region90: #{tpu_custom_call.1} parent=47 // pred_check_branch
          %7398 = sbr.rel (%p7396) target = $region92
        $region91: #{tpu_custom_call.1} parent=47 // pred_region
          %7399 = dma.done [#allocation5], 256
        $region92: #{tpu_custom_call.1} parent=47 // pred_fallthru
          _
      $region48: #{tpu_custom_call.1} parent=5 // pred_fallthru
        _
      %p7400 = scmp.le.s32.totalorder 2, %s22
      // Predicated region
      $region93: #{tpu_custom_call.1} parent=5 // pred_check
        %p7401 = pneg %p7400
      $region94: #{tpu_custom_call.1} parent=5 // pred_check_branch
        %7403 = sbr.rel (%p7401) target = $region96
      $region95: #{tpu_custom_call.1} parent=5 // pred_region
        %s7404 = ssub.s32 %s22, 2
      $region96: #{tpu_custom_call.1} parent=5 // pred_fallthru
        _
    $region6: #{tpu_custom_call.1} parent=1 // loop_footer
      %s26 = sadd.s32 1, %s22
    $region7: #{tpu_custom_call.1} parent=1 // loop_footer_branch
      %21 = sbr.rel target = $region3
    $region8: #{tpu_custom_call.1} parent=1 // loop_exit
      _
    %7405 = vsyncpa [#allocation4], 1
    %s7406 = scalar_lea.sflag [#allocation4], 1
    %7407 = vsyncpa %s7406, 1
    %7408 = vsyncpa [#allocation7], 1
    %s7409 = scalar_lea.sflag [#allocation7], 1
    %7410 = vsyncpa %s7409, 1
    %7411 = vsyncpa [#allocation10], 1
    %7412 = vsyncpa [#allocation13], 1
    %7413 = vsyncpa [#allocation5], 1
    %s7414 = scalar_lea.sflag [#allocation5], 1
    %7415 = vsyncpa %s7414, 1

</llo_original>
